<compile_context>
chip_gen: v5e
topology: v5e:2x2
jax: 0.10.0
libtpu: 0.0.40
codegen_flags: <defaults>
</compile_context>

<pallas_src>
import functools

import jax
import jax.numpy as jnp
from jax.experimental import pallas as pl
from jax.experimental.pallas import tpu as pltpu


def _round_up(x, m):
    return ((x + m - 1) // m) * m


def _div_mod(flat, n):
    """(flat // n, flat % n); shifts/masks when n is a power of two (VPU-safe)."""
    if n & (n - 1) == 0:
        shift = n.bit_length() - 1
        return flat >> shift, flat & (n - 1)
    # Non-power-of-two H/W fall back to generic integer div/mod lowering.
    return flat // n, flat % n


def _init_conv3d_kernel(x_ref, w_ref, b_ref, o_ref, *, d_dim, h_dim, w_dim, cin, pad):
    """One batch element of a 3x3x3 'same' conv on the flattened spatial axis.

    x_ref: (1, Cin, D*H*W)    flattened (NCDHW-order) input block
    w_ref: (Cout, 27*Cin)     weights, tap-major: w[co, (kd*9+kh*3+kw)*Cin + ci]
    b_ref: (Cout, 1)          bias column
    o_ref: (1, Cout, D*H*W)   flattened output block (lane-dense: D*H*W lanes)
    """
    dhw = d_dim * h_dim * w_dim
    hw = h_dim * w_dim
    cout = o_ref.shape[1]

    # In-kernel zero halo on the flat axis (covers all depth out-of-range taps).
    xc = x_ref[0]                                        # (Cin, DHW)
    zpad = jnp.zeros((cin, pad), dtype=xc.dtype)
    xfull = jnp.concatenate([zpad, xc, zpad], axis=1)    # (Cin, DHW + 2*pad)

    wfull = w_ref[...]                                   # (Cout, 27*Cin)

    # Output-voxel (h, w) coordinates along the flattened axis (for edge masks).
    flat = jax.lax.broadcasted_iota(jnp.int32, (1, dhw), 1)
    q, w_idx = _div_mod(flat, w_dim)                     # q = d*H + h
    _, h_idx = _div_mod(q, h_dim)

    acc = jnp.zeros((cout, dhw), jnp.float32)

    for kh in range(3):
        for kw in range(3):
            dh, dw = kh - 1, kw - 1
            # Mask output positions whose (h+dh, w+dw) source wraps across rows.
            conds = []
            if dh == -1:
                conds.append(h_idx >= 1)
            if dh == 1:
                conds.append(h_idx < h_dim - 1)
            if dw == -1:
                conds.append(w_idx >= 1)
            if dw == 1:
                conds.append(w_idx < w_dim - 1)
            valid = None
            for c in conds:
                valid = c if valid is None else (valid & c)

            for kd in range(3):
                dd = kd - 1
                start = pad + dd * hw + dh * w_dim + dw
                patch = xfull[:, start:start + dhw]      # (Cin, DHW)
                if valid is not None:
                    patch = jnp.where(valid, patch, jnp.zeros_like(patch))

                t = (kd * 3 + kh) * 3 + kw
                w_tap = wfull[:, t * cin:(t + 1) * cin]  # (Cout, Cin)
                if cin == 1:
                    # Outer product (K=1): exact f32 broadcast-multiply on the VPU.
                    acc = acc + (w_tap.astype(jnp.float32)
                                 * patch.astype(jnp.float32))
                else:
                    # General case: per-tap MXU matmul with f32 accumulation.
                    acc = acc + jnp.dot(
                        w_tap, patch,
                        preferred_element_type=jnp.float32,
                        precision=jax.lax.Precision.HIGHEST)

    acc = acc + b_ref[...].astype(jnp.float32)
    o_ref[0] = acc.astype(o_ref.dtype)


def init_conv_forward(x_ncdhw, weight_oidhw, bias, dropout_rate=0.0,
                      dropout_key=None, training=False):
    """Forward pass of InitConv. x is NCDHW (PyTorch convention)."""
    n, cin, d, h, w = x_ncdhw.shape
    cout = weight_oidhw.shape[0]
    dhw = d * h * w

    # Free reshapes only (no transposes, no HBM padding pass).
    x_flat = x_ncdhw.reshape(n, cin, dhw)
    # (Cout, Cin, 3,3,3) -> (Cout, 27*Cin), tap-major (tiny tensor).
    w_flat = jnp.transpose(weight_oidhw, (0, 2, 3, 4, 1)).reshape(cout, 27 * cin)
    b_col = bias.reshape(cout, 1)

    # Zero halo big enough for the largest tap shift (H*W + W + 1), rounded to
    # 128 lanes so the concatenation into the padded buffer stays lane-aligned.
    pad = _round_up(h * w + w + 1, 128)

    kernel = functools.partial(_init_conv3d_kernel,
                               d_dim=d, h_dim=h, w_dim=w, cin=cin, pad=pad)

    # TODO(synk): add spatial (D) tiling with halo re-slicing for
    # production-scale volumes (e.g. 128^3) whose (Cout, D*H*W) block would not
    # fit VMEM; test-scale volumes fit one whole volume per grid step.
    out_flat = pl.pallas_call(
        kernel,
        out_shape=jax.ShapeDtypeStruct((n, cout, dhw), x_ncdhw.dtype),
        grid_spec=pltpu.PrefetchScalarGridSpec(
            num_scalar_prefetch=0,
            grid=(n,),
            in_specs=[
                pl.BlockSpec((1, cin, dhw), lambda i: (i, 0, 0)),
                pl.BlockSpec((cout, 27 * cin), lambda i: (0, 0)),
                pl.BlockSpec((cout, 1), lambda i: (0, 0)),
            ],
            out_specs=pl.BlockSpec((1, cout, dhw), lambda i: (i, 0, 0)),
        ),
        compiler_params=pltpu.CompilerParams(
            dimension_semantics=("parallel",),
            vmem_limit_bytes=32 * 1024 * 1024,
        ),
    )(x_flat, w_flat, b_col)

    out = out_flat.reshape(n, cout, d, h, w)

    if dropout_rate > 0.0 and training:
        # Dropout3d: zero whole channels, scale survivors by 1/(1-p) (plain JAX).
        keep = jax.random.bernoulli(dropout_key, 1.0 - dropout_rate, (n, cout))
        out = out * keep[:, :, None, None, None].astype(out.dtype) / (1.0 - dropout_rate)
    return out


if __name__ == "__main__":
    key = jax.random.PRNGKey(0)
    kx, kw, kb = jax.random.split(key, 3)

    # Small shapes consistent with InitConv defaults (in_channels=1, out_channels=16).
    N, Cin, D, H, W = 2, 1, 8, 16, 16
    Cout = 16

    x = jax.random.normal(kx, (N, Cin, D, H, W), jnp.float32)

    # Deterministic parameter init (PyTorch-like uniform(-1/sqrt(fan_in), +)).
    fan_in = Cin * 3 * 3 * 3
    bound = 1.0 / (fan_in ** 0.5)
    weight = jax.random.uniform(kw, (Cout, Cin, 3, 3, 3), jnp.float32, -bound, bound)
    bias = jax.random.uniform(kb, (Cout,), jnp.float32, -bound, bound)

    out = init_conv_forward(x, weight, bias, dropout_rate=0.0)
    out = jax.block_until_ready(out)
    assert out.shape == (N, Cout, D, H, W)

    # Cross-check against XLA's conv (same semantics as nn.Conv3d, padding=1).
    ref = jax.lax.conv_general_dilated(
        x, weight, window_strides=(1, 1, 1),
        padding=((1, 1), (1, 1), (1, 1)),
        dimension_numbers=('NCDHW', 'OIDHW', 'NCDHW'),
        precision=jax.lax.Precision.HIGHEST,
    ) + bias[None, :, None, None, None]
    assert jnp.allclose(out, ref, atol=1e-4, rtol=1e-4), \
        float(jnp.max(jnp.abs(out - ref)))

    print("KERNEL_OK")
</pallas_src>

<mosaic_0001>
module attributes {stable_mosaic.version = 11 : i64} {
  func.func @_init_conv3d_kernel(%arg0: i32, %arg1: memref<1x1x2048xf32, #tpu.memory_space<vmem>>, %arg2: memref<16x27xf32, #tpu.memory_space<vmem>>, %arg3: memref<16x1xf32, #tpu.memory_space<vmem>>, %arg4: memref<1x16x2048xf32, #tpu.memory_space<vmem>>) attributes {dimension_semantics = [#tpu.dimension_semantics<parallel>], iteration_bounds = array<i64: 2>, scalar_prefetch = 0 : i64, scratch_operands = 0 : i64, tpu.core_type = #tpu.core_type<tc>, window_params = [{transform_indices = @transform_0, window_bounds = array<i64: 1, 1, 2048>}, {pipeline_mode = #tpu.pipeline_mode<synchronous>, transform_indices = @transform_1, window_bounds = array<i64: 16, 27>}, {pipeline_mode = #tpu.pipeline_mode<synchronous>, transform_indices = @transform_2, window_bounds = array<i64: 16, 1>}, {transform_indices = @transform_3, window_bounds = array<i64: 1, 16, 2048>}]} {
    %c0 = arith.constant 0 : index
    %c0_0 = arith.constant 0 : index
    %c0_1 = arith.constant 0 : index
    %0 = vector.load %arg1[%c0, %c0_0, %c0_1] : memref<1x1x2048xf32, #tpu.memory_space<vmem>>, vector<1x1x2048xf32>
    %1 = vector.shape_cast %0 : vector<1x1x2048xf32> to vector<1x2048xf32>
    %cst = arith.constant 0.000000e+00 : f32
    %2 = vector.broadcast %cst : f32 to vector<1x384xf32>
    %3 = tpu.concatenate %2, %1, %2 in 1 : vector<1x384xf32>, vector<1x2048xf32>, vector<1x384xf32> -> vector<1x2816xf32>
    %c0_2 = arith.constant 0 : index
    %c0_3 = arith.constant 0 : index
    %4 = vector.load %arg2[%c0_2, %c0_3] : memref<16x27xf32, #tpu.memory_space<vmem>>, vector<16x27xf32>
    %5 = tpu.iota {dimensions = array<i32: 1>} : vector<1x2048xi32>
    %c4_i32 = arith.constant 4 : i32
    %6 = vector.broadcast %c4_i32 : i32 to vector<1x2048xi32>
    %7 = arith.shrsi %5, %6 : vector<1x2048xi32>
    %c15_i32 = arith.constant 15 : i32
    %8 = vector.broadcast %c15_i32 : i32 to vector<1x2048xi32>
    %9 = arith.andi %5, %8 : vector<1x2048xi32>
    %c15_i32_4 = arith.constant 15 : i32
    %10 = vector.broadcast %c15_i32_4 : i32 to vector<1x2048xi32>
    %11 = arith.andi %7, %10 : vector<1x2048xi32>
    %cst_5 = arith.constant 0.000000e+00 : f32
    %12 = vector.broadcast %cst_5 : f32 to vector<16x2048xf32>
    %c1_i32 = arith.constant 1 : i32
    %13 = vector.broadcast %c1_i32 : i32 to vector<1x2048xi32>
    %14 = arith.cmpi sge, %11, %13 : vector<1x2048xi32>
    %c1_i32_6 = arith.constant 1 : i32
    %15 = vector.broadcast %c1_i32_6 : i32 to vector<1x2048xi32>
    %16 = arith.cmpi sge, %9, %15 : vector<1x2048xi32>
    %17 = arith.andi %14, %16 : vector<1x2048xi1>
    %18 = vector.extract_strided_slice %3 {offsets = [0, 111], sizes = [1, 2048], strides = [1, 1]} : vector<1x2816xf32> to vector<1x2048xf32>
    %cst_7 = arith.constant 0.000000e+00 : f32
    %19 = vector.broadcast %cst_7 : f32 to vector<1x2048xf32>
    %20 = arith.select %17, %18, %19 : vector<1x2048xi1>, vector<1x2048xf32>
    %21 = vector.extract_strided_slice %4 {offsets = [0, 0], sizes = [16, 1], strides = [1, 1]} : vector<16x27xf32> to vector<16x1xf32>
    %22 = vector.broadcast %21 : vector<16x1xf32> to vector<16x2048xf32>
    %23 = vector.broadcast %20 : vector<1x2048xf32> to vector<16x2048xf32>
    %24 = arith.mulf %22, %23 : vector<16x2048xf32>
    %25 = arith.addf %12, %24 : vector<16x2048xf32>
    %26 = vector.extract_strided_slice %3 {offsets = [0, 367], sizes = [1, 2048], strides = [1, 1]} : vector<1x2816xf32> to vector<1x2048xf32>
    %cst_8 = arith.constant 0.000000e+00 : f32
    %27 = vector.broadcast %cst_8 : f32 to vector<1x2048xf32>
    %28 = arith.select %17, %26, %27 : vector<1x2048xi1>, vector<1x2048xf32>
    %29 = vector.extract_strided_slice %4 {offsets = [0, 9], sizes = [16, 1], strides = [1, 1]} : vector<16x27xf32> to vector<16x1xf32>
    %30 = vector.broadcast %29 : vector<16x1xf32> to vector<16x2048xf32>
    %31 = vector.broadcast %28 : vector<1x2048xf32> to vector<16x2048xf32>
    %32 = arith.mulf %30, %31 : vector<16x2048xf32>
    %33 = arith.addf %25, %32 : vector<16x2048xf32>
    %34 = vector.extract_strided_slice %3 {offsets = [0, 623], sizes = [1, 2048], strides = [1, 1]} : vector<1x2816xf32> to vector<1x2048xf32>
    %cst_9 = arith.constant 0.000000e+00 : f32
    %35 = vector.broadcast %cst_9 : f32 to vector<1x2048xf32>
    %36 = arith.select %17, %34, %35 : vector<1x2048xi1>, vector<1x2048xf32>
    %37 = vector.extract_strided_slice %4 {offsets = [0, 18], sizes = [16, 1], strides = [1, 1]} : vector<16x27xf32> to vector<16x1xf32>
    %38 = vector.broadcast %37 : vector<16x1xf32> to vector<16x2048xf32>
    %39 = vector.broadcast %36 : vector<1x2048xf32> to vector<16x2048xf32>
    %40 = arith.mulf %38, %39 : vector<16x2048xf32>
    %41 = arith.addf %33, %40 : vector<16x2048xf32>
    %c1_i32_10 = arith.constant 1 : i32
    %42 = vector.broadcast %c1_i32_10 : i32 to vector<1x2048xi32>
    %43 = arith.cmpi sge, %11, %42 : vector<1x2048xi32>
    %44 = vector.extract_strided_slice %3 {offsets = [0, 112], sizes = [1, 2048], strides = [1, 1]} : vector<1x2816xf32> to vector<1x2048xf32>
    %cst_11 = arith.constant 0.000000e+00 : f32
    %45 = vector.broadcast %cst_11 : f32 to vector<1x2048xf32>
    %46 = arith.select %43, %44, %45 : vector<1x2048xi1>, vector<1x2048xf32>
    %47 = vector.extract_strided_slice %4 {offsets = [0, 1], sizes = [16, 1], strides = [1, 1]} : vector<16x27xf32> to vector<16x1xf32>
    %48 = vector.broadcast %47 : vector<16x1xf32> to vector<16x2048xf32>
    %49 = vector.broadcast %46 : vector<1x2048xf32> to vector<16x2048xf32>
    %50 = arith.mulf %48, %49 : vector<16x2048xf32>
    %51 = arith.addf %41, %50 : vector<16x2048xf32>
    %52 = vector.extract_strided_slice %3 {offsets = [0, 368], sizes = [1, 2048], strides = [1, 1]} : vector<1x2816xf32> to vector<1x2048xf32>
    %cst_12 = arith.constant 0.000000e+00 : f32
    %53 = vector.broadcast %cst_12 : f32 to vector<1x2048xf32>
    %54 = arith.select %43, %52, %53 : vector<1x2048xi1>, vector<1x2048xf32>
    %55 = vector.extract_strided_slice %4 {offsets = [0, 10], sizes = [16, 1], strides = [1, 1]} : vector<16x27xf32> to vector<16x1xf32>
    %56 = vector.broadcast %55 : vector<16x1xf32> to vector<16x2048xf32>
    %57 = vector.broadcast %54 : vector<1x2048xf32> to vector<16x2048xf32>
    %58 = arith.mulf %56, %57 : vector<16x2048xf32>
    %59 = arith.addf %51, %58 : vector<16x2048xf32>
    %60 = vector.extract_strided_slice %3 {offsets = [0, 624], sizes = [1, 2048], strides = [1, 1]} : vector<1x2816xf32> to vector<1x2048xf32>
    %cst_13 = arith.constant 0.000000e+00 : f32
    %61 = vector.broadcast %cst_13 : f32 to vector<1x2048xf32>
    %62 = arith.select %43, %60, %61 : vector<1x2048xi1>, vector<1x2048xf32>
    %63 = vector.extract_strided_slice %4 {offsets = [0, 19], sizes = [16, 1], strides = [1, 1]} : vector<16x27xf32> to vector<16x1xf32>
    %64 = vector.broadcast %63 : vector<16x1xf32> to vector<16x2048xf32>
    %65 = vector.broadcast %62 : vector<1x2048xf32> to vector<16x2048xf32>
    %66 = arith.mulf %64, %65 : vector<16x2048xf32>
    %67 = arith.addf %59, %66 : vector<16x2048xf32>
    %c1_i32_14 = arith.constant 1 : i32
    %68 = vector.broadcast %c1_i32_14 : i32 to vector<1x2048xi32>
    %69 = arith.cmpi sge, %11, %68 : vector<1x2048xi32>
    %c15_i32_15 = arith.constant 15 : i32
    %70 = vector.broadcast %c15_i32_15 : i32 to vector<1x2048xi32>
    %71 = arith.cmpi slt, %9, %70 : vector<1x2048xi32>
    %72 = arith.andi %69, %71 : vector<1x2048xi1>
    %73 = vector.extract_strided_slice %3 {offsets = [0, 113], sizes = [1, 2048], strides = [1, 1]} : vector<1x2816xf32> to vector<1x2048xf32>
    %cst_16 = arith.constant 0.000000e+00 : f32
    %74 = vector.broadcast %cst_16 : f32 to vector<1x2048xf32>
    %75 = arith.select %72, %73, %74 : vector<1x2048xi1>, vector<1x2048xf32>
    %76 = vector.extract_strided_slice %4 {offsets = [0, 2], sizes = [16, 1], strides = [1, 1]} : vector<16x27xf32> to vector<16x1xf32>
    %77 = vector.broadcast %76 : vector<16x1xf32> to vector<16x2048xf32>
    %78 = vector.broadcast %75 : vector<1x2048xf32> to vector<16x2048xf32>
    %79 = arith.mulf %77, %78 : vector<16x2048xf32>
    %80 = arith.addf %67, %79 : vector<16x2048xf32>
    %81 = vector.extract_strided_slice %3 {offsets = [0, 369], sizes = [1, 2048], strides = [1, 1]} : vector<1x2816xf32> to vector<1x2048xf32>
    %cst_17 = arith.constant 0.000000e+00 : f32
    %82 = vector.broadcast %cst_17 : f32 to vector<1x2048xf32>
    %83 = arith.select %72, %81, %82 : vector<1x2048xi1>, vector<1x2048xf32>
    %84 = vector.extract_strided_slice %4 {offsets = [0, 11], sizes = [16, 1], strides = [1, 1]} : vector<16x27xf32> to vector<16x1xf32>
    %85 = vector.broadcast %84 : vector<16x1xf32> to vector<16x2048xf32>
    %86 = vector.broadcast %83 : vector<1x2048xf32> to vector<16x2048xf32>
    %87 = arith.mulf %85, %86 : vector<16x2048xf32>
    %88 = arith.addf %80, %87 : vector<16x2048xf32>
    %89 = vector.extract_strided_slice %3 {offsets = [0, 625], sizes = [1, 2048], strides = [1, 1]} : vector<1x2816xf32> to vector<1x2048xf32>
    %cst_18 = arith.constant 0.000000e+00 : f32
    %90 = vector.broadcast %cst_18 : f32 to vector<1x2048xf32>
    %91 = arith.select %72, %89, %90 : vector<1x2048xi1>, vector<1x2048xf32>
    %92 = vector.extract_strided_slice %4 {offsets = [0, 20], sizes = [16, 1], strides = [1, 1]} : vector<16x27xf32> to vector<16x1xf32>
    %93 = vector.broadcast %92 : vector<16x1xf32> to vector<16x2048xf32>
    %94 = vector.broadcast %91 : vector<1x2048xf32> to vector<16x2048xf32>
    %95 = arith.mulf %93, %94 : vector<16x2048xf32>
    %96 = arith.addf %88, %95 : vector<16x2048xf32>
    %c1_i32_19 = arith.constant 1 : i32
    %97 = vector.broadcast %c1_i32_19 : i32 to vector<1x2048xi32>
    %98 = arith.cmpi sge, %9, %97 : vector<1x2048xi32>
    %99 = vector.extract_strided_slice %3 {offsets = [0, 127], sizes = [1, 2048], strides = [1, 1]} : vector<1x2816xf32> to vector<1x2048xf32>
    %cst_20 = arith.constant 0.000000e+00 : f32
    %100 = vector.broadcast %cst_20 : f32 to vector<1x2048xf32>
    %101 = arith.select %98, %99, %100 : vector<1x2048xi1>, vector<1x2048xf32>
    %102 = vector.extract_strided_slice %4 {offsets = [0, 3], sizes = [16, 1], strides = [1, 1]} : vector<16x27xf32> to vector<16x1xf32>
    %103 = vector.broadcast %102 : vector<16x1xf32> to vector<16x2048xf32>
    %104 = vector.broadcast %101 : vector<1x2048xf32> to vector<16x2048xf32>
    %105 = arith.mulf %103, %104 : vector<16x2048xf32>
    %106 = arith.addf %96, %105 : vector<16x2048xf32>
    %107 = vector.extract_strided_slice %3 {offsets = [0, 383], sizes = [1, 2048], strides = [1, 1]} : vector<1x2816xf32> to vector<1x2048xf32>
    %cst_21 = arith.constant 0.000000e+00 : f32
    %108 = vector.broadcast %cst_21 : f32 to vector<1x2048xf32>
    %109 = arith.select %98, %107, %108 : vector<1x2048xi1>, vector<1x2048xf32>
    %110 = vector.extract_strided_slice %4 {offsets = [0, 12], sizes = [16, 1], strides = [1, 1]} : vector<16x27xf32> to vector<16x1xf32>
    %111 = vector.broadcast %110 : vector<16x1xf32> to vector<16x2048xf32>
    %112 = vector.broadcast %109 : vector<1x2048xf32> to vector<16x2048xf32>
    %113 = arith.mulf %111, %112 : vector<16x2048xf32>
    %114 = arith.addf %106, %113 : vector<16x2048xf32>
    %115 = vector.extract_strided_slice %3 {offsets = [0, 639], sizes = [1, 2048], strides = [1, 1]} : vector<1x2816xf32> to vector<1x2048xf32>
    %cst_22 = arith.constant 0.000000e+00 : f32
    %116 = vector.broadcast %cst_22 : f32 to vector<1x2048xf32>
    %117 = arith.select %98, %115, %116 : vector<1x2048xi1>, vector<1x2048xf32>
    %118 = vector.extract_strided_slice %4 {offsets = [0, 21], sizes = [16, 1], strides = [1, 1]} : vector<16x27xf32> to vector<16x1xf32>
    %119 = vector.broadcast %118 : vector<16x1xf32> to vector<16x2048xf32>
    %120 = vector.broadcast %117 : vector<1x2048xf32> to vector<16x2048xf32>
    %121 = arith.mulf %119, %120 : vector<16x2048xf32>
    %122 = arith.addf %114, %121 : vector<16x2048xf32>
    %123 = vector.extract_strided_slice %3 {offsets = [0, 128], sizes = [1, 2048], strides = [1, 1]} : vector<1x2816xf32> to vector<1x2048xf32>
    %124 = vector.extract_strided_slice %4 {offsets = [0, 4], sizes = [16, 1], strides = [1, 1]} : vector<16x27xf32> to vector<16x1xf32>
    %125 = vector.broadcast %124 : vector<16x1xf32> to vector<16x2048xf32>
    %126 = vector.broadcast %123 : vector<1x2048xf32> to vector<16x2048xf32>
    %127 = arith.mulf %125, %126 : vector<16x2048xf32>
    %128 = arith.addf %122, %127 : vector<16x2048xf32>
    %129 = vector.extract_strided_slice %3 {offsets = [0, 384], sizes = [1, 2048], strides = [1, 1]} : vector<1x2816xf32> to vector<1x2048xf32>
    %130 = vector.extract_strided_slice %4 {offsets = [0, 13], sizes = [16, 1], strides = [1, 1]} : vector<16x27xf32> to vector<16x1xf32>
    %131 = vector.broadcast %130 : vector<16x1xf32> to vector<16x2048xf32>
    %132 = vector.broadcast %129 : vector<1x2048xf32> to vector<16x2048xf32>
    %133 = arith.mulf %131, %132 : vector<16x2048xf32>
    %134 = arith.addf %128, %133 : vector<16x2048xf32>
    %135 = vector.extract_strided_slice %3 {offsets = [0, 640], sizes = [1, 2048], strides = [1, 1]} : vector<1x2816xf32> to vector<1x2048xf32>
    %136 = vector.extract_strided_slice %4 {offsets = [0, 22], sizes = [16, 1], strides = [1, 1]} : vector<16x27xf32> to vector<16x1xf32>
    %137 = vector.broadcast %136 : vector<16x1xf32> to vector<16x2048xf32>
    %138 = vector.broadcast %135 : vector<1x2048xf32> to vector<16x2048xf32>
    %139 = arith.mulf %137, %138 : vector<16x2048xf32>
    %140 = arith.addf %134, %139 : vector<16x2048xf32>
    %c15_i32_23 = arith.constant 15 : i32
    %141 = vector.broadcast %c15_i32_23 : i32 to vector<1x2048xi32>
    %142 = arith.cmpi slt, %9, %141 : vector<1x2048xi32>
    %143 = vector.extract_strided_slice %3 {offsets = [0, 129], sizes = [1, 2048], strides = [1, 1]} : vector<1x2816xf32> to vector<1x2048xf32>
    %cst_24 = arith.constant 0.000000e+00 : f32
    %144 = vector.broadcast %cst_24 : f32 to vector<1x2048xf32>
    %145 = arith.select %142, %143, %144 : vector<1x2048xi1>, vector<1x2048xf32>
    %146 = vector.extract_strided_slice %4 {offsets = [0, 5], sizes = [16, 1], strides = [1, 1]} : vector<16x27xf32> to vector<16x1xf32>
    %147 = vector.broadcast %146 : vector<16x1xf32> to vector<16x2048xf32>
    %148 = vector.broadcast %145 : vector<1x2048xf32> to vector<16x2048xf32>
    %149 = arith.mulf %147, %148 : vector<16x2048xf32>
    %150 = arith.addf %140, %149 : vector<16x2048xf32>
    %151 = vector.extract_strided_slice %3 {offsets = [0, 385], sizes = [1, 2048], strides = [1, 1]} : vector<1x2816xf32> to vector<1x2048xf32>
    %cst_25 = arith.constant 0.000000e+00 : f32
    %152 = vector.broadcast %cst_25 : f32 to vector<1x2048xf32>
    %153 = arith.select %142, %151, %152 : vector<1x2048xi1>, vector<1x2048xf32>
    %154 = vector.extract_strided_slice %4 {offsets = [0, 14], sizes = [16, 1], strides = [1, 1]} : vector<16x27xf32> to vector<16x1xf32>
    %155 = vector.broadcast %154 : vector<16x1xf32> to vector<16x2048xf32>
    %156 = vector.broadcast %153 : vector<1x2048xf32> to vector<16x2048xf32>
    %157 = arith.mulf %155, %156 : vector<16x2048xf32>
    %158 = arith.addf %150, %157 : vector<16x2048xf32>
    %159 = vector.extract_strided_slice %3 {offsets = [0, 641], sizes = [1, 2048], strides = [1, 1]} : vector<1x2816xf32> to vector<1x2048xf32>
    %cst_26 = arith.constant 0.000000e+00 : f32
    %160 = vector.broadcast %cst_26 : f32 to vector<1x2048xf32>
    %161 = arith.select %142, %159, %160 : vector<1x2048xi1>, vector<1x2048xf32>
    %162 = vector.extract_strided_slice %4 {offsets = [0, 23], sizes = [16, 1], strides = [1, 1]} : vector<16x27xf32> to vector<16x1xf32>
    %163 = vector.broadcast %162 : vector<16x1xf32> to vector<16x2048xf32>
    %164 = vector.broadcast %161 : vector<1x2048xf32> to vector<16x2048xf32>
    %165 = arith.mulf %163, %164 : vector<16x2048xf32>
    %166 = arith.addf %158, %165 : vector<16x2048xf32>
    %c15_i32_27 = arith.constant 15 : i32
    %167 = vector.broadcast %c15_i32_27 : i32 to vector<1x2048xi32>
    %168 = arith.cmpi slt, %11, %167 : vector<1x2048xi32>
    %c1_i32_28 = arith.constant 1 : i32
    %169 = vector.broadcast %c1_i32_28 : i32 to vector<1x2048xi32>
    %170 = arith.cmpi sge, %9, %169 : vector<1x2048xi32>
    %171 = arith.andi %168, %170 : vector<1x2048xi1>
    %172 = vector.extract_strided_slice %3 {offsets = [0, 143], sizes = [1, 2048], strides = [1, 1]} : vector<1x2816xf32> to vector<1x2048xf32>
    %cst_29 = arith.constant 0.000000e+00 : f32
    %173 = vector.broadcast %cst_29 : f32 to vector<1x2048xf32>
    %174 = arith.select %171, %172, %173 : vector<1x2048xi1>, vector<1x2048xf32>
    %175 = vector.extract_strided_slice %4 {offsets = [0, 6], sizes = [16, 1], strides = [1, 1]} : vector<16x27xf32> to vector<16x1xf32>
    %176 = vector.broadcast %175 : vector<16x1xf32> to vector<16x2048xf32>
    %177 = vector.broadcast %174 : vector<1x2048xf32> to vector<16x2048xf32>
    %178 = arith.mulf %176, %177 : vector<16x2048xf32>
    %179 = arith.addf %166, %178 : vector<16x2048xf32>
    %180 = vector.extract_strided_slice %3 {offsets = [0, 399], sizes = [1, 2048], strides = [1, 1]} : vector<1x2816xf32> to vector<1x2048xf32>
    %cst_30 = arith.constant 0.000000e+00 : f32
    %181 = vector.broadcast %cst_30 : f32 to vector<1x2048xf32>
    %182 = arith.select %171, %180, %181 : vector<1x2048xi1>, vector<1x2048xf32>
    %183 = vector.extract_strided_slice %4 {offsets = [0, 15], sizes = [16, 1], strides = [1, 1]} : vector<16x27xf32> to vector<16x1xf32>
    %184 = vector.broadcast %183 : vector<16x1xf32> to vector<16x2048xf32>
    %185 = vector.broadcast %182 : vector<1x2048xf32> to vector<16x2048xf32>
    %186 = arith.mulf %184, %185 : vector<16x2048xf32>
    %187 = arith.addf %179, %186 : vector<16x2048xf32>
    %188 = vector.extract_strided_slice %3 {offsets = [0, 655], sizes = [1, 2048], strides = [1, 1]} : vector<1x2816xf32> to vector<1x2048xf32>
    %cst_31 = arith.constant 0.000000e+00 : f32
    %189 = vector.broadcast %cst_31 : f32 to vector<1x2048xf32>
    %190 = arith.select %171, %188, %189 : vector<1x2048xi1>, vector<1x2048xf32>
    %191 = vector.extract_strided_slice %4 {offsets = [0, 24], sizes = [16, 1], strides = [1, 1]} : vector<16x27xf32> to vector<16x1xf32>
    %192 = vector.broadcast %191 : vector<16x1xf32> to vector<16x2048xf32>
    %193 = vector.broadcast %190 : vector<1x2048xf32> to vector<16x2048xf32>
    %194 = arith.mulf %192, %193 : vector<16x2048xf32>
    %195 = arith.addf %187, %194 : vector<16x2048xf32>
    %c15_i32_32 = arith.constant 15 : i32
    %196 = vector.broadcast %c15_i32_32 : i32 to vector<1x2048xi32>
    %197 = arith.cmpi slt, %11, %196 : vector<1x2048xi32>
    %198 = vector.extract_strided_slice %3 {offsets = [0, 144], sizes = [1, 2048], strides = [1, 1]} : vector<1x2816xf32> to vector<1x2048xf32>
    %cst_33 = arith.constant 0.000000e+00 : f32
    %199 = vector.broadcast %cst_33 : f32 to vector<1x2048xf32>
    %200 = arith.select %197, %198, %199 : vector<1x2048xi1>, vector<1x2048xf32>
    %201 = vector.extract_strided_slice %4 {offsets = [0, 7], sizes = [16, 1], strides = [1, 1]} : vector<16x27xf32> to vector<16x1xf32>
    %202 = vector.broadcast %201 : vector<16x1xf32> to vector<16x2048xf32>
    %203 = vector.broadcast %200 : vector<1x2048xf32> to vector<16x2048xf32>
    %204 = arith.mulf %202, %203 : vector<16x2048xf32>
    %205 = arith.addf %195, %204 : vector<16x2048xf32>
    %206 = vector.extract_strided_slice %3 {offsets = [0, 400], sizes = [1, 2048], strides = [1, 1]} : vector<1x2816xf32> to vector<1x2048xf32>
    %cst_34 = arith.constant 0.000000e+00 : f32
    %207 = vector.broadcast %cst_34 : f32 to vector<1x2048xf32>
    %208 = arith.select %197, %206, %207 : vector<1x2048xi1>, vector<1x2048xf32>
    %209 = vector.extract_strided_slice %4 {offsets = [0, 16], sizes = [16, 1], strides = [1, 1]} : vector<16x27xf32> to vector<16x1xf32>
    %210 = vector.broadcast %209 : vector<16x1xf32> to vector<16x2048xf32>
    %211 = vector.broadcast %208 : vector<1x2048xf32> to vector<16x2048xf32>
    %212 = arith.mulf %210, %211 : vector<16x2048xf32>
    %213 = arith.addf %205, %212 : vector<16x2048xf32>
    %214 = vector.extract_strided_slice %3 {offsets = [0, 656], sizes = [1, 2048], strides = [1, 1]} : vector<1x2816xf32> to vector<1x2048xf32>
    %cst_35 = arith.constant 0.000000e+00 : f32
    %215 = vector.broadcast %cst_35 : f32 to vector<1x2048xf32>
    %216 = arith.select %197, %214, %215 : vector<1x2048xi1>, vector<1x2048xf32>
    %217 = vector.extract_strided_slice %4 {offsets = [0, 25], sizes = [16, 1], strides = [1, 1]} : vector<16x27xf32> to vector<16x1xf32>
    %218 = vector.broadcast %217 : vector<16x1xf32> to vector<16x2048xf32>
    %219 = vector.broadcast %216 : vector<1x2048xf32> to vector<16x2048xf32>
    %220 = arith.mulf %218, %219 : vector<16x2048xf32>
    %221 = arith.addf %213, %220 : vector<16x2048xf32>
    %c15_i32_36 = arith.constant 15 : i32
    %222 = vector.broadcast %c15_i32_36 : i32 to vector<1x2048xi32>
    %223 = arith.cmpi slt, %11, %222 : vector<1x2048xi32>
    %c15_i32_37 = arith.constant 15 : i32
    %224 = vector.broadcast %c15_i32_37 : i32 to vector<1x2048xi32>
    %225 = arith.cmpi slt, %9, %224 : vector<1x2048xi32>
    %226 = arith.andi %223, %225 : vector<1x2048xi1>
    %227 = vector.extract_strided_slice %3 {offsets = [0, 145], sizes = [1, 2048], strides = [1, 1]} : vector<1x2816xf32> to vector<1x2048xf32>
    %cst_38 = arith.constant 0.000000e+00 : f32
    %228 = vector.broadcast %cst_38 : f32 to vector<1x2048xf32>
    %229 = arith.select %226, %227, %228 : vector<1x2048xi1>, vector<1x2048xf32>
    %230 = vector.extract_strided_slice %4 {offsets = [0, 8], sizes = [16, 1], strides = [1, 1]} : vector<16x27xf32> to vector<16x1xf32>
    %231 = vector.broadcast %230 : vector<16x1xf32> to vector<16x2048xf32>
    %232 = vector.broadcast %229 : vector<1x2048xf32> to vector<16x2048xf32>
    %233 = arith.mulf %231, %232 : vector<16x2048xf32>
    %234 = arith.addf %221, %233 : vector<16x2048xf32>
    %235 = vector.extract_strided_slice %3 {offsets = [0, 401], sizes = [1, 2048], strides = [1, 1]} : vector<1x2816xf32> to vector<1x2048xf32>
    %cst_39 = arith.constant 0.000000e+00 : f32
    %236 = vector.broadcast %cst_39 : f32 to vector<1x2048xf32>
    %237 = arith.select %226, %235, %236 : vector<1x2048xi1>, vector<1x2048xf32>
    %238 = vector.extract_strided_slice %4 {offsets = [0, 17], sizes = [16, 1], strides = [1, 1]} : vector<16x27xf32> to vector<16x1xf32>
    %239 = vector.broadcast %238 : vector<16x1xf32> to vector<16x2048xf32>
    %240 = vector.broadcast %237 : vector<1x2048xf32> to vector<16x2048xf32>
    %241 = arith.mulf %239, %240 : vector<16x2048xf32>
    %242 = arith.addf %234, %241 : vector<16x2048xf32>
    %243 = vector.extract_strided_slice %3 {offsets = [0, 657], sizes = [1, 2048], strides = [1, 1]} : vector<1x2816xf32> to vector<1x2048xf32>
    %cst_40 = arith.constant 0.000000e+00 : f32
    %244 = vector.broadcast %cst_40 : f32 to vector<1x2048xf32>
    %245 = arith.select %226, %243, %244 : vector<1x2048xi1>, vector<1x2048xf32>
    %246 = vector.extract_strided_slice %4 {offsets = [0, 26], sizes = [16, 1], strides = [1, 1]} : vector<16x27xf32> to vector<16x1xf32>
    %247 = vector.broadcast %246 : vector<16x1xf32> to vector<16x2048xf32>
    %248 = vector.broadcast %245 : vector<1x2048xf32> to vector<16x2048xf32>
    %249 = arith.mulf %247, %248 : vector<16x2048xf32>
    %250 = arith.addf %242, %249 : vector<16x2048xf32>
    %c0_41 = arith.constant 0 : index
    %c0_42 = arith.constant 0 : index
    %251 = vector.load %arg3[%c0_41, %c0_42] : memref<16x1xf32, #tpu.memory_space<vmem>>, vector<16x1xf32>
    %252 = vector.broadcast %251 : vector<16x1xf32> to vector<16x2048xf32>
    %253 = arith.addf %250, %252 : vector<16x2048xf32>
    %c0_43 = arith.constant 0 : index
    %c0_44 = arith.constant 0 : index
    %c0_45 = arith.constant 0 : index
    %254 = vector.load %arg4[%c0_43, %c0_44, %c0_45] : memref<1x16x2048xf32, #tpu.memory_space<vmem>>, vector<1x16x2048xf32>
    %255 = vector.shape_cast %254 : vector<1x16x2048xf32> to vector<16x2048xf32>
    %256 = vector.shape_cast %253 : vector<16x2048xf32> to vector<1x16x2048xf32>
    tpu.vector_store %arg4[%c0_43, %c0_44, %c0_45], %256 {strides = array<i32>} : memref<1x16x2048xf32, #tpu.memory_space<vmem>>, vector<1x16x2048xf32>,
    return
  }
  func.func @transform_0(%arg0: i32) -> (i32, i32, i32) {
    %c0_i32 = arith.constant 0 : i32
    %c0_i32_0 = arith.constant 0 : i32
    %c0_i32_1 = arith.constant 0 : i32
    return %arg0, %c0_i32, %c0_i32_0 : i32, i32, i32
  }
  func.func @transform_1(%arg0: i32) -> (i32, i32) {
    %c0_i32 = arith.constant 0 : i32
    %c0_i32_0 = arith.constant 0 : i32
    %c0_i32_1 = arith.constant 0 : i32
    return %c0_i32, %c0_i32_0 : i32, i32
  }
  func.func @transform_2(%arg0: i32) -> (i32, i32) {
    %c0_i32 = arith.constant 0 : i32
    %c0_i32_0 = arith.constant 0 : i32
    %c0_i32_1 = arith.constant 0 : i32
    return %c0_i32, %c0_i32_0 : i32, i32
  }
  func.func @transform_3(%arg0: i32) -> (i32, i32, i32) {
    %c0_i32 = arith.constant 0 : i32
    %c0_i32_0 = arith.constant 0 : i32
    %c0_i32_1 = arith.constant 0 : i32
    return %arg0, %c0_i32, %c0_i32_0 : i32, i32, i32
  }
}

</mosaic_0001>

<llo_original>
// kernel: tpu_custom_call.1
$region0: #{tpu_custom_call.1}
  #allocation0 [shape = 'u32[]', space=smem, size = 0x4, offset = 0x4, fixed_abs, tag = 'smem constant byte address 0x4 - core index']
  #allocation1 [shape = 'u32[72,128]{1,0:T(1,128)}', space=vmem, size = 0x9000, scoped, tag = 'internal scratch']
  %s0 = inlined_call_operand.hbm [shape: f32[2,1,2048], index: 0, kind: input, shape index: {}]
  %s1 = inlined_call_operand.vmem [shape: f32[16,27], index: 1, kind: input, shape index: {}]
  %s2 = inlined_call_operand.vmem [shape: f32[16,1], index: 2, kind: input, shape index: {}]
  %s3 = inlined_call_operand.hbm [shape: f32[2,16,2048], index: 3, kind: output, shape index: {}]
  %s4 = sld [smem:[#allocation0]]
  $region49: #{tpu_custom_call.1} parent=0
    _
  %s6 = ssub.s32 1, %s4
  %s7 = scalar_select 0, %s6, %s4
  $region1: #{tpu_custom_call.1} parent=0
    #allocation2 [shape = 'u8[16384]{0}', space=vmem, size = 0x4000, scoped, tag = 'input window, operand 0']
    #allocation3 [shape = 's32[2]{0}', space=sflag, size = 0x8, scoped, tag = 'scoped memory for tpu_custom_call.1']
    #allocation4 [shape = 's32[2]{0}', space=sflag, size = 0x8, scoped, tag = 'scoped memory for tpu_custom_call.1']
    #allocation5 [shape = 'u8[262144]{0}', space=vmem, size = 0x40000, scoped, tag = 'output window, operand 0']
    %8 = vsyncpa [#allocation3], 0
    %s9 = scalar_lea.sflag [#allocation3], 1
    %10 = vsyncpa %s9, 0
    %11 = vsyncpa [#allocation4], 0
    %s12 = scalar_lea.sflag [#allocation4], 1
    %13 = vsyncpa %s12, 0
    loop: start=0, step=1, limit=4
    $region2: #{tpu_custom_call.1} parent=1 // loop_pre_header
      _
    $region3: #{tpu_custom_call.1} parent=1 // loop_header
      %s15 = sphi 0, %s19
      %p16 = scmp.ge.s32.totalorder %s15, 4
      %s25 = sphi 0, %s27
      %s28 = sphi 0, %s25
      %s29 = sphi 0, %s28
      %s45 = sphi 0, %s29
      %s49 = sphi 0, %s49
      %s51 = sphi 0, %s49
      %s52 = sphi 0, %s51
      %s66 = sphi 0, %s52
      %s70 = sphi 0, %s70
      %s72 = sphi 0, %s70
      %s73 = sphi 0, %s72
      %s87 = sphi 0, %s73
      %s93 = sphi 0, %s95
      %s96 = sphi 0, %s93
      %s97 = sphi 0, %s96
      %s113 = sphi 0, %s97
    $region4: #{tpu_custom_call.1} parent=1 // loop_header_branch
      %18 = sbr.rel (%p16) target = $region8
    $region5: #{tpu_custom_call.1} parent=1 // loop_body
      %s20 = ssub.s32 %s15, 1
      %s21 = ssub.s32 %s15, 2
      %s22 = sadd.s32 %s15, 1
      %s23 = ssub.s32 %s15, %s22
      %p24 = scmp.eq.s32.totalorder %s23, 0
      %s26 = sadd.s32 %s25, 1
      %s27 = scalar_select %p24, %s25, %s26
      %p30 = pneg %p24
      %p31 = scmp.eq.s32.totalorder %s15, 1
      %p32 = por %p30, %p31
      %p33 = scmp.ne.s32.totalorder %s25, %s28
      %p34 = scmp.eq.s32.totalorder %s15, 0
      %p35 = por %p33, %p34
      %p36 = scmp.ne.s32.totalorder %s25, %s28
      %p37 = scmp.eq.s32.totalorder %s20, 1
      %p38 = por %p36, %p37
      %p39 = scmp.ne.s32.totalorder %s28, %s29
      %p40 = scmp.eq.s32.totalorder %s20, 0
      %p41 = por %p39, %p40
      %p42 = scmp.ne.s32.totalorder %s28, %s29
      %p43 = scmp.eq.s32.totalorder %s21, 1
      %p44 = por %p42, %p43
      %p46 = scmp.ne.s32.totalorder %s29, %s45
      %p47 = scmp.eq.s32.totalorder %s21, 0
      %p48 = por %p46, %p47
      %s50 = sadd.s32 %s49, 1
      %p53 = scmp.eq.s32.totalorder %s15, 1
      %p54 = scmp.ne.s32.totalorder %s49, %s51
      %p55 = scmp.eq.s32.totalorder %s15, 0
      %p56 = por %p54, %p55
      %p57 = scmp.ne.s32.totalorder %s49, %s51
      %p58 = scmp.eq.s32.totalorder %s20, 1
      %p59 = por %p57, %p58
      %p60 = scmp.ne.s32.totalorder %s51, %s52
      %p61 = scmp.eq.s32.totalorder %s20, 0
      %p62 = por %p60, %p61
      %p63 = scmp.ne.s32.totalorder %s51, %s52
      %p64 = scmp.eq.s32.totalorder %s21, 1
      %p65 = por %p63, %p64
      %p67 = scmp.ne.s32.totalorder %s52, %s66
      %p68 = scmp.eq.s32.totalorder %s21, 0
      %p69 = por %p67, %p68
      %s71 = sadd.s32 %s70, 1
      %p74 = scmp.eq.s32.totalorder %s15, 1
      %p75 = scmp.ne.s32.totalorder %s70, %s72
      %p76 = scmp.eq.s32.totalorder %s15, 0
      %p77 = por %p75, %p76
      %p78 = scmp.ne.s32.totalorder %s70, %s72
      %p79 = scmp.eq.s32.totalorder %s20, 1
      %p80 = por %p78, %p79
      %p81 = scmp.ne.s32.totalorder %s72, %s73
      %p82 = scmp.eq.s32.totalorder %s20, 0
      %p83 = por %p81, %p82
      %p84 = scmp.ne.s32.totalorder %s72, %s73
      %p85 = scmp.eq.s32.totalorder %s21, 1
      %p86 = por %p84, %p85
      %p88 = scmp.ne.s32.totalorder %s73, %s87
      %p89 = scmp.eq.s32.totalorder %s21, 0
      %p90 = por %p88, %p89
      %s91 = ssub.s32 %s15, %s22
      %p92 = scmp.eq.s32.totalorder %s91, 0
      %s94 = sadd.s32 %s93, 1
      %s95 = scalar_select %p92, %s93, %s94
      %p98 = pneg %p92
      %p99 = scmp.eq.s32.totalorder %s15, 1
      %p100 = por %p98, %p99
      %p101 = scmp.ne.s32.totalorder %s93, %s96
      %p102 = scmp.eq.s32.totalorder %s15, 0
      %p103 = por %p101, %p102
      %p104 = scmp.ne.s32.totalorder %s93, %s96
      %p105 = scmp.eq.s32.totalorder %s20, 1
      %p106 = por %p104, %p105
      %p107 = scmp.ne.s32.totalorder %s96, %s97
      %p108 = scmp.eq.s32.totalorder %s20, 0
      %p109 = por %p107, %p108
      %p110 = scmp.ne.s32.totalorder %s96, %s97
      %p111 = scmp.eq.s32.totalorder %s21, 1
      %p112 = por %p110, %p111
      %p114 = scmp.ne.s32.totalorder %s97, %s113
      %p115 = scmp.eq.s32.totalorder %s21, 0
      %p116 = por %p114, %p115
      %p117 = scmp.le.s32.totalorder 1, %s15
      %p118 = scmp.lt.s32.totalorder %s15, 3
      %p119 = pnand %p117, %p118
      %p120 = pneg %p119
      // Predicated region
      $region9: #{tpu_custom_call.1} parent=5 // pred_check
        _
      $region10: #{tpu_custom_call.1} parent=5 // pred_check_branch
        %122 = sbr.rel (%p119) target = $region12
      $region11: #{tpu_custom_call.1} parent=5 // pred_region
        %s123 = ssub.s32 %s15, 1
        // Predicated region
        $region13: #{tpu_custom_call.1} parent=11 // pred_check
          %p124 = pneg %p62
        $region14: #{tpu_custom_call.1} parent=11 // pred_check_branch
          %126 = sbr.rel (%p124) target = $region16
        $region15: #{tpu_custom_call.1} parent=11 // pred_region
          _
        $region16: #{tpu_custom_call.1} parent=11 // pred_fallthru
          _
        // Predicated region
        $region17: #{tpu_custom_call.1} parent=11 // pred_check
          %p127 = pneg %p83
        $region18: #{tpu_custom_call.1} parent=11 // pred_check_branch
          %129 = sbr.rel (%p127) target = $region20
        $region19: #{tpu_custom_call.1} parent=11 // pred_region
          _
        $region20: #{tpu_custom_call.1} parent=11 // pred_fallthru
          _
      $region12: #{tpu_custom_call.1} parent=5 // pred_fallthru
        _
      %p130 = scmp.lt.s32.totalorder %s15, 2
      // Predicated region
      $region21: #{tpu_custom_call.1} parent=5 // pred_check
        %p131 = pneg %p130
      $region22: #{tpu_custom_call.1} parent=5 // pred_check_branch
        %133 = sbr.rel (%p131) target = $region24
      $region23: #{tpu_custom_call.1} parent=5 // pred_region
        // Predicated region
        $region25: #{tpu_custom_call.1} parent=23 // pred_check
          %p134 = pneg %p35
        $region26: #{tpu_custom_call.1} parent=23 // pred_check_branch
          %136 = sbr.rel (%p134) target = $region28
        $region27: #{tpu_custom_call.1} parent=23 // pred_region
          %s137 = sand.u32 %s25, 1
          %s138 = scalar_lea.sflag [#allocation3], %s137
          %s139 = sand.u32 %s25, 1
          %s140 = smul.addr %s139, 16
          %s141 = scalar_lea.vmem [#allocation2], %s140
          %143 = vsyncadd %s138, 0
          %s144 = smul.addr %s15, 16
          %s145 = scalar_lea.hbm %s0, %s144
          %s147 = sshll.u32 %s145, 4
          %s148 = int_to_ptr.hbm [resolvable:$true] %s147
          %s149 = sshll.u32 %s141, 4
          %s150 = int_to_ptr.vmem [resolvable:$true] %s149
          %152 = dma.hbm_to_vmem [thread:$0]  %s148, 256, %s150, %s138
        $region28: #{tpu_custom_call.1} parent=23 // pred_fallthru
          _
      $region24: #{tpu_custom_call.1} parent=5 // pred_fallthru
        _
      %p153 = scmp.le.s32.totalorder 1, %s15
      %p154 = scmp.lt.s32.totalorder %s15, 3
      %p155 = pnand %p153, %p154
      %p156 = pneg %p155
      // Predicated region
      $region29: #{tpu_custom_call.1} parent=5 // pred_check
        _
      $region30: #{tpu_custom_call.1} parent=5 // pred_check_branch
        %158 = sbr.rel (%p155) target = $region32
      $region31: #{tpu_custom_call.1} parent=5 // pred_region
        %s159 = ssub.s32 %s15, 1
        %s160 = sand.u32 %s28, 1
        %s161 = scalar_lea.sflag [#allocation3], %s160
        %s162 = sand.u32 %s28, 1
        %s163 = smul.addr %s162, 16
        %s164 = scalar_lea.vmem [#allocation2], %s163
        // Predicated region
        $region33: #{tpu_custom_call.1} parent=31 // pred_check
          %p165 = pneg %p41
        $region34: #{tpu_custom_call.1} parent=31 // pred_check_branch
          %167 = sbr.rel (%p165) target = $region36
        $region35: #{tpu_custom_call.1} parent=31 // pred_region
          %169 = dma.done %s161, 256
        $region36: #{tpu_custom_call.1} parent=31 // pred_fallthru
          _
        %s170 = sand.u32 %s28, 1
        %s171 = scalar_lea.sflag [#allocation3], %s170
        %s172 = sand.u32 %s28, 1
        %s173 = smul.addr %s172, 16
        %s174 = scalar_lea.vmem [#allocation2], %s173
        %p175 = pneg %p41
        %p176 = pneg %p38
        %p177 = pneg %p62
        %p178 = pneg %p59
        %p179 = pneg %p83
        %p180 = pneg %p80
        %p181 = pneg %p109
        %p182 = pneg %p106
        %s183 = sand.u32 %s96, 1
        %s184 = scalar_lea.sflag [#allocation4], %s183
        %s185 = sand.u32 %s96, 1
        %s186 = smul.addr %s185, 256
        %s187 = scalar_lea.vmem [#allocation5], %s186
        %v188 = vld [vmem:[%s164] sm:$0xff]
        %v189 = vld [vmem:[%s164 + $0x8] sm:$0xff]
        %v192 = vperm.slane %v188, 0
        %v193 = vperm.slane %v188, 1
        %v194 = vperm.slane %v188, 2
        %v195 = vperm.slane %v188, 3
        %v196 = vperm.slane %v188, 4
        %v197 = vperm.slane %v188, 5
        %v198 = vperm.slane %v188, 6
        %v199 = vperm.slane %v188, 7
        %v200 = vperm.slane %v189, 0
        %v201 = vperm.slane %v189, 1
        %v202 = vperm.slane %v189, 2
        %v203 = vperm.slane %v189, 3
        %v204 = vperm.slane %v189, 4
        %v205 = vperm.slane %v189, 5
        %v206 = vperm.slane %v189, 6
        %v207 = vperm.slane %v189, 7
        %v224 = vld [vmem:[%s1] sm:$0xff]
        %v225 = vld [vmem:[%s1 + $0x8] sm:$0xff]
        %v226 = vlaneseq
        %v227 = vand.u32 %v226, 127
        %v228 = vadd.s32 %v227, 128
        %v229 = vadd.s32 %v227, 256
        %v230 = vadd.s32 %v227, 384
        %v231 = vadd.s32 %v227, 512
        %v232 = vadd.s32 %v227, 640
        %v233 = vadd.s32 %v227, 768
        %v234 = vadd.s32 %v227, 896
        %v235 = vadd.s32 %v227, 1024
        %v236 = vadd.s32 %v227, 1152
        %v237 = vadd.s32 %v227, 1280
        %v238 = vadd.s32 %v227, 1408
        %v239 = vadd.s32 %v227, 1536
        %v240 = vadd.s32 %v227, 1664
        %v241 = vadd.s32 %v227, 1792
        %v242 = vadd.s32 %v227, 1920
        %v243 = vshra.s32 %v227, 4
        %v244 = vshra.s32 %v228, 4
        %v245 = vshra.s32 %v229, 4
        %v246 = vshra.s32 %v230, 4
        %v247 = vshra.s32 %v231, 4
        %v248 = vshra.s32 %v232, 4
        %v249 = vshra.s32 %v233, 4
        %v250 = vshra.s32 %v234, 4
        %v251 = vshra.s32 %v235, 4
        %v252 = vshra.s32 %v236, 4
        %v253 = vshra.s32 %v237, 4
        %v254 = vshra.s32 %v238, 4
        %v255 = vshra.s32 %v239, 4
        %v256 = vshra.s32 %v240, 4
        %v257 = vshra.s32 %v241, 4
        %v258 = vshra.s32 %v242, 4
        %v259 = vand.u32 %v227, 15
        %v260 = vand.u32 %v228, 15
        %v261 = vand.u32 %v229, 15
        %v262 = vand.u32 %v230, 15
        %v263 = vand.u32 %v231, 15
        %v264 = vand.u32 %v232, 15
        %v265 = vand.u32 %v233, 15
        %v266 = vand.u32 %v234, 15
        %v267 = vand.u32 %v235, 15
        %v268 = vand.u32 %v236, 15
        %v269 = vand.u32 %v237, 15
        %v270 = vand.u32 %v238, 15
        %v271 = vand.u32 %v239, 15
        %v272 = vand.u32 %v240, 15
        %v273 = vand.u32 %v241, 15
        %v274 = vand.u32 %v242, 15
        %v275 = vand.u32 %v243, 15
        %v276 = vand.u32 %v244, 15
        %v277 = vand.u32 %v245, 15
        %v278 = vand.u32 %v246, 15
        %v279 = vand.u32 %v247, 15
        %v280 = vand.u32 %v248, 15
        %v281 = vand.u32 %v249, 15
        %v282 = vand.u32 %v250, 15
        %v283 = vand.u32 %v251, 15
        %v284 = vand.u32 %v252, 15
        %v285 = vand.u32 %v253, 15
        %v286 = vand.u32 %v254, 15
        %v287 = vand.u32 %v255, 15
        %v288 = vand.u32 %v256, 15
        %v289 = vand.u32 %v257, 15
        %v290 = vand.u32 %v258, 15
        %vm291 = vcmp.ge.s32.totalorder %v275, 1
        %vm292 = vcmp.ge.s32.totalorder %v276, 1
        %vm293 = vcmp.ge.s32.totalorder %v277, 1
        %vm294 = vcmp.ge.s32.totalorder %v278, 1
        %vm295 = vcmp.ge.s32.totalorder %v279, 1
        %vm296 = vcmp.ge.s32.totalorder %v280, 1
        %vm297 = vcmp.ge.s32.totalorder %v281, 1
        %vm298 = vcmp.ge.s32.totalorder %v282, 1
        %vm299 = vcmp.ge.s32.totalorder %v283, 1
        %vm300 = vcmp.ge.s32.totalorder %v284, 1
        %vm301 = vcmp.ge.s32.totalorder %v285, 1
        %vm302 = vcmp.ge.s32.totalorder %v286, 1
        %vm303 = vcmp.ge.s32.totalorder %v287, 1
        %vm304 = vcmp.ge.s32.totalorder %v288, 1
        %vm305 = vcmp.ge.s32.totalorder %v289, 1
        %vm306 = vcmp.ge.s32.totalorder %v290, 1
        %vm307 = vcmp.ge.s32.totalorder %v259, 1
        %vm308 = vcmp.ge.s32.totalorder %v260, 1
        %vm309 = vcmp.ge.s32.totalorder %v261, 1
        %vm310 = vcmp.ge.s32.totalorder %v262, 1
        %vm311 = vcmp.ge.s32.totalorder %v263, 1
        %vm312 = vcmp.ge.s32.totalorder %v264, 1
        %vm313 = vcmp.ge.s32.totalorder %v265, 1
        %vm314 = vcmp.ge.s32.totalorder %v266, 1
        %vm315 = vcmp.ge.s32.totalorder %v267, 1
        %vm316 = vcmp.ge.s32.totalorder %v268, 1
        %vm317 = vcmp.ge.s32.totalorder %v269, 1
        %vm318 = vcmp.ge.s32.totalorder %v270, 1
        %vm319 = vcmp.ge.s32.totalorder %v271, 1
        %vm320 = vcmp.ge.s32.totalorder %v272, 1
        %vm321 = vcmp.ge.s32.totalorder %v273, 1
        %vm322 = vcmp.ge.s32.totalorder %v274, 1
        %vm323 = vmand %vm291, %vm307
        %vm324 = vmand %vm292, %vm308
        %vm325 = vmand %vm293, %vm309
        %vm326 = vmand %vm294, %vm310
        %vm327 = vmand %vm295, %vm311
        %vm328 = vmand %vm296, %vm312
        %vm329 = vmand %vm297, %vm313
        %vm330 = vmand %vm298, %vm314
        %vm331 = vmand %vm299, %vm315
        %vm332 = vmand %vm300, %vm316
        %vm333 = vmand %vm301, %vm317
        %vm334 = vmand %vm302, %vm318
        %vm335 = vmand %vm303, %vm319
        %vm336 = vmand %vm304, %vm320
        %vm337 = vmand %vm305, %vm321
        %vm338 = vmand %vm306, %vm322
        %340 = vrot.lane.b32.xlu0 0.0, 17
        %v341 = vpop.permute.xlu0 %340
        %342 = vrot.lane.b32.xlu0 %v192, 17
        %v343 = vpop.permute.xlu0 %342
        %344 = vrot.lane.b32.xlu0 %v193, 17
        %v345 = vpop.permute.xlu0 %344
        %346 = vrot.lane.b32.xlu0 %v194, 17
        %v347 = vpop.permute.xlu0 %346
        %348 = vrot.lane.b32.xlu0 %v195, 17
        %v349 = vpop.permute.xlu0 %348
        %350 = vrot.lane.b32.xlu0 %v196, 17
        %v351 = vpop.permute.xlu0 %350
        %352 = vrot.lane.b32.xlu0 %v197, 17
        %v353 = vpop.permute.xlu0 %352
        %354 = vrot.lane.b32.xlu0 %v198, 17
        %v355 = vpop.permute.xlu0 %354
        %356 = vrot.lane.b32.xlu0 %v199, 17
        %v357 = vpop.permute.xlu0 %356
        %358 = vrot.lane.b32.xlu0 %v200, 17
        %v359 = vpop.permute.xlu0 %358
        %360 = vrot.lane.b32.xlu0 %v201, 17
        %v361 = vpop.permute.xlu0 %360
        %362 = vrot.lane.b32.xlu0 %v202, 17
        %v363 = vpop.permute.xlu0 %362
        %364 = vrot.lane.b32.xlu0 %v203, 17
        %v365 = vpop.permute.xlu0 %364
        %366 = vrot.lane.b32.xlu0 %v204, 17
        %v367 = vpop.permute.xlu0 %366
        %368 = vrot.lane.b32.xlu0 %v205, 17
        %v369 = vpop.permute.xlu0 %368
        %vm370 = vcmask 138240
        %v371 = vsel %vm370, %v341, %v343
        %v372 = vsel %vm370, %v343, %v345
        %v373 = vsel %vm370, %v345, %v347
        %v374 = vsel %vm370, %v347, %v349
        %v375 = vsel %vm370, %v349, %v351
        %v376 = vsel %vm370, %v351, %v353
        %v377 = vsel %vm370, %v353, %v355
        %v378 = vsel %vm370, %v355, %v357
        %v379 = vsel %vm370, %v357, %v359
        %v380 = vsel %vm370, %v359, %v361
        %v381 = vsel %vm370, %v361, %v363
        %v382 = vsel %vm370, %v363, %v365
        %v383 = vsel %vm370, %v365, %v367
        %v384 = vsel %vm370, %v367, %v369
        %v400 = vsel %vm323, %v341, 0.0
        %v401 = vsel %vm324, %v341, 0.0
        %v402 = vsel %vm325, %v371, 0.0
        %v403 = vsel %vm326, %v372, 0.0
        %v404 = vsel %vm327, %v373, 0.0
        %v405 = vsel %vm328, %v374, 0.0
        %v406 = vsel %vm329, %v375, 0.0
        %v407 = vsel %vm330, %v376, 0.0
        %v408 = vsel %vm331, %v377, 0.0
        %v409 = vsel %vm332, %v378, 0.0
        %v410 = vsel %vm333, %v379, 0.0
        %v411 = vsel %vm334, %v380, 0.0
        %v412 = vsel %vm335, %v381, 0.0
        %v413 = vsel %vm336, %v382, 0.0
        %v414 = vsel %vm337, %v383, 0.0
        %v415 = vsel %vm338, %v384, 0.0
        %417 = vset.pattern.permute.xlu0 0
        %418 = vperm.xlu0 %417, %v224
        %v419 = vpop.permute.xlu0 %418
        %422 = vset.pattern.permute.xlu0 0
        %423 = vperm.xlu0 %422, %v225
        %v424 = vpop.permute.xlu0 %423
        %v426 = vperm.slane %v400, 0
        %v427 = vperm.slane %v401, 0
        %v428 = vperm.slane %v402, 0
        %v429 = vperm.slane %v403, 0
        %v430 = vperm.slane %v404, 0
        %v431 = vperm.slane %v405, 0
        %v432 = vperm.slane %v406, 0
        %v433 = vperm.slane %v407, 0
        %v434 = vperm.slane %v408, 0
        %v435 = vperm.slane %v409, 0
        %v436 = vperm.slane %v410, 0
        %v437 = vperm.slane %v411, 0
        %v438 = vperm.slane %v412, 0
        %v439 = vperm.slane %v413, 0
        %v440 = vperm.slane %v414, 0
        %v441 = vperm.slane %v415, 0
        %v442 = vmul.f32 %v419, %v426
        %v443 = vmul.f32 %v419, %v427
        %v444 = vmul.f32 %v419, %v428
        %v445 = vmul.f32 %v419, %v429
        %v446 = vmul.f32 %v419, %v430
        %v447 = vmul.f32 %v419, %v431
        %v448 = vmul.f32 %v419, %v432
        %v449 = vmul.f32 %v419, %v433
        %v450 = vmul.f32 %v419, %v434
        %v451 = vmul.f32 %v419, %v435
        %v452 = vmul.f32 %v419, %v436
        %v453 = vmul.f32 %v419, %v437
        %v454 = vmul.f32 %v419, %v438
        %v455 = vmul.f32 %v419, %v439
        %v456 = vmul.f32 %v419, %v440
        %v457 = vmul.f32 %v419, %v441
        %v458 = vmul.f32 %v424, %v426
        %v459 = vmul.f32 %v424, %v427
        %v460 = vmul.f32 %v424, %v428
        %v461 = vmul.f32 %v424, %v429
        %v462 = vmul.f32 %v424, %v430
        %v463 = vmul.f32 %v424, %v431
        %v464 = vmul.f32 %v424, %v432
        %v465 = vmul.f32 %v424, %v433
        %v466 = vmul.f32 %v424, %v434
        %v467 = vmul.f32 %v424, %v435
        %v468 = vmul.f32 %v424, %v436
        %v469 = vmul.f32 %v424, %v437
        %v470 = vmul.f32 %v424, %v438
        %v471 = vmul.f32 %v424, %v439
        %v472 = vmul.f32 %v424, %v440
        %v473 = vmul.f32 %v424, %v441
        %v474 = vadd.f32 %v442, 0.0
        %v475 = vadd.f32 %v443, 0.0
        %v476 = vadd.f32 %v444, 0.0
        %v477 = vadd.f32 %v445, 0.0
        %v478 = vadd.f32 %v446, 0.0
        %v479 = vadd.f32 %v447, 0.0
        %v480 = vadd.f32 %v448, 0.0
        %v481 = vadd.f32 %v449, 0.0
        %v482 = vadd.f32 %v450, 0.0
        %v483 = vadd.f32 %v451, 0.0
        %v484 = vadd.f32 %v452, 0.0
        %v485 = vadd.f32 %v453, 0.0
        %v486 = vadd.f32 %v454, 0.0
        %v487 = vadd.f32 %v455, 0.0
        %v488 = vadd.f32 %v456, 0.0
        %v489 = vadd.f32 %v457, 0.0
        %v490 = vadd.f32 %v458, 0.0
        %v491 = vadd.f32 %v459, 0.0
        %v492 = vadd.f32 %v460, 0.0
        %v493 = vadd.f32 %v461, 0.0
        %v494 = vadd.f32 %v462, 0.0
        %v495 = vadd.f32 %v463, 0.0
        %v496 = vadd.f32 %v464, 0.0
        %v497 = vadd.f32 %v465, 0.0
        %v498 = vadd.f32 %v466, 0.0
        %v499 = vadd.f32 %v467, 0.0
        %v500 = vadd.f32 %v468, 0.0
        %v501 = vadd.f32 %v469, 0.0
        %v502 = vadd.f32 %v470, 0.0
        %v503 = vadd.f32 %v471, 0.0
        %v504 = vadd.f32 %v472, 0.0
        %v505 = vadd.f32 %v473, 0.0
        %506 = vrot.lane.b32.xlu0 %v206, 17
        %v507 = vpop.permute.xlu0 %506
        %508 = vrot.lane.b32.xlu0 %v207, 17
        %v509 = vpop.permute.xlu0 %508
        %v510 = vsel %vm370, %v369, %v507
        %v511 = vsel %vm370, %v507, %v509
        %v514 = vsel %vm323, %v371, 0.0
        %v515 = vsel %vm324, %v372, 0.0
        %v516 = vsel %vm325, %v373, 0.0
        %v517 = vsel %vm326, %v374, 0.0
        %v518 = vsel %vm327, %v375, 0.0
        %v519 = vsel %vm328, %v376, 0.0
        %v520 = vsel %vm329, %v377, 0.0
        %v521 = vsel %vm330, %v378, 0.0
        %v522 = vsel %vm331, %v379, 0.0
        %v523 = vsel %vm332, %v380, 0.0
        %v524 = vsel %vm333, %v381, 0.0
        %v525 = vsel %vm334, %v382, 0.0
        %v526 = vsel %vm335, %v383, 0.0
        %v527 = vsel %vm336, %v384, 0.0
        %v528 = vsel %vm337, %v510, 0.0
        %v529 = vsel %vm338, %v511, 0.0
        %530 = vset.pattern.permute.xlu0 9
        %531 = vperm.xlu0 %530, %v224
        %v532 = vpop.permute.xlu0 %531
        %534 = vset.pattern.permute.xlu0 9
        %535 = vperm.xlu0 %534, %v225
        %v536 = vpop.permute.xlu0 %535
        %v538 = vperm.slane %v514, 0
        %v539 = vperm.slane %v515, 0
        %v540 = vperm.slane %v516, 0
        %v541 = vperm.slane %v517, 0
        %v542 = vperm.slane %v518, 0
        %v543 = vperm.slane %v519, 0
        %v544 = vperm.slane %v520, 0
        %v545 = vperm.slane %v521, 0
        %v546 = vperm.slane %v522, 0
        %v547 = vperm.slane %v523, 0
        %v548 = vperm.slane %v524, 0
        %v549 = vperm.slane %v525, 0
        %v550 = vperm.slane %v526, 0
        %v551 = vperm.slane %v527, 0
        %v552 = vperm.slane %v528, 0
        %v553 = vperm.slane %v529, 0
        %v554 = vmul.f32 %v532, %v538
        %v555 = vmul.f32 %v532, %v539
        %v556 = vmul.f32 %v532, %v540
        %v557 = vmul.f32 %v532, %v541
        %v558 = vmul.f32 %v532, %v542
        %v559 = vmul.f32 %v532, %v543
        %v560 = vmul.f32 %v532, %v544
        %v561 = vmul.f32 %v532, %v545
        %v562 = vmul.f32 %v532, %v546
        %v563 = vmul.f32 %v532, %v547
        %v564 = vmul.f32 %v532, %v548
        %v565 = vmul.f32 %v532, %v549
        %v566 = vmul.f32 %v532, %v550
        %v567 = vmul.f32 %v532, %v551
        %v568 = vmul.f32 %v532, %v552
        %v569 = vmul.f32 %v532, %v553
        %v570 = vmul.f32 %v536, %v538
        %v571 = vmul.f32 %v536, %v539
        %v572 = vmul.f32 %v536, %v540
        %v573 = vmul.f32 %v536, %v541
        %v574 = vmul.f32 %v536, %v542
        %v575 = vmul.f32 %v536, %v543
        %v576 = vmul.f32 %v536, %v544
        %v577 = vmul.f32 %v536, %v545
        %v578 = vmul.f32 %v536, %v546
        %v579 = vmul.f32 %v536, %v547
        %v580 = vmul.f32 %v536, %v548
        %v581 = vmul.f32 %v536, %v549
        %v582 = vmul.f32 %v536, %v550
        %v583 = vmul.f32 %v536, %v551
        %v584 = vmul.f32 %v536, %v552
        %v585 = vmul.f32 %v536, %v553
        %v586 = vadd.f32 %v474, %v554
        %v587 = vadd.f32 %v475, %v555
        %v588 = vadd.f32 %v476, %v556
        %v589 = vadd.f32 %v477, %v557
        %v590 = vadd.f32 %v478, %v558
        %v591 = vadd.f32 %v479, %v559
        %v592 = vadd.f32 %v480, %v560
        %v593 = vadd.f32 %v481, %v561
        %v594 = vadd.f32 %v482, %v562
        %v595 = vadd.f32 %v483, %v563
        %v596 = vadd.f32 %v484, %v564
        %v597 = vadd.f32 %v485, %v565
        %v598 = vadd.f32 %v486, %v566
        %v599 = vadd.f32 %v487, %v567
        %v600 = vadd.f32 %v488, %v568
        %v601 = vadd.f32 %v489, %v569
        %v602 = vadd.f32 %v490, %v570
        %v603 = vadd.f32 %v491, %v571
        %v604 = vadd.f32 %v492, %v572
        %v605 = vadd.f32 %v493, %v573
        %v606 = vadd.f32 %v494, %v574
        %v607 = vadd.f32 %v495, %v575
        %v608 = vadd.f32 %v496, %v576
        %v609 = vadd.f32 %v497, %v577
        %v610 = vadd.f32 %v498, %v578
        %v611 = vadd.f32 %v499, %v579
        %v612 = vadd.f32 %v500, %v580
        %v613 = vadd.f32 %v501, %v581
        %v614 = vadd.f32 %v502, %v582
        %v615 = vadd.f32 %v503, %v583
        %v616 = vadd.f32 %v504, %v584
        %v617 = vadd.f32 %v505, %v585
        %v618 = vsel %vm370, %v509, %v341
        %v620 = vsel %vm323, %v373, 0.0
        %v621 = vsel %vm324, %v374, 0.0
        %v622 = vsel %vm325, %v375, 0.0
        %v623 = vsel %vm326, %v376, 0.0
        %v624 = vsel %vm327, %v377, 0.0
        %v625 = vsel %vm328, %v378, 0.0
        %v626 = vsel %vm329, %v379, 0.0
        %v627 = vsel %vm330, %v380, 0.0
        %v628 = vsel %vm331, %v381, 0.0
        %v629 = vsel %vm332, %v382, 0.0
        %v630 = vsel %vm333, %v383, 0.0
        %v631 = vsel %vm334, %v384, 0.0
        %v632 = vsel %vm335, %v510, 0.0
        %v633 = vsel %vm336, %v511, 0.0
        %v634 = vsel %vm337, %v618, 0.0
        %v635 = vsel %vm338, %v341, 0.0
        %636 = vset.pattern.permute.xlu0 18
        %637 = vperm.xlu0 %636, %v224
        %v638 = vpop.permute.xlu0 %637
        %640 = vset.pattern.permute.xlu0 18
        %641 = vperm.xlu0 %640, %v225
        %v642 = vpop.permute.xlu0 %641
        %v644 = vperm.slane %v620, 0
        %v645 = vperm.slane %v621, 0
        %v646 = vperm.slane %v622, 0
        %v647 = vperm.slane %v623, 0
        %v648 = vperm.slane %v624, 0
        %v649 = vperm.slane %v625, 0
        %v650 = vperm.slane %v626, 0
        %v651 = vperm.slane %v627, 0
        %v652 = vperm.slane %v628, 0
        %v653 = vperm.slane %v629, 0
        %v654 = vperm.slane %v630, 0
        %v655 = vperm.slane %v631, 0
        %v656 = vperm.slane %v632, 0
        %v657 = vperm.slane %v633, 0
        %v658 = vperm.slane %v634, 0
        %v659 = vperm.slane %v635, 0
        %v660 = vmul.f32 %v638, %v644
        %v661 = vmul.f32 %v638, %v645
        %v662 = vmul.f32 %v638, %v646
        %v663 = vmul.f32 %v638, %v647
        %v664 = vmul.f32 %v638, %v648
        %v665 = vmul.f32 %v638, %v649
        %v666 = vmul.f32 %v638, %v650
        %v667 = vmul.f32 %v638, %v651
        %v668 = vmul.f32 %v638, %v652
        %v669 = vmul.f32 %v638, %v653
        %v670 = vmul.f32 %v638, %v654
        %v671 = vmul.f32 %v638, %v655
        %v672 = vmul.f32 %v638, %v656
        %v673 = vmul.f32 %v638, %v657
        %v674 = vmul.f32 %v638, %v658
        %v675 = vmul.f32 %v638, %v659
        %v676 = vmul.f32 %v642, %v644
        %v677 = vmul.f32 %v642, %v645
        %v678 = vmul.f32 %v642, %v646
        %v679 = vmul.f32 %v642, %v647
        %v680 = vmul.f32 %v642, %v648
        %v681 = vmul.f32 %v642, %v649
        %v682 = vmul.f32 %v642, %v650
        %v683 = vmul.f32 %v642, %v651
        %v684 = vmul.f32 %v642, %v652
        %v685 = vmul.f32 %v642, %v653
        %v686 = vmul.f32 %v642, %v654
        %v687 = vmul.f32 %v642, %v655
        %v688 = vmul.f32 %v642, %v656
        %v689 = vmul.f32 %v642, %v657
        %v690 = vmul.f32 %v642, %v658
        %v691 = vmul.f32 %v642, %v659
        %v692 = vadd.f32 %v586, %v660
        %v693 = vadd.f32 %v587, %v661
        %v694 = vadd.f32 %v588, %v662
        %v695 = vadd.f32 %v589, %v663
        %v696 = vadd.f32 %v590, %v664
        %v697 = vadd.f32 %v591, %v665
        %v698 = vadd.f32 %v592, %v666
        %v699 = vadd.f32 %v593, %v667
        %v700 = vadd.f32 %v594, %v668
        %v701 = vadd.f32 %v595, %v669
        %v702 = vadd.f32 %v596, %v670
        %v703 = vadd.f32 %v597, %v671
        %v704 = vadd.f32 %v598, %v672
        %v705 = vadd.f32 %v599, %v673
        %v706 = vadd.f32 %v600, %v674
        %v707 = vadd.f32 %v601, %v675
        %v708 = vadd.f32 %v602, %v676
        %v709 = vadd.f32 %v603, %v677
        %v710 = vadd.f32 %v604, %v678
        %v711 = vadd.f32 %v605, %v679
        %v712 = vadd.f32 %v606, %v680
        %v713 = vadd.f32 %v607, %v681
        %v714 = vadd.f32 %v608, %v682
        %v715 = vadd.f32 %v609, %v683
        %v716 = vadd.f32 %v610, %v684
        %v717 = vadd.f32 %v611, %v685
        %v718 = vadd.f32 %v612, %v686
        %v719 = vadd.f32 %v613, %v687
        %v720 = vadd.f32 %v614, %v688
        %v721 = vadd.f32 %v615, %v689
        %v722 = vadd.f32 %v616, %v690
        %v723 = vadd.f32 %v617, %v691
        %724 = vrot.lane.b32.xlu0 0.0, 16
        %v725 = vpop.permute.xlu0 %724
        %726 = vrot.lane.b32.xlu0 %v192, 16
        %v727 = vpop.permute.xlu0 %726
        %728 = vrot.lane.b32.xlu0 %v193, 16
        %v729 = vpop.permute.xlu0 %728
        %730 = vrot.lane.b32.xlu0 %v194, 16
        %v731 = vpop.permute.xlu0 %730
        %732 = vrot.lane.b32.xlu0 %v195, 16
        %v733 = vpop.permute.xlu0 %732
        %734 = vrot.lane.b32.xlu0 %v196, 16
        %v735 = vpop.permute.xlu0 %734
        %736 = vrot.lane.b32.xlu0 %v197, 16
        %v737 = vpop.permute.xlu0 %736
        %738 = vrot.lane.b32.xlu0 %v198, 16
        %v739 = vpop.permute.xlu0 %738
        %740 = vrot.lane.b32.xlu0 %v199, 16
        %v741 = vpop.permute.xlu0 %740
        %742 = vrot.lane.b32.xlu0 %v200, 16
        %v743 = vpop.permute.xlu0 %742
        %744 = vrot.lane.b32.xlu0 %v201, 16
        %v745 = vpop.permute.xlu0 %744
        %746 = vrot.lane.b32.xlu0 %v202, 16
        %v747 = vpop.permute.xlu0 %746
        %748 = vrot.lane.b32.xlu0 %v203, 16
        %v749 = vpop.permute.xlu0 %748
        %750 = vrot.lane.b32.xlu0 %v204, 16
        %v751 = vpop.permute.xlu0 %750
        %752 = vrot.lane.b32.xlu0 %v205, 16
        %v753 = vpop.permute.xlu0 %752
        %vm754 = vcmask 130048
        %v755 = vsel %vm754, %v725, %v727
        %v756 = vsel %vm754, %v727, %v729
        %v757 = vsel %vm754, %v729, %v731
        %v758 = vsel %vm754, %v731, %v733
        %v759 = vsel %vm754, %v733, %v735
        %v760 = vsel %vm754, %v735, %v737
        %v761 = vsel %vm754, %v737, %v739
        %v762 = vsel %vm754, %v739, %v741
        %v763 = vsel %vm754, %v741, %v743
        %v764 = vsel %vm754, %v743, %v745
        %v765 = vsel %vm754, %v745, %v747
        %v766 = vsel %vm754, %v747, %v749
        %v767 = vsel %vm754, %v749, %v751
        %v768 = vsel %vm754, %v751, %v753
        %v784 = vsel %vm291, %v725, 0.0
        %v785 = vsel %vm292, %v725, 0.0
        %v786 = vsel %vm293, %v755, 0.0
        %v787 = vsel %vm294, %v756, 0.0
        %v788 = vsel %vm295, %v757, 0.0
        %v789 = vsel %vm296, %v758, 0.0
        %v790 = vsel %vm297, %v759, 0.0
        %v791 = vsel %vm298, %v760, 0.0
        %v792 = vsel %vm299, %v761, 0.0
        %v793 = vsel %vm300, %v762, 0.0
        %v794 = vsel %vm301, %v763, 0.0
        %v795 = vsel %vm302, %v764, 0.0
        %v796 = vsel %vm303, %v765, 0.0
        %v797 = vsel %vm304, %v766, 0.0
        %v798 = vsel %vm305, %v767, 0.0
        %v799 = vsel %vm306, %v768, 0.0
        %800 = vset.pattern.permute.xlu0 1
        %801 = vperm.xlu0 %800, %v224
        %v802 = vpop.permute.xlu0 %801
        %804 = vset.pattern.permute.xlu0 1
        %805 = vperm.xlu0 %804, %v225
        %v806 = vpop.permute.xlu0 %805
        %v808 = vperm.slane %v784, 0
        %v809 = vperm.slane %v785, 0
        %v810 = vperm.slane %v786, 0
        %v811 = vperm.slane %v787, 0
        %v812 = vperm.slane %v788, 0
        %v813 = vperm.slane %v789, 0
        %v814 = vperm.slane %v790, 0
        %v815 = vperm.slane %v791, 0
        %v816 = vperm.slane %v792, 0
        %v817 = vperm.slane %v793, 0
        %v818 = vperm.slane %v794, 0
        %v819 = vperm.slane %v795, 0
        %v820 = vperm.slane %v796, 0
        %v821 = vperm.slane %v797, 0
        %v822 = vperm.slane %v798, 0
        %v823 = vperm.slane %v799, 0
        %v824 = vmul.f32 %v802, %v808
        %v825 = vmul.f32 %v802, %v809
        %v826 = vmul.f32 %v802, %v810
        %v827 = vmul.f32 %v802, %v811
        %v828 = vmul.f32 %v802, %v812
        %v829 = vmul.f32 %v802, %v813
        %v830 = vmul.f32 %v802, %v814
        %v831 = vmul.f32 %v802, %v815
        %v832 = vmul.f32 %v802, %v816
        %v833 = vmul.f32 %v802, %v817
        %v834 = vmul.f32 %v802, %v818
        %v835 = vmul.f32 %v802, %v819
        %v836 = vmul.f32 %v802, %v820
        %v837 = vmul.f32 %v802, %v821
        %v838 = vmul.f32 %v802, %v822
        %v839 = vmul.f32 %v802, %v823
        %v840 = vmul.f32 %v806, %v808
        %v841 = vmul.f32 %v806, %v809
        %v842 = vmul.f32 %v806, %v810
        %v843 = vmul.f32 %v806, %v811
        %v844 = vmul.f32 %v806, %v812
        %v845 = vmul.f32 %v806, %v813
        %v846 = vmul.f32 %v806, %v814
        %v847 = vmul.f32 %v806, %v815
        %v848 = vmul.f32 %v806, %v816
        %v849 = vmul.f32 %v806, %v817
        %v850 = vmul.f32 %v806, %v818
        %v851 = vmul.f32 %v806, %v819
        %v852 = vmul.f32 %v806, %v820
        %v853 = vmul.f32 %v806, %v821
        %v854 = vmul.f32 %v806, %v822
        %v855 = vmul.f32 %v806, %v823
        %v856 = vadd.f32 %v692, %v824
        %v857 = vadd.f32 %v693, %v825
        %v858 = vadd.f32 %v694, %v826
        %v859 = vadd.f32 %v695, %v827
        %v860 = vadd.f32 %v696, %v828
        %v861 = vadd.f32 %v697, %v829
        %v862 = vadd.f32 %v698, %v830
        %v863 = vadd.f32 %v699, %v831
        %v864 = vadd.f32 %v700, %v832
        %v865 = vadd.f32 %v701, %v833
        %v866 = vadd.f32 %v702, %v834
        %v867 = vadd.f32 %v703, %v835
        %v868 = vadd.f32 %v704, %v836
        %v869 = vadd.f32 %v705, %v837
        %v870 = vadd.f32 %v706, %v838
        %v871 = vadd.f32 %v707, %v839
        %v872 = vadd.f32 %v708, %v840
        %v873 = vadd.f32 %v709, %v841
        %v874 = vadd.f32 %v710, %v842
        %v875 = vadd.f32 %v711, %v843
        %v876 = vadd.f32 %v712, %v844
        %v877 = vadd.f32 %v713, %v845
        %v878 = vadd.f32 %v714, %v846
        %v879 = vadd.f32 %v715, %v847
        %v880 = vadd.f32 %v716, %v848
        %v881 = vadd.f32 %v717, %v849
        %v882 = vadd.f32 %v718, %v850
        %v883 = vadd.f32 %v719, %v851
        %v884 = vadd.f32 %v720, %v852
        %v885 = vadd.f32 %v721, %v853
        %v886 = vadd.f32 %v722, %v854
        %v887 = vadd.f32 %v723, %v855
        %888 = vrot.lane.b32.xlu0 %v206, 16
        %v889 = vpop.permute.xlu0 %888
        %890 = vrot.lane.b32.xlu0 %v207, 16
        %v891 = vpop.permute.xlu0 %890
        %v892 = vsel %vm754, %v753, %v889
        %v893 = vsel %vm754, %v889, %v891
        %v896 = vsel %vm291, %v755, 0.0
        %v897 = vsel %vm292, %v756, 0.0
        %v898 = vsel %vm293, %v757, 0.0
        %v899 = vsel %vm294, %v758, 0.0
        %v900 = vsel %vm295, %v759, 0.0
        %v901 = vsel %vm296, %v760, 0.0
        %v902 = vsel %vm297, %v761, 0.0
        %v903 = vsel %vm298, %v762, 0.0
        %v904 = vsel %vm299, %v763, 0.0
        %v905 = vsel %vm300, %v764, 0.0
        %v906 = vsel %vm301, %v765, 0.0
        %v907 = vsel %vm302, %v766, 0.0
        %v908 = vsel %vm303, %v767, 0.0
        %v909 = vsel %vm304, %v768, 0.0
        %v910 = vsel %vm305, %v892, 0.0
        %v911 = vsel %vm306, %v893, 0.0
        %912 = vset.pattern.permute.xlu0 10
        %913 = vperm.xlu0 %912, %v224
        %v914 = vpop.permute.xlu0 %913
        %916 = vset.pattern.permute.xlu0 10
        %917 = vperm.xlu0 %916, %v225
        %v918 = vpop.permute.xlu0 %917
        %v920 = vperm.slane %v896, 0
        %v921 = vperm.slane %v897, 0
        %v922 = vperm.slane %v898, 0
        %v923 = vperm.slane %v899, 0
        %v924 = vperm.slane %v900, 0
        %v925 = vperm.slane %v901, 0
        %v926 = vperm.slane %v902, 0
        %v927 = vperm.slane %v903, 0
        %v928 = vperm.slane %v904, 0
        %v929 = vperm.slane %v905, 0
        %v930 = vperm.slane %v906, 0
        %v931 = vperm.slane %v907, 0
        %v932 = vperm.slane %v908, 0
        %v933 = vperm.slane %v909, 0
        %v934 = vperm.slane %v910, 0
        %v935 = vperm.slane %v911, 0
        %v936 = vmul.f32 %v914, %v920
        %v937 = vmul.f32 %v914, %v921
        %v938 = vmul.f32 %v914, %v922
        %v939 = vmul.f32 %v914, %v923
        %v940 = vmul.f32 %v914, %v924
        %v941 = vmul.f32 %v914, %v925
        %v942 = vmul.f32 %v914, %v926
        %v943 = vmul.f32 %v914, %v927
        %v944 = vmul.f32 %v914, %v928
        %v945 = vmul.f32 %v914, %v929
        %v946 = vmul.f32 %v914, %v930
        %v947 = vmul.f32 %v914, %v931
        %v948 = vmul.f32 %v914, %v932
        %v949 = vmul.f32 %v914, %v933
        %v950 = vmul.f32 %v914, %v934
        %v951 = vmul.f32 %v914, %v935
        %v952 = vmul.f32 %v918, %v920
        %v953 = vmul.f32 %v918, %v921
        %v954 = vmul.f32 %v918, %v922
        %v955 = vmul.f32 %v918, %v923
        %v956 = vmul.f32 %v918, %v924
        %v957 = vmul.f32 %v918, %v925
        %v958 = vmul.f32 %v918, %v926
        %v959 = vmul.f32 %v918, %v927
        %v960 = vmul.f32 %v918, %v928
        %v961 = vmul.f32 %v918, %v929
        %v962 = vmul.f32 %v918, %v930
        %v963 = vmul.f32 %v918, %v931
        %v964 = vmul.f32 %v918, %v932
        %v965 = vmul.f32 %v918, %v933
        %v966 = vmul.f32 %v918, %v934
        %v967 = vmul.f32 %v918, %v935
        %v968 = vadd.f32 %v856, %v936
        %v969 = vadd.f32 %v857, %v937
        %v970 = vadd.f32 %v858, %v938
        %v971 = vadd.f32 %v859, %v939
        %v972 = vadd.f32 %v860, %v940
        %v973 = vadd.f32 %v861, %v941
        %v974 = vadd.f32 %v862, %v942
        %v975 = vadd.f32 %v863, %v943
        %v976 = vadd.f32 %v864, %v944
        %v977 = vadd.f32 %v865, %v945
        %v978 = vadd.f32 %v866, %v946
        %v979 = vadd.f32 %v867, %v947
        %v980 = vadd.f32 %v868, %v948
        %v981 = vadd.f32 %v869, %v949
        %v982 = vadd.f32 %v870, %v950
        %v983 = vadd.f32 %v871, %v951
        %v984 = vadd.f32 %v872, %v952
        %v985 = vadd.f32 %v873, %v953
        %v986 = vadd.f32 %v874, %v954
        %v987 = vadd.f32 %v875, %v955
        %v988 = vadd.f32 %v876, %v956
        %v989 = vadd.f32 %v877, %v957
        %v990 = vadd.f32 %v878, %v958
        %v991 = vadd.f32 %v879, %v959
        %v992 = vadd.f32 %v880, %v960
        %v993 = vadd.f32 %v881, %v961
        %v994 = vadd.f32 %v882, %v962
        %v995 = vadd.f32 %v883, %v963
        %v996 = vadd.f32 %v884, %v964
        %v997 = vadd.f32 %v885, %v965
        %v998 = vadd.f32 %v886, %v966
        %v999 = vadd.f32 %v887, %v967
        %v1000 = vsel %vm754, %v891, %v725
        %v1002 = vsel %vm291, %v757, 0.0
        %v1003 = vsel %vm292, %v758, 0.0
        %v1004 = vsel %vm293, %v759, 0.0
        %v1005 = vsel %vm294, %v760, 0.0
        %v1006 = vsel %vm295, %v761, 0.0
        %v1007 = vsel %vm296, %v762, 0.0
        %v1008 = vsel %vm297, %v763, 0.0
        %v1009 = vsel %vm298, %v764, 0.0
        %v1010 = vsel %vm299, %v765, 0.0
        %v1011 = vsel %vm300, %v766, 0.0
        %v1012 = vsel %vm301, %v767, 0.0
        %v1013 = vsel %vm302, %v768, 0.0
        %v1014 = vsel %vm303, %v892, 0.0
        %v1015 = vsel %vm304, %v893, 0.0
        %v1016 = vsel %vm305, %v1000, 0.0
        %v1017 = vsel %vm306, %v725, 0.0
        %1018 = vset.pattern.permute.xlu0 19
        %1019 = vperm.xlu0 %1018, %v224
        %v1020 = vpop.permute.xlu0 %1019
        %1022 = vset.pattern.permute.xlu0 19
        %1023 = vperm.xlu0 %1022, %v225
        %v1024 = vpop.permute.xlu0 %1023
        %v1026 = vperm.slane %v1002, 0
        %v1027 = vperm.slane %v1003, 0
        %v1028 = vperm.slane %v1004, 0
        %v1029 = vperm.slane %v1005, 0
        %v1030 = vperm.slane %v1006, 0
        %v1031 = vperm.slane %v1007, 0
        %v1032 = vperm.slane %v1008, 0
        %v1033 = vperm.slane %v1009, 0
        %v1034 = vperm.slane %v1010, 0
        %v1035 = vperm.slane %v1011, 0
        %v1036 = vperm.slane %v1012, 0
        %v1037 = vperm.slane %v1013, 0
        %v1038 = vperm.slane %v1014, 0
        %v1039 = vperm.slane %v1015, 0
        %v1040 = vperm.slane %v1016, 0
        %v1041 = vperm.slane %v1017, 0
        %v1042 = vmul.f32 %v1020, %v1026
        %v1043 = vmul.f32 %v1020, %v1027
        %v1044 = vmul.f32 %v1020, %v1028
        %v1045 = vmul.f32 %v1020, %v1029
        %v1046 = vmul.f32 %v1020, %v1030
        %v1047 = vmul.f32 %v1020, %v1031
        %v1048 = vmul.f32 %v1020, %v1032
        %v1049 = vmul.f32 %v1020, %v1033
        %v1050 = vmul.f32 %v1020, %v1034
        %v1051 = vmul.f32 %v1020, %v1035
        %v1052 = vmul.f32 %v1020, %v1036
        %v1053 = vmul.f32 %v1020, %v1037
        %v1054 = vmul.f32 %v1020, %v1038
        %v1055 = vmul.f32 %v1020, %v1039
        %v1056 = vmul.f32 %v1020, %v1040
        %v1057 = vmul.f32 %v1020, %v1041
        %v1058 = vmul.f32 %v1024, %v1026
        %v1059 = vmul.f32 %v1024, %v1027
        %v1060 = vmul.f32 %v1024, %v1028
        %v1061 = vmul.f32 %v1024, %v1029
        %v1062 = vmul.f32 %v1024, %v1030
        %v1063 = vmul.f32 %v1024, %v1031
        %v1064 = vmul.f32 %v1024, %v1032
        %v1065 = vmul.f32 %v1024, %v1033
        %v1066 = vmul.f32 %v1024, %v1034
        %v1067 = vmul.f32 %v1024, %v1035
        %v1068 = vmul.f32 %v1024, %v1036
        %v1069 = vmul.f32 %v1024, %v1037
        %v1070 = vmul.f32 %v1024, %v1038
        %v1071 = vmul.f32 %v1024, %v1039
        %v1072 = vmul.f32 %v1024, %v1040
        %v1073 = vmul.f32 %v1024, %v1041
        %v1074 = vadd.f32 %v968, %v1042
        %v1075 = vadd.f32 %v969, %v1043
        %v1076 = vadd.f32 %v970, %v1044
        %v1077 = vadd.f32 %v971, %v1045
        %v1078 = vadd.f32 %v972, %v1046
        %v1079 = vadd.f32 %v973, %v1047
        %v1080 = vadd.f32 %v974, %v1048
        %v1081 = vadd.f32 %v975, %v1049
        %v1082 = vadd.f32 %v976, %v1050
        %v1083 = vadd.f32 %v977, %v1051
        %v1084 = vadd.f32 %v978, %v1052
        %v1085 = vadd.f32 %v979, %v1053
        %v1086 = vadd.f32 %v980, %v1054
        %v1087 = vadd.f32 %v981, %v1055
        %v1088 = vadd.f32 %v982, %v1056
        %v1089 = vadd.f32 %v983, %v1057
        %v1090 = vadd.f32 %v984, %v1058
        %v1091 = vadd.f32 %v985, %v1059
        %v1092 = vadd.f32 %v986, %v1060
        %v1093 = vadd.f32 %v987, %v1061
        %v1094 = vadd.f32 %v988, %v1062
        %v1095 = vadd.f32 %v989, %v1063
        %v1096 = vadd.f32 %v990, %v1064
        %v1097 = vadd.f32 %v991, %v1065
        %v1098 = vadd.f32 %v992, %v1066
        %v1099 = vadd.f32 %v993, %v1067
        %v1100 = vadd.f32 %v994, %v1068
        %v1101 = vadd.f32 %v995, %v1069
        %v1102 = vadd.f32 %v996, %v1070
        %v1103 = vadd.f32 %v997, %v1071
        %v1104 = vadd.f32 %v998, %v1072
        %v1105 = vadd.f32 %v999, %v1073
        %vm1106 = vcmp.lt.s32.totalorder %v259, 15
        %vm1107 = vcmp.lt.s32.totalorder %v260, 15
        %vm1108 = vcmp.lt.s32.totalorder %v261, 15
        %vm1109 = vcmp.lt.s32.totalorder %v262, 15
        %vm1110 = vcmp.lt.s32.totalorder %v263, 15
        %vm1111 = vcmp.lt.s32.totalorder %v264, 15
        %vm1112 = vcmp.lt.s32.totalorder %v265, 15
        %vm1113 = vcmp.lt.s32.totalorder %v266, 15
        %vm1114 = vcmp.lt.s32.totalorder %v267, 15
        %vm1115 = vcmp.lt.s32.totalorder %v268, 15
        %vm1116 = vcmp.lt.s32.totalorder %v269, 15
        %vm1117 = vcmp.lt.s32.totalorder %v270, 15
        %vm1118 = vcmp.lt.s32.totalorder %v271, 15
        %vm1119 = vcmp.lt.s32.totalorder %v272, 15
        %vm1120 = vcmp.lt.s32.totalorder %v273, 15
        %vm1121 = vcmp.lt.s32.totalorder %v274, 15
        %vm1122 = vmand %vm291, %vm1106
        %vm1123 = vmand %vm292, %vm1107
        %vm1124 = vmand %vm293, %vm1108
        %vm1125 = vmand %vm294, %vm1109
        %vm1126 = vmand %vm295, %vm1110
        %vm1127 = vmand %vm296, %vm1111
        %vm1128 = vmand %vm297, %vm1112
        %vm1129 = vmand %vm298, %vm1113
        %vm1130 = vmand %vm299, %vm1114
        %vm1131 = vmand %vm300, %vm1115
        %vm1132 = vmand %vm301, %vm1116
        %vm1133 = vmand %vm302, %vm1117
        %vm1134 = vmand %vm303, %vm1118
        %vm1135 = vmand %vm304, %vm1119
        %vm1136 = vmand %vm305, %vm1120
        %vm1137 = vmand %vm306, %vm1121
        %1138 = vrot.lane.b32.xlu0 0.0, 15
        %v1139 = vpop.permute.xlu0 %1138
        %1140 = vrot.lane.b32.xlu0 %v192, 15
        %v1141 = vpop.permute.xlu0 %1140
        %1142 = vrot.lane.b32.xlu0 %v193, 15
        %v1143 = vpop.permute.xlu0 %1142
        %1144 = vrot.lane.b32.xlu0 %v194, 15
        %v1145 = vpop.permute.xlu0 %1144
        %1146 = vrot.lane.b32.xlu0 %v195, 15
        %v1147 = vpop.permute.xlu0 %1146
        %1148 = vrot.lane.b32.xlu0 %v196, 15
        %v1149 = vpop.permute.xlu0 %1148
        %1150 = vrot.lane.b32.xlu0 %v197, 15
        %v1151 = vpop.permute.xlu0 %1150
        %1152 = vrot.lane.b32.xlu0 %v198, 15
        %v1153 = vpop.permute.xlu0 %1152
        %1154 = vrot.lane.b32.xlu0 %v199, 15
        %v1155 = vpop.permute.xlu0 %1154
        %1156 = vrot.lane.b32.xlu0 %v200, 15
        %v1157 = vpop.permute.xlu0 %1156
        %1158 = vrot.lane.b32.xlu0 %v201, 15
        %v1159 = vpop.permute.xlu0 %1158
        %1160 = vrot.lane.b32.xlu0 %v202, 15
        %v1161 = vpop.permute.xlu0 %1160
        %1162 = vrot.lane.b32.xlu0 %v203, 15
        %v1163 = vpop.permute.xlu0 %1162
        %1164 = vrot.lane.b32.xlu0 %v204, 15
        %v1165 = vpop.permute.xlu0 %1164
        %1166 = vrot.lane.b32.xlu0 %v205, 15
        %v1167 = vpop.permute.xlu0 %1166
        %vm1168 = vcmask 121856
        %v1169 = vsel %vm1168, %v1139, %v1141
        %v1170 = vsel %vm1168, %v1141, %v1143
        %v1171 = vsel %vm1168, %v1143, %v1145
        %v1172 = vsel %vm1168, %v1145, %v1147
        %v1173 = vsel %vm1168, %v1147, %v1149
        %v1174 = vsel %vm1168, %v1149, %v1151
        %v1175 = vsel %vm1168, %v1151, %v1153
        %v1176 = vsel %vm1168, %v1153, %v1155
        %v1177 = vsel %vm1168, %v1155, %v1157
        %v1178 = vsel %vm1168, %v1157, %v1159
        %v1179 = vsel %vm1168, %v1159, %v1161
        %v1180 = vsel %vm1168, %v1161, %v1163
        %v1181 = vsel %vm1168, %v1163, %v1165
        %v1182 = vsel %vm1168, %v1165, %v1167
        %v1198 = vsel %vm1122, %v1139, 0.0
        %v1199 = vsel %vm1123, %v1139, 0.0
        %v1200 = vsel %vm1124, %v1169, 0.0
        %v1201 = vsel %vm1125, %v1170, 0.0
        %v1202 = vsel %vm1126, %v1171, 0.0
        %v1203 = vsel %vm1127, %v1172, 0.0
        %v1204 = vsel %vm1128, %v1173, 0.0
        %v1205 = vsel %vm1129, %v1174, 0.0
        %v1206 = vsel %vm1130, %v1175, 0.0
        %v1207 = vsel %vm1131, %v1176, 0.0
        %v1208 = vsel %vm1132, %v1177, 0.0
        %v1209 = vsel %vm1133, %v1178, 0.0
        %v1210 = vsel %vm1134, %v1179, 0.0
        %v1211 = vsel %vm1135, %v1180, 0.0
        %v1212 = vsel %vm1136, %v1181, 0.0
        %v1213 = vsel %vm1137, %v1182, 0.0
        %1214 = vset.pattern.permute.xlu0 2
        %1215 = vperm.xlu0 %1214, %v224
        %v1216 = vpop.permute.xlu0 %1215
        %1218 = vset.pattern.permute.xlu0 2
        %1219 = vperm.xlu0 %1218, %v225
        %v1220 = vpop.permute.xlu0 %1219
        %v1222 = vperm.slane %v1198, 0
        %v1223 = vperm.slane %v1199, 0
        %v1224 = vperm.slane %v1200, 0
        %v1225 = vperm.slane %v1201, 0
        %v1226 = vperm.slane %v1202, 0
        %v1227 = vperm.slane %v1203, 0
        %v1228 = vperm.slane %v1204, 0
        %v1229 = vperm.slane %v1205, 0
        %v1230 = vperm.slane %v1206, 0
        %v1231 = vperm.slane %v1207, 0
        %v1232 = vperm.slane %v1208, 0
        %v1233 = vperm.slane %v1209, 0
        %v1234 = vperm.slane %v1210, 0
        %v1235 = vperm.slane %v1211, 0
        %v1236 = vperm.slane %v1212, 0
        %v1237 = vperm.slane %v1213, 0
        %v1238 = vmul.f32 %v1216, %v1222
        %v1239 = vmul.f32 %v1216, %v1223
        %v1240 = vmul.f32 %v1216, %v1224
        %v1241 = vmul.f32 %v1216, %v1225
        %v1242 = vmul.f32 %v1216, %v1226
        %v1243 = vmul.f32 %v1216, %v1227
        %v1244 = vmul.f32 %v1216, %v1228
        %v1245 = vmul.f32 %v1216, %v1229
        %v1246 = vmul.f32 %v1216, %v1230
        %v1247 = vmul.f32 %v1216, %v1231
        %v1248 = vmul.f32 %v1216, %v1232
        %v1249 = vmul.f32 %v1216, %v1233
        %v1250 = vmul.f32 %v1216, %v1234
        %v1251 = vmul.f32 %v1216, %v1235
        %v1252 = vmul.f32 %v1216, %v1236
        %v1253 = vmul.f32 %v1216, %v1237
        %v1254 = vmul.f32 %v1220, %v1222
        %v1255 = vmul.f32 %v1220, %v1223
        %v1256 = vmul.f32 %v1220, %v1224
        %v1257 = vmul.f32 %v1220, %v1225
        %v1258 = vmul.f32 %v1220, %v1226
        %v1259 = vmul.f32 %v1220, %v1227
        %v1260 = vmul.f32 %v1220, %v1228
        %v1261 = vmul.f32 %v1220, %v1229
        %v1262 = vmul.f32 %v1220, %v1230
        %v1263 = vmul.f32 %v1220, %v1231
        %v1264 = vmul.f32 %v1220, %v1232
        %v1265 = vmul.f32 %v1220, %v1233
        %v1266 = vmul.f32 %v1220, %v1234
        %v1267 = vmul.f32 %v1220, %v1235
        %v1268 = vmul.f32 %v1220, %v1236
        %v1269 = vmul.f32 %v1220, %v1237
        %v1270 = vadd.f32 %v1074, %v1238
        %v1271 = vadd.f32 %v1075, %v1239
        %v1272 = vadd.f32 %v1076, %v1240
        %v1273 = vadd.f32 %v1077, %v1241
        %v1274 = vadd.f32 %v1078, %v1242
        %v1275 = vadd.f32 %v1079, %v1243
        %v1276 = vadd.f32 %v1080, %v1244
        %v1277 = vadd.f32 %v1081, %v1245
        %v1278 = vadd.f32 %v1082, %v1246
        %v1279 = vadd.f32 %v1083, %v1247
        %v1280 = vadd.f32 %v1084, %v1248
        %v1281 = vadd.f32 %v1085, %v1249
        %v1282 = vadd.f32 %v1086, %v1250
        %v1283 = vadd.f32 %v1087, %v1251
        %v1284 = vadd.f32 %v1088, %v1252
        %v1285 = vadd.f32 %v1089, %v1253
        %v1286 = vadd.f32 %v1090, %v1254
        %v1287 = vadd.f32 %v1091, %v1255
        %v1288 = vadd.f32 %v1092, %v1256
        %v1289 = vadd.f32 %v1093, %v1257
        %v1290 = vadd.f32 %v1094, %v1258
        %v1291 = vadd.f32 %v1095, %v1259
        %v1292 = vadd.f32 %v1096, %v1260
        %v1293 = vadd.f32 %v1097, %v1261
        %v1294 = vadd.f32 %v1098, %v1262
        %v1295 = vadd.f32 %v1099, %v1263
        %v1296 = vadd.f32 %v1100, %v1264
        %v1297 = vadd.f32 %v1101, %v1265
        %v1298 = vadd.f32 %v1102, %v1266
        %v1299 = vadd.f32 %v1103, %v1267
        %v1300 = vadd.f32 %v1104, %v1268
        %v1301 = vadd.f32 %v1105, %v1269
        %1302 = vrot.lane.b32.xlu0 %v206, 15
        %v1303 = vpop.permute.xlu0 %1302
        %1304 = vrot.lane.b32.xlu0 %v207, 15
        %v1305 = vpop.permute.xlu0 %1304
        %v1306 = vsel %vm1168, %v1167, %v1303
        %v1307 = vsel %vm1168, %v1303, %v1305
        %v1310 = vsel %vm1122, %v1169, 0.0
        %v1311 = vsel %vm1123, %v1170, 0.0
        %v1312 = vsel %vm1124, %v1171, 0.0
        %v1313 = vsel %vm1125, %v1172, 0.0
        %v1314 = vsel %vm1126, %v1173, 0.0
        %v1315 = vsel %vm1127, %v1174, 0.0
        %v1316 = vsel %vm1128, %v1175, 0.0
        %v1317 = vsel %vm1129, %v1176, 0.0
        %v1318 = vsel %vm1130, %v1177, 0.0
        %v1319 = vsel %vm1131, %v1178, 0.0
        %v1320 = vsel %vm1132, %v1179, 0.0
        %v1321 = vsel %vm1133, %v1180, 0.0
        %v1322 = vsel %vm1134, %v1181, 0.0
        %v1323 = vsel %vm1135, %v1182, 0.0
        %v1324 = vsel %vm1136, %v1306, 0.0
        %v1325 = vsel %vm1137, %v1307, 0.0
        %1326 = vset.pattern.permute.xlu0 11
        %1327 = vperm.xlu0 %1326, %v224
        %v1328 = vpop.permute.xlu0 %1327
        %1330 = vset.pattern.permute.xlu0 11
        %1331 = vperm.xlu0 %1330, %v225
        %v1332 = vpop.permute.xlu0 %1331
        %v1334 = vperm.slane %v1310, 0
        %v1335 = vperm.slane %v1311, 0
        %v1336 = vperm.slane %v1312, 0
        %v1337 = vperm.slane %v1313, 0
        %v1338 = vperm.slane %v1314, 0
        %v1339 = vperm.slane %v1315, 0
        %v1340 = vperm.slane %v1316, 0
        %v1341 = vperm.slane %v1317, 0
        %v1342 = vperm.slane %v1318, 0
        %v1343 = vperm.slane %v1319, 0
        %v1344 = vperm.slane %v1320, 0
        %v1345 = vperm.slane %v1321, 0
        %v1346 = vperm.slane %v1322, 0
        %v1347 = vperm.slane %v1323, 0
        %v1348 = vperm.slane %v1324, 0
        %v1349 = vperm.slane %v1325, 0
        %v1350 = vmul.f32 %v1328, %v1334
        %v1351 = vmul.f32 %v1328, %v1335
        %v1352 = vmul.f32 %v1328, %v1336
        %v1353 = vmul.f32 %v1328, %v1337
        %v1354 = vmul.f32 %v1328, %v1338
        %v1355 = vmul.f32 %v1328, %v1339
        %v1356 = vmul.f32 %v1328, %v1340
        %v1357 = vmul.f32 %v1328, %v1341
        %v1358 = vmul.f32 %v1328, %v1342
        %v1359 = vmul.f32 %v1328, %v1343
        %v1360 = vmul.f32 %v1328, %v1344
        %v1361 = vmul.f32 %v1328, %v1345
        %v1362 = vmul.f32 %v1328, %v1346
        %v1363 = vmul.f32 %v1328, %v1347
        %v1364 = vmul.f32 %v1328, %v1348
        %v1365 = vmul.f32 %v1328, %v1349
        %v1366 = vmul.f32 %v1332, %v1334
        %v1367 = vmul.f32 %v1332, %v1335
        %v1368 = vmul.f32 %v1332, %v1336
        %v1369 = vmul.f32 %v1332, %v1337
        %v1370 = vmul.f32 %v1332, %v1338
        %v1371 = vmul.f32 %v1332, %v1339
        %v1372 = vmul.f32 %v1332, %v1340
        %v1373 = vmul.f32 %v1332, %v1341
        %v1374 = vmul.f32 %v1332, %v1342
        %v1375 = vmul.f32 %v1332, %v1343
        %v1376 = vmul.f32 %v1332, %v1344
        %v1377 = vmul.f32 %v1332, %v1345
        %v1378 = vmul.f32 %v1332, %v1346
        %v1379 = vmul.f32 %v1332, %v1347
        %v1380 = vmul.f32 %v1332, %v1348
        %v1381 = vmul.f32 %v1332, %v1349
        %v1382 = vadd.f32 %v1270, %v1350
        %v1383 = vadd.f32 %v1271, %v1351
        %v1384 = vadd.f32 %v1272, %v1352
        %v1385 = vadd.f32 %v1273, %v1353
        %v1386 = vadd.f32 %v1274, %v1354
        %v1387 = vadd.f32 %v1275, %v1355
        %v1388 = vadd.f32 %v1276, %v1356
        %v1389 = vadd.f32 %v1277, %v1357
        %v1390 = vadd.f32 %v1278, %v1358
        %v1391 = vadd.f32 %v1279, %v1359
        %v1392 = vadd.f32 %v1280, %v1360
        %v1393 = vadd.f32 %v1281, %v1361
        %v1394 = vadd.f32 %v1282, %v1362
        %v1395 = vadd.f32 %v1283, %v1363
        %v1396 = vadd.f32 %v1284, %v1364
        %v1397 = vadd.f32 %v1285, %v1365
        %v1398 = vadd.f32 %v1286, %v1366
        %v1399 = vadd.f32 %v1287, %v1367
        %v1400 = vadd.f32 %v1288, %v1368
        %v1401 = vadd.f32 %v1289, %v1369
        %v1402 = vadd.f32 %v1290, %v1370
        %v1403 = vadd.f32 %v1291, %v1371
        %v1404 = vadd.f32 %v1292, %v1372
        %v1405 = vadd.f32 %v1293, %v1373
        %v1406 = vadd.f32 %v1294, %v1374
        %v1407 = vadd.f32 %v1295, %v1375
        %v1408 = vadd.f32 %v1296, %v1376
        %v1409 = vadd.f32 %v1297, %v1377
        %v1410 = vadd.f32 %v1298, %v1378
        %v1411 = vadd.f32 %v1299, %v1379
        %v1412 = vadd.f32 %v1300, %v1380
        %v1413 = vadd.f32 %v1301, %v1381
        %v1414 = vsel %vm1168, %v1305, %v1139
        %v1416 = vsel %vm1122, %v1171, 0.0
        %v1417 = vsel %vm1123, %v1172, 0.0
        %v1418 = vsel %vm1124, %v1173, 0.0
        %v1419 = vsel %vm1125, %v1174, 0.0
        %v1420 = vsel %vm1126, %v1175, 0.0
        %v1421 = vsel %vm1127, %v1176, 0.0
        %v1422 = vsel %vm1128, %v1177, 0.0
        %v1423 = vsel %vm1129, %v1178, 0.0
        %v1424 = vsel %vm1130, %v1179, 0.0
        %v1425 = vsel %vm1131, %v1180, 0.0
        %v1426 = vsel %vm1132, %v1181, 0.0
        %v1427 = vsel %vm1133, %v1182, 0.0
        %v1428 = vsel %vm1134, %v1306, 0.0
        %v1429 = vsel %vm1135, %v1307, 0.0
        %v1430 = vsel %vm1136, %v1414, 0.0
        %v1431 = vsel %vm1137, %v1139, 0.0
        %1432 = vset.pattern.permute.xlu0 20
        %1433 = vperm.xlu0 %1432, %v224
        %v1434 = vpop.permute.xlu0 %1433
        %1436 = vset.pattern.permute.xlu0 20
        %1437 = vperm.xlu0 %1436, %v225
        %v1438 = vpop.permute.xlu0 %1437
        %v1440 = vperm.slane %v1416, 0
        %v1441 = vperm.slane %v1417, 0
        %v1442 = vperm.slane %v1418, 0
        %v1443 = vperm.slane %v1419, 0
        %v1444 = vperm.slane %v1420, 0
        %v1445 = vperm.slane %v1421, 0
        %v1446 = vperm.slane %v1422, 0
        %v1447 = vperm.slane %v1423, 0
        %v1448 = vperm.slane %v1424, 0
        %v1449 = vperm.slane %v1425, 0
        %v1450 = vperm.slane %v1426, 0
        %v1451 = vperm.slane %v1427, 0
        %v1452 = vperm.slane %v1428, 0
        %v1453 = vperm.slane %v1429, 0
        %v1454 = vperm.slane %v1430, 0
        %v1455 = vperm.slane %v1431, 0
        %v1456 = vmul.f32 %v1434, %v1440
        %v1457 = vmul.f32 %v1434, %v1441
        %v1458 = vmul.f32 %v1434, %v1442
        %v1459 = vmul.f32 %v1434, %v1443
        %v1460 = vmul.f32 %v1434, %v1444
        %v1461 = vmul.f32 %v1434, %v1445
        %v1462 = vmul.f32 %v1434, %v1446
        %v1463 = vmul.f32 %v1434, %v1447
        %v1464 = vmul.f32 %v1434, %v1448
        %v1465 = vmul.f32 %v1434, %v1449
        %v1466 = vmul.f32 %v1434, %v1450
        %v1467 = vmul.f32 %v1434, %v1451
        %v1468 = vmul.f32 %v1434, %v1452
        %v1469 = vmul.f32 %v1434, %v1453
        %v1470 = vmul.f32 %v1434, %v1454
        %v1471 = vmul.f32 %v1434, %v1455
        %v1472 = vmul.f32 %v1438, %v1440
        %v1473 = vmul.f32 %v1438, %v1441
        %v1474 = vmul.f32 %v1438, %v1442
        %v1475 = vmul.f32 %v1438, %v1443
        %v1476 = vmul.f32 %v1438, %v1444
        %v1477 = vmul.f32 %v1438, %v1445
        %v1478 = vmul.f32 %v1438, %v1446
        %v1479 = vmul.f32 %v1438, %v1447
        %v1480 = vmul.f32 %v1438, %v1448
        %v1481 = vmul.f32 %v1438, %v1449
        %v1482 = vmul.f32 %v1438, %v1450
        %v1483 = vmul.f32 %v1438, %v1451
        %v1484 = vmul.f32 %v1438, %v1452
        %v1485 = vmul.f32 %v1438, %v1453
        %v1486 = vmul.f32 %v1438, %v1454
        %v1487 = vmul.f32 %v1438, %v1455
        %v1488 = vadd.f32 %v1382, %v1456
        %v1489 = vadd.f32 %v1383, %v1457
        %v1490 = vadd.f32 %v1384, %v1458
        %v1491 = vadd.f32 %v1385, %v1459
        %v1492 = vadd.f32 %v1386, %v1460
        %v1493 = vadd.f32 %v1387, %v1461
        %v1494 = vadd.f32 %v1388, %v1462
        %v1495 = vadd.f32 %v1389, %v1463
        %v1496 = vadd.f32 %v1390, %v1464
        %v1497 = vadd.f32 %v1391, %v1465
        %v1498 = vadd.f32 %v1392, %v1466
        %v1499 = vadd.f32 %v1393, %v1467
        %v1500 = vadd.f32 %v1394, %v1468
        %v1501 = vadd.f32 %v1395, %v1469
        %v1502 = vadd.f32 %v1396, %v1470
        %v1503 = vadd.f32 %v1397, %v1471
        %v1504 = vadd.f32 %v1398, %v1472
        %v1505 = vadd.f32 %v1399, %v1473
        %v1506 = vadd.f32 %v1400, %v1474
        %v1507 = vadd.f32 %v1401, %v1475
        %v1508 = vadd.f32 %v1402, %v1476
        %v1509 = vadd.f32 %v1403, %v1477
        %v1510 = vadd.f32 %v1404, %v1478
        %v1511 = vadd.f32 %v1405, %v1479
        %v1512 = vadd.f32 %v1406, %v1480
        %v1513 = vadd.f32 %v1407, %v1481
        %v1514 = vadd.f32 %v1408, %v1482
        %v1515 = vadd.f32 %v1409, %v1483
        %v1516 = vadd.f32 %v1410, %v1484
        %v1517 = vadd.f32 %v1411, %v1485
        %v1518 = vadd.f32 %v1412, %v1486
        %v1519 = vadd.f32 %v1413, %v1487
        %1520 = vrot.lane.b32.xlu0 0.0, 1
        %v1521 = vpop.permute.xlu0 %1520
        %1522 = vrot.lane.b32.xlu0 %v192, 1
        %v1523 = vpop.permute.xlu0 %1522
        %1524 = vrot.lane.b32.xlu0 %v193, 1
        %v1525 = vpop.permute.xlu0 %1524
        %1526 = vrot.lane.b32.xlu0 %v194, 1
        %v1527 = vpop.permute.xlu0 %1526
        %1528 = vrot.lane.b32.xlu0 %v195, 1
        %v1529 = vpop.permute.xlu0 %1528
        %1530 = vrot.lane.b32.xlu0 %v196, 1
        %v1531 = vpop.permute.xlu0 %1530
        %1532 = vrot.lane.b32.xlu0 %v197, 1
        %v1533 = vpop.permute.xlu0 %1532
        %1534 = vrot.lane.b32.xlu0 %v198, 1
        %v1535 = vpop.permute.xlu0 %1534
        %1536 = vrot.lane.b32.xlu0 %v199, 1
        %v1537 = vpop.permute.xlu0 %1536
        %1538 = vrot.lane.b32.xlu0 %v200, 1
        %v1539 = vpop.permute.xlu0 %1538
        %1540 = vrot.lane.b32.xlu0 %v201, 1
        %v1541 = vpop.permute.xlu0 %1540
        %1542 = vrot.lane.b32.xlu0 %v202, 1
        %v1543 = vpop.permute.xlu0 %1542
        %1544 = vrot.lane.b32.xlu0 %v203, 1
        %v1545 = vpop.permute.xlu0 %1544
        %1546 = vrot.lane.b32.xlu0 %v204, 1
        %v1547 = vpop.permute.xlu0 %1546
        %1548 = vrot.lane.b32.xlu0 %v205, 1
        %v1549 = vpop.permute.xlu0 %1548
        %vm1550 = vcmask 7168
        %v1551 = vsel %vm1550, %v1521, %v1523
        %v1552 = vsel %vm1550, %v1523, %v1525
        %v1553 = vsel %vm1550, %v1525, %v1527
        %v1554 = vsel %vm1550, %v1527, %v1529
        %v1555 = vsel %vm1550, %v1529, %v1531
        %v1556 = vsel %vm1550, %v1531, %v1533
        %v1557 = vsel %vm1550, %v1533, %v1535
        %v1558 = vsel %vm1550, %v1535, %v1537
        %v1559 = vsel %vm1550, %v1537, %v1539
        %v1560 = vsel %vm1550, %v1539, %v1541
        %v1561 = vsel %vm1550, %v1541, %v1543
        %v1562 = vsel %vm1550, %v1543, %v1545
        %v1563 = vsel %vm1550, %v1545, %v1547
        %v1564 = vsel %vm1550, %v1547, %v1549
        %v1580 = vsel %vm307, %v1521, 0.0
        %v1581 = vsel %vm308, %v1521, 0.0
        %v1582 = vsel %vm309, %v1551, 0.0
        %v1583 = vsel %vm310, %v1552, 0.0
        %v1584 = vsel %vm311, %v1553, 0.0
        %v1585 = vsel %vm312, %v1554, 0.0
        %v1586 = vsel %vm313, %v1555, 0.0
        %v1587 = vsel %vm314, %v1556, 0.0
        %v1588 = vsel %vm315, %v1557, 0.0
        %v1589 = vsel %vm316, %v1558, 0.0
        %v1590 = vsel %vm317, %v1559, 0.0
        %v1591 = vsel %vm318, %v1560, 0.0
        %v1592 = vsel %vm319, %v1561, 0.0
        %v1593 = vsel %vm320, %v1562, 0.0
        %v1594 = vsel %vm321, %v1563, 0.0
        %v1595 = vsel %vm322, %v1564, 0.0
        %1596 = vset.pattern.permute.xlu0 3
        %1597 = vperm.xlu0 %1596, %v224
        %v1598 = vpop.permute.xlu0 %1597
        %1600 = vset.pattern.permute.xlu0 3
        %1601 = vperm.xlu0 %1600, %v225
        %v1602 = vpop.permute.xlu0 %1601
        %v1604 = vperm.slane %v1580, 0
        %v1605 = vperm.slane %v1581, 0
        %v1606 = vperm.slane %v1582, 0
        %v1607 = vperm.slane %v1583, 0
        %v1608 = vperm.slane %v1584, 0
        %v1609 = vperm.slane %v1585, 0
        %v1610 = vperm.slane %v1586, 0
        %v1611 = vperm.slane %v1587, 0
        %v1612 = vperm.slane %v1588, 0
        %v1613 = vperm.slane %v1589, 0
        %v1614 = vperm.slane %v1590, 0
        %v1615 = vperm.slane %v1591, 0
        %v1616 = vperm.slane %v1592, 0
        %v1617 = vperm.slane %v1593, 0
        %v1618 = vperm.slane %v1594, 0
        %v1619 = vperm.slane %v1595, 0
        %v1620 = vmul.f32 %v1598, %v1604
        %v1621 = vmul.f32 %v1598, %v1605
        %v1622 = vmul.f32 %v1598, %v1606
        %v1623 = vmul.f32 %v1598, %v1607
        %v1624 = vmul.f32 %v1598, %v1608
        %v1625 = vmul.f32 %v1598, %v1609
        %v1626 = vmul.f32 %v1598, %v1610
        %v1627 = vmul.f32 %v1598, %v1611
        %v1628 = vmul.f32 %v1598, %v1612
        %v1629 = vmul.f32 %v1598, %v1613
        %v1630 = vmul.f32 %v1598, %v1614
        %v1631 = vmul.f32 %v1598, %v1615
        %v1632 = vmul.f32 %v1598, %v1616
        %v1633 = vmul.f32 %v1598, %v1617
        %v1634 = vmul.f32 %v1598, %v1618
        %v1635 = vmul.f32 %v1598, %v1619
        %v1636 = vmul.f32 %v1602, %v1604
        %v1637 = vmul.f32 %v1602, %v1605
        %v1638 = vmul.f32 %v1602, %v1606
        %v1639 = vmul.f32 %v1602, %v1607
        %v1640 = vmul.f32 %v1602, %v1608
        %v1641 = vmul.f32 %v1602, %v1609
        %v1642 = vmul.f32 %v1602, %v1610
        %v1643 = vmul.f32 %v1602, %v1611
        %v1644 = vmul.f32 %v1602, %v1612
        %v1645 = vmul.f32 %v1602, %v1613
        %v1646 = vmul.f32 %v1602, %v1614
        %v1647 = vmul.f32 %v1602, %v1615
        %v1648 = vmul.f32 %v1602, %v1616
        %v1649 = vmul.f32 %v1602, %v1617
        %v1650 = vmul.f32 %v1602, %v1618
        %v1651 = vmul.f32 %v1602, %v1619
        %v1652 = vadd.f32 %v1488, %v1620
        %v1653 = vadd.f32 %v1489, %v1621
        %v1654 = vadd.f32 %v1490, %v1622
        %v1655 = vadd.f32 %v1491, %v1623
        %v1656 = vadd.f32 %v1492, %v1624
        %v1657 = vadd.f32 %v1493, %v1625
        %v1658 = vadd.f32 %v1494, %v1626
        %v1659 = vadd.f32 %v1495, %v1627
        %v1660 = vadd.f32 %v1496, %v1628
        %v1661 = vadd.f32 %v1497, %v1629
        %v1662 = vadd.f32 %v1498, %v1630
        %v1663 = vadd.f32 %v1499, %v1631
        %v1664 = vadd.f32 %v1500, %v1632
        %v1665 = vadd.f32 %v1501, %v1633
        %v1666 = vadd.f32 %v1502, %v1634
        %v1667 = vadd.f32 %v1503, %v1635
        %v1668 = vadd.f32 %v1504, %v1636
        %v1669 = vadd.f32 %v1505, %v1637
        %v1670 = vadd.f32 %v1506, %v1638
        %v1671 = vadd.f32 %v1507, %v1639
        %v1672 = vadd.f32 %v1508, %v1640
        %v1673 = vadd.f32 %v1509, %v1641
        %v1674 = vadd.f32 %v1510, %v1642
        %v1675 = vadd.f32 %v1511, %v1643
        %v1676 = vadd.f32 %v1512, %v1644
        %v1677 = vadd.f32 %v1513, %v1645
        %v1678 = vadd.f32 %v1514, %v1646
        %v1679 = vadd.f32 %v1515, %v1647
        %v1680 = vadd.f32 %v1516, %v1648
        %v1681 = vadd.f32 %v1517, %v1649
        %v1682 = vadd.f32 %v1518, %v1650
        %v1683 = vadd.f32 %v1519, %v1651
        %1684 = vrot.lane.b32.xlu0 %v206, 1
        %v1685 = vpop.permute.xlu0 %1684
        %1686 = vrot.lane.b32.xlu0 %v207, 1
        %v1687 = vpop.permute.xlu0 %1686
        %v1688 = vsel %vm1550, %v1549, %v1685
        %v1689 = vsel %vm1550, %v1685, %v1687
        %v1692 = vsel %vm307, %v1551, 0.0
        %v1693 = vsel %vm308, %v1552, 0.0
        %v1694 = vsel %vm309, %v1553, 0.0
        %v1695 = vsel %vm310, %v1554, 0.0
        %v1696 = vsel %vm311, %v1555, 0.0
        %v1697 = vsel %vm312, %v1556, 0.0
        %v1698 = vsel %vm313, %v1557, 0.0
        %v1699 = vsel %vm314, %v1558, 0.0
        %v1700 = vsel %vm315, %v1559, 0.0
        %v1701 = vsel %vm316, %v1560, 0.0
        %v1702 = vsel %vm317, %v1561, 0.0
        %v1703 = vsel %vm318, %v1562, 0.0
        %v1704 = vsel %vm319, %v1563, 0.0
        %v1705 = vsel %vm320, %v1564, 0.0
        %v1706 = vsel %vm321, %v1688, 0.0
        %v1707 = vsel %vm322, %v1689, 0.0
        %1708 = vset.pattern.permute.xlu0 12
        %1709 = vperm.xlu0 %1708, %v224
        %v1710 = vpop.permute.xlu0 %1709
        %1712 = vset.pattern.permute.xlu0 12
        %1713 = vperm.xlu0 %1712, %v225
        %v1714 = vpop.permute.xlu0 %1713
        %v1716 = vperm.slane %v1692, 0
        %v1717 = vperm.slane %v1693, 0
        %v1718 = vperm.slane %v1694, 0
        %v1719 = vperm.slane %v1695, 0
        %v1720 = vperm.slane %v1696, 0
        %v1721 = vperm.slane %v1697, 0
        %v1722 = vperm.slane %v1698, 0
        %v1723 = vperm.slane %v1699, 0
        %v1724 = vperm.slane %v1700, 0
        %v1725 = vperm.slane %v1701, 0
        %v1726 = vperm.slane %v1702, 0
        %v1727 = vperm.slane %v1703, 0
        %v1728 = vperm.slane %v1704, 0
        %v1729 = vperm.slane %v1705, 0
        %v1730 = vperm.slane %v1706, 0
        %v1731 = vperm.slane %v1707, 0
        %v1732 = vmul.f32 %v1710, %v1716
        %v1733 = vmul.f32 %v1710, %v1717
        %v1734 = vmul.f32 %v1710, %v1718
        %v1735 = vmul.f32 %v1710, %v1719
        %v1736 = vmul.f32 %v1710, %v1720
        %v1737 = vmul.f32 %v1710, %v1721
        %v1738 = vmul.f32 %v1710, %v1722
        %v1739 = vmul.f32 %v1710, %v1723
        %v1740 = vmul.f32 %v1710, %v1724
        %v1741 = vmul.f32 %v1710, %v1725
        %v1742 = vmul.f32 %v1710, %v1726
        %v1743 = vmul.f32 %v1710, %v1727
        %v1744 = vmul.f32 %v1710, %v1728
        %v1745 = vmul.f32 %v1710, %v1729
        %v1746 = vmul.f32 %v1710, %v1730
        %v1747 = vmul.f32 %v1710, %v1731
        %v1748 = vmul.f32 %v1714, %v1716
        %v1749 = vmul.f32 %v1714, %v1717
        %v1750 = vmul.f32 %v1714, %v1718
        %v1751 = vmul.f32 %v1714, %v1719
        %v1752 = vmul.f32 %v1714, %v1720
        %v1753 = vmul.f32 %v1714, %v1721
        %v1754 = vmul.f32 %v1714, %v1722
        %v1755 = vmul.f32 %v1714, %v1723
        %v1756 = vmul.f32 %v1714, %v1724
        %v1757 = vmul.f32 %v1714, %v1725
        %v1758 = vmul.f32 %v1714, %v1726
        %v1759 = vmul.f32 %v1714, %v1727
        %v1760 = vmul.f32 %v1714, %v1728
        %v1761 = vmul.f32 %v1714, %v1729
        %v1762 = vmul.f32 %v1714, %v1730
        %v1763 = vmul.f32 %v1714, %v1731
        %v1764 = vadd.f32 %v1652, %v1732
        %v1765 = vadd.f32 %v1653, %v1733
        %v1766 = vadd.f32 %v1654, %v1734
        %v1767 = vadd.f32 %v1655, %v1735
        %v1768 = vadd.f32 %v1656, %v1736
        %v1769 = vadd.f32 %v1657, %v1737
        %v1770 = vadd.f32 %v1658, %v1738
        %v1771 = vadd.f32 %v1659, %v1739
        %v1772 = vadd.f32 %v1660, %v1740
        %v1773 = vadd.f32 %v1661, %v1741
        %v1774 = vadd.f32 %v1662, %v1742
        %v1775 = vadd.f32 %v1663, %v1743
        %v1776 = vadd.f32 %v1664, %v1744
        %v1777 = vadd.f32 %v1665, %v1745
        %v1778 = vadd.f32 %v1666, %v1746
        %v1779 = vadd.f32 %v1667, %v1747
        %v1780 = vadd.f32 %v1668, %v1748
        %v1781 = vadd.f32 %v1669, %v1749
        %v1782 = vadd.f32 %v1670, %v1750
        %v1783 = vadd.f32 %v1671, %v1751
        %v1784 = vadd.f32 %v1672, %v1752
        %v1785 = vadd.f32 %v1673, %v1753
        %v1786 = vadd.f32 %v1674, %v1754
        %v1787 = vadd.f32 %v1675, %v1755
        %v1788 = vadd.f32 %v1676, %v1756
        %v1789 = vadd.f32 %v1677, %v1757
        %v1790 = vadd.f32 %v1678, %v1758
        %v1791 = vadd.f32 %v1679, %v1759
        %v1792 = vadd.f32 %v1680, %v1760
        %v1793 = vadd.f32 %v1681, %v1761
        %v1794 = vadd.f32 %v1682, %v1762
        %v1795 = vadd.f32 %v1683, %v1763
        %v1796 = vsel %vm1550, %v1687, %v1521
        %v1798 = vsel %vm307, %v1553, 0.0
        %v1799 = vsel %vm308, %v1554, 0.0
        %v1800 = vsel %vm309, %v1555, 0.0
        %v1801 = vsel %vm310, %v1556, 0.0
        %v1802 = vsel %vm311, %v1557, 0.0
        %v1803 = vsel %vm312, %v1558, 0.0
        %v1804 = vsel %vm313, %v1559, 0.0
        %v1805 = vsel %vm314, %v1560, 0.0
        %v1806 = vsel %vm315, %v1561, 0.0
        %v1807 = vsel %vm316, %v1562, 0.0
        %v1808 = vsel %vm317, %v1563, 0.0
        %v1809 = vsel %vm318, %v1564, 0.0
        %v1810 = vsel %vm319, %v1688, 0.0
        %v1811 = vsel %vm320, %v1689, 0.0
        %v1812 = vsel %vm321, %v1796, 0.0
        %v1813 = vsel %vm322, %v1521, 0.0
        %1814 = vset.pattern.permute.xlu0 21
        %1815 = vperm.xlu0 %1814, %v224
        %v1816 = vpop.permute.xlu0 %1815
        %1818 = vset.pattern.permute.xlu0 21
        %1819 = vperm.xlu0 %1818, %v225
        %v1820 = vpop.permute.xlu0 %1819
        %v1822 = vperm.slane %v1798, 0
        %v1823 = vperm.slane %v1799, 0
        %v1824 = vperm.slane %v1800, 0
        %v1825 = vperm.slane %v1801, 0
        %v1826 = vperm.slane %v1802, 0
        %v1827 = vperm.slane %v1803, 0
        %v1828 = vperm.slane %v1804, 0
        %v1829 = vperm.slane %v1805, 0
        %v1830 = vperm.slane %v1806, 0
        %v1831 = vperm.slane %v1807, 0
        %v1832 = vperm.slane %v1808, 0
        %v1833 = vperm.slane %v1809, 0
        %v1834 = vperm.slane %v1810, 0
        %v1835 = vperm.slane %v1811, 0
        %v1836 = vperm.slane %v1812, 0
        %v1837 = vperm.slane %v1813, 0
        %v1838 = vmul.f32 %v1816, %v1822
        %v1839 = vmul.f32 %v1816, %v1823
        %v1840 = vmul.f32 %v1816, %v1824
        %v1841 = vmul.f32 %v1816, %v1825
        %v1842 = vmul.f32 %v1816, %v1826
        %v1843 = vmul.f32 %v1816, %v1827
        %v1844 = vmul.f32 %v1816, %v1828
        %v1845 = vmul.f32 %v1816, %v1829
        %v1846 = vmul.f32 %v1816, %v1830
        %v1847 = vmul.f32 %v1816, %v1831
        %v1848 = vmul.f32 %v1816, %v1832
        %v1849 = vmul.f32 %v1816, %v1833
        %v1850 = vmul.f32 %v1816, %v1834
        %v1851 = vmul.f32 %v1816, %v1835
        %v1852 = vmul.f32 %v1816, %v1836
        %v1853 = vmul.f32 %v1816, %v1837
        %v1854 = vmul.f32 %v1820, %v1822
        %v1855 = vmul.f32 %v1820, %v1823
        %v1856 = vmul.f32 %v1820, %v1824
        %v1857 = vmul.f32 %v1820, %v1825
        %v1858 = vmul.f32 %v1820, %v1826
        %v1859 = vmul.f32 %v1820, %v1827
        %v1860 = vmul.f32 %v1820, %v1828
        %v1861 = vmul.f32 %v1820, %v1829
        %v1862 = vmul.f32 %v1820, %v1830
        %v1863 = vmul.f32 %v1820, %v1831
        %v1864 = vmul.f32 %v1820, %v1832
        %v1865 = vmul.f32 %v1820, %v1833
        %v1866 = vmul.f32 %v1820, %v1834
        %v1867 = vmul.f32 %v1820, %v1835
        %v1868 = vmul.f32 %v1820, %v1836
        %v1869 = vmul.f32 %v1820, %v1837
        %v1870 = vadd.f32 %v1764, %v1838
        %v1871 = vadd.f32 %v1765, %v1839
        %v1872 = vadd.f32 %v1766, %v1840
        %v1873 = vadd.f32 %v1767, %v1841
        %v1874 = vadd.f32 %v1768, %v1842
        %v1875 = vadd.f32 %v1769, %v1843
        %v1876 = vadd.f32 %v1770, %v1844
        %v1877 = vadd.f32 %v1771, %v1845
        %v1878 = vadd.f32 %v1772, %v1846
        %v1879 = vadd.f32 %v1773, %v1847
        %v1880 = vadd.f32 %v1774, %v1848
        %v1881 = vadd.f32 %v1775, %v1849
        %v1882 = vadd.f32 %v1776, %v1850
        %v1883 = vadd.f32 %v1777, %v1851
        %v1884 = vadd.f32 %v1778, %v1852
        %v1885 = vadd.f32 %v1779, %v1853
        %v1886 = vadd.f32 %v1780, %v1854
        %v1887 = vadd.f32 %v1781, %v1855
        %v1888 = vadd.f32 %v1782, %v1856
        %v1889 = vadd.f32 %v1783, %v1857
        %v1890 = vadd.f32 %v1784, %v1858
        %v1891 = vadd.f32 %v1785, %v1859
        %v1892 = vadd.f32 %v1786, %v1860
        %v1893 = vadd.f32 %v1787, %v1861
        %v1894 = vadd.f32 %v1788, %v1862
        %v1895 = vadd.f32 %v1789, %v1863
        %v1896 = vadd.f32 %v1790, %v1864
        %v1897 = vadd.f32 %v1791, %v1865
        %v1898 = vadd.f32 %v1792, %v1866
        %v1899 = vadd.f32 %v1793, %v1867
        %v1900 = vadd.f32 %v1794, %v1868
        %v1901 = vadd.f32 %v1795, %v1869
        %1902 = vset.pattern.permute.xlu0 4
        %1903 = vperm.xlu0 %1902, %v224
        %v1904 = vpop.permute.xlu0 %1903
        %1906 = vset.pattern.permute.xlu0 4
        %1907 = vperm.xlu0 %1906, %v225
        %v1908 = vpop.permute.xlu0 %1907
        %v1910 = vperm.slane 0.0, 0
        %v1911 = vperm.slane %v192, 0
        %v1912 = vperm.slane %v193, 0
        %v1913 = vperm.slane %v194, 0
        %v1914 = vperm.slane %v195, 0
        %v1915 = vperm.slane %v196, 0
        %v1916 = vperm.slane %v197, 0
        %v1917 = vperm.slane %v198, 0
        %v1918 = vperm.slane %v199, 0
        %v1919 = vperm.slane %v200, 0
        %v1920 = vperm.slane %v201, 0
        %v1921 = vperm.slane %v202, 0
        %v1922 = vperm.slane %v203, 0
        %v1923 = vperm.slane %v204, 0
        %v1924 = vperm.slane %v205, 0
        %v1925 = vmul.f32 %v1904, %v1910
        %v1926 = vmul.f32 %v1904, %v1911
        %v1927 = vmul.f32 %v1904, %v1912
        %v1928 = vmul.f32 %v1904, %v1913
        %v1929 = vmul.f32 %v1904, %v1914
        %v1930 = vmul.f32 %v1904, %v1915
        %v1931 = vmul.f32 %v1904, %v1916
        %v1932 = vmul.f32 %v1904, %v1917
        %v1933 = vmul.f32 %v1904, %v1918
        %v1934 = vmul.f32 %v1904, %v1919
        %v1935 = vmul.f32 %v1904, %v1920
        %v1936 = vmul.f32 %v1904, %v1921
        %v1937 = vmul.f32 %v1904, %v1922
        %v1938 = vmul.f32 %v1904, %v1923
        %v1939 = vmul.f32 %v1904, %v1924
        %v1940 = vmul.f32 %v1908, %v1910
        %v1941 = vmul.f32 %v1908, %v1911
        %v1942 = vmul.f32 %v1908, %v1912
        %v1943 = vmul.f32 %v1908, %v1913
        %v1944 = vmul.f32 %v1908, %v1914
        %v1945 = vmul.f32 %v1908, %v1915
        %v1946 = vmul.f32 %v1908, %v1916
        %v1947 = vmul.f32 %v1908, %v1917
        %v1948 = vmul.f32 %v1908, %v1918
        %v1949 = vmul.f32 %v1908, %v1919
        %v1950 = vmul.f32 %v1908, %v1920
        %v1951 = vmul.f32 %v1908, %v1921
        %v1952 = vmul.f32 %v1908, %v1922
        %v1953 = vmul.f32 %v1908, %v1923
        %v1954 = vmul.f32 %v1908, %v1924
        %v1955 = vadd.f32 %v1870, %v1925
        %v1956 = vadd.f32 %v1871, %v1925
        %v1957 = vadd.f32 %v1872, %v1926
        %v1958 = vadd.f32 %v1873, %v1927
        %v1959 = vadd.f32 %v1874, %v1928
        %v1960 = vadd.f32 %v1875, %v1929
        %v1961 = vadd.f32 %v1876, %v1930
        %v1962 = vadd.f32 %v1877, %v1931
        %v1963 = vadd.f32 %v1878, %v1932
        %v1964 = vadd.f32 %v1879, %v1933
        %v1965 = vadd.f32 %v1880, %v1934
        %v1966 = vadd.f32 %v1881, %v1935
        %v1967 = vadd.f32 %v1882, %v1936
        %v1968 = vadd.f32 %v1883, %v1937
        %v1969 = vadd.f32 %v1884, %v1938
        %v1970 = vadd.f32 %v1885, %v1939
        %v1971 = vadd.f32 %v1886, %v1940
        %v1972 = vadd.f32 %v1887, %v1940
        %v1973 = vadd.f32 %v1888, %v1941
        %v1974 = vadd.f32 %v1889, %v1942
        %v1975 = vadd.f32 %v1890, %v1943
        %v1976 = vadd.f32 %v1891, %v1944
        %v1977 = vadd.f32 %v1892, %v1945
        %v1978 = vadd.f32 %v1893, %v1946
        %v1979 = vadd.f32 %v1894, %v1947
        %v1980 = vadd.f32 %v1895, %v1948
        %v1981 = vadd.f32 %v1896, %v1949
        %v1982 = vadd.f32 %v1897, %v1950
        %v1983 = vadd.f32 %v1898, %v1951
        %v1984 = vadd.f32 %v1899, %v1952
        %v1985 = vadd.f32 %v1900, %v1953
        %v1986 = vadd.f32 %v1901, %v1954
        %1987 = vset.pattern.permute.xlu0 13
        %1988 = vperm.xlu0 %1987, %v224
        %v1989 = vpop.permute.xlu0 %1988
        %1991 = vset.pattern.permute.xlu0 13
        %1992 = vperm.xlu0 %1991, %v225
        %v1993 = vpop.permute.xlu0 %1992
        %v1995 = vperm.slane %v206, 0
        %v1996 = vperm.slane %v207, 0
        %v1997 = vmul.f32 %v1989, %v1911
        %v1998 = vmul.f32 %v1989, %v1912
        %v1999 = vmul.f32 %v1989, %v1913
        %v2000 = vmul.f32 %v1989, %v1914
        %v2001 = vmul.f32 %v1989, %v1915
        %v2002 = vmul.f32 %v1989, %v1916
        %v2003 = vmul.f32 %v1989, %v1917
        %v2004 = vmul.f32 %v1989, %v1918
        %v2005 = vmul.f32 %v1989, %v1919
        %v2006 = vmul.f32 %v1989, %v1920
        %v2007 = vmul.f32 %v1989, %v1921
        %v2008 = vmul.f32 %v1989, %v1922
        %v2009 = vmul.f32 %v1989, %v1923
        %v2010 = vmul.f32 %v1989, %v1924
        %v2011 = vmul.f32 %v1989, %v1995
        %v2012 = vmul.f32 %v1989, %v1996
        %v2013 = vmul.f32 %v1993, %v1911
        %v2014 = vmul.f32 %v1993, %v1912
        %v2015 = vmul.f32 %v1993, %v1913
        %v2016 = vmul.f32 %v1993, %v1914
        %v2017 = vmul.f32 %v1993, %v1915
        %v2018 = vmul.f32 %v1993, %v1916
        %v2019 = vmul.f32 %v1993, %v1917
        %v2020 = vmul.f32 %v1993, %v1918
        %v2021 = vmul.f32 %v1993, %v1919
        %v2022 = vmul.f32 %v1993, %v1920
        %v2023 = vmul.f32 %v1993, %v1921
        %v2024 = vmul.f32 %v1993, %v1922
        %v2025 = vmul.f32 %v1993, %v1923
        %v2026 = vmul.f32 %v1993, %v1924
        %v2027 = vmul.f32 %v1993, %v1995
        %v2028 = vmul.f32 %v1993, %v1996
        %v2029 = vadd.f32 %v1955, %v1997
        %v2030 = vadd.f32 %v1956, %v1998
        %v2031 = vadd.f32 %v1957, %v1999
        %v2032 = vadd.f32 %v1958, %v2000
        %v2033 = vadd.f32 %v1959, %v2001
        %v2034 = vadd.f32 %v1960, %v2002
        %v2035 = vadd.f32 %v1961, %v2003
        %v2036 = vadd.f32 %v1962, %v2004
        %v2037 = vadd.f32 %v1963, %v2005
        %v2038 = vadd.f32 %v1964, %v2006
        %v2039 = vadd.f32 %v1965, %v2007
        %v2040 = vadd.f32 %v1966, %v2008
        %v2041 = vadd.f32 %v1967, %v2009
        %v2042 = vadd.f32 %v1968, %v2010
        %v2043 = vadd.f32 %v1969, %v2011
        %v2044 = vadd.f32 %v1970, %v2012
        %v2045 = vadd.f32 %v1971, %v2013
        %v2046 = vadd.f32 %v1972, %v2014
        %v2047 = vadd.f32 %v1973, %v2015
        %v2048 = vadd.f32 %v1974, %v2016
        %v2049 = vadd.f32 %v1975, %v2017
        %v2050 = vadd.f32 %v1976, %v2018
        %v2051 = vadd.f32 %v1977, %v2019
        %v2052 = vadd.f32 %v1978, %v2020
        %v2053 = vadd.f32 %v1979, %v2021
        %v2054 = vadd.f32 %v1980, %v2022
        %v2055 = vadd.f32 %v1981, %v2023
        %v2056 = vadd.f32 %v1982, %v2024
        %v2057 = vadd.f32 %v1983, %v2025
        %v2058 = vadd.f32 %v1984, %v2026
        %v2059 = vadd.f32 %v1985, %v2027
        %v2060 = vadd.f32 %v1986, %v2028
        %2061 = vset.pattern.permute.xlu0 22
        %2062 = vperm.xlu0 %2061, %v224
        %v2063 = vpop.permute.xlu0 %2062
        %2065 = vset.pattern.permute.xlu0 22
        %2066 = vperm.xlu0 %2065, %v225
        %v2067 = vpop.permute.xlu0 %2066
        %v2069 = vmul.f32 %v2063, %v1913
        %v2070 = vmul.f32 %v2063, %v1914
        %v2071 = vmul.f32 %v2063, %v1915
        %v2072 = vmul.f32 %v2063, %v1916
        %v2073 = vmul.f32 %v2063, %v1917
        %v2074 = vmul.f32 %v2063, %v1918
        %v2075 = vmul.f32 %v2063, %v1919
        %v2076 = vmul.f32 %v2063, %v1920
        %v2077 = vmul.f32 %v2063, %v1921
        %v2078 = vmul.f32 %v2063, %v1922
        %v2079 = vmul.f32 %v2063, %v1923
        %v2080 = vmul.f32 %v2063, %v1924
        %v2081 = vmul.f32 %v2063, %v1995
        %v2082 = vmul.f32 %v2063, %v1996
        %v2083 = vmul.f32 %v2063, %v1910
        %v2084 = vmul.f32 %v2067, %v1913
        %v2085 = vmul.f32 %v2067, %v1914
        %v2086 = vmul.f32 %v2067, %v1915
        %v2087 = vmul.f32 %v2067, %v1916
        %v2088 = vmul.f32 %v2067, %v1917
        %v2089 = vmul.f32 %v2067, %v1918
        %v2090 = vmul.f32 %v2067, %v1919
        %v2091 = vmul.f32 %v2067, %v1920
        %v2092 = vmul.f32 %v2067, %v1921
        %v2093 = vmul.f32 %v2067, %v1922
        %v2094 = vmul.f32 %v2067, %v1923
        %v2095 = vmul.f32 %v2067, %v1924
        %v2096 = vmul.f32 %v2067, %v1995
        %v2097 = vmul.f32 %v2067, %v1996
        %v2098 = vmul.f32 %v2067, %v1910
        %v2099 = vadd.f32 %v2029, %v2069
        %v2100 = vadd.f32 %v2030, %v2070
        %v2101 = vadd.f32 %v2031, %v2071
        %v2102 = vadd.f32 %v2032, %v2072
        %v2103 = vadd.f32 %v2033, %v2073
        %v2104 = vadd.f32 %v2034, %v2074
        %v2105 = vadd.f32 %v2035, %v2075
        %v2106 = vadd.f32 %v2036, %v2076
        %v2107 = vadd.f32 %v2037, %v2077
        %v2108 = vadd.f32 %v2038, %v2078
        %v2109 = vadd.f32 %v2039, %v2079
        %v2110 = vadd.f32 %v2040, %v2080
        %v2111 = vadd.f32 %v2041, %v2081
        %v2112 = vadd.f32 %v2042, %v2082
        %v2113 = vadd.f32 %v2043, %v2083
        %v2114 = vadd.f32 %v2044, %v2083
        %v2115 = vadd.f32 %v2045, %v2084
        %v2116 = vadd.f32 %v2046, %v2085
        %v2117 = vadd.f32 %v2047, %v2086
        %v2118 = vadd.f32 %v2048, %v2087
        %v2119 = vadd.f32 %v2049, %v2088
        %v2120 = vadd.f32 %v2050, %v2089
        %v2121 = vadd.f32 %v2051, %v2090
        %v2122 = vadd.f32 %v2052, %v2091
        %v2123 = vadd.f32 %v2053, %v2092
        %v2124 = vadd.f32 %v2054, %v2093
        %v2125 = vadd.f32 %v2055, %v2094
        %v2126 = vadd.f32 %v2056, %v2095
        %v2127 = vadd.f32 %v2057, %v2096
        %v2128 = vadd.f32 %v2058, %v2097
        %v2129 = vadd.f32 %v2059, %v2098
        %v2130 = vadd.f32 %v2060, %v2098
        %2131 = vrot.lane.b32.xlu0 0.0, 127
        %v2132 = vpop.permute.xlu0 %2131
        %2133 = vrot.lane.b32.xlu0 %v192, 127
        %v2134 = vpop.permute.xlu0 %2133
        %2135 = vrot.lane.b32.xlu0 %v193, 127
        %v2136 = vpop.permute.xlu0 %2135
        %2137 = vrot.lane.b32.xlu0 %v194, 127
        %v2138 = vpop.permute.xlu0 %2137
        %2139 = vrot.lane.b32.xlu0 %v195, 127
        %v2140 = vpop.permute.xlu0 %2139
        %2141 = vrot.lane.b32.xlu0 %v196, 127
        %v2142 = vpop.permute.xlu0 %2141
        %2143 = vrot.lane.b32.xlu0 %v197, 127
        %v2144 = vpop.permute.xlu0 %2143
        %2145 = vrot.lane.b32.xlu0 %v198, 127
        %v2146 = vpop.permute.xlu0 %2145
        %2147 = vrot.lane.b32.xlu0 %v199, 127
        %v2148 = vpop.permute.xlu0 %2147
        %2149 = vrot.lane.b32.xlu0 %v200, 127
        %v2150 = vpop.permute.xlu0 %2149
        %2151 = vrot.lane.b32.xlu0 %v201, 127
        %v2152 = vpop.permute.xlu0 %2151
        %2153 = vrot.lane.b32.xlu0 %v202, 127
        %v2154 = vpop.permute.xlu0 %2153
        %2155 = vrot.lane.b32.xlu0 %v203, 127
        %v2156 = vpop.permute.xlu0 %2155
        %2157 = vrot.lane.b32.xlu0 %v204, 127
        %v2158 = vpop.permute.xlu0 %2157
        %2159 = vrot.lane.b32.xlu0 %v205, 127
        %v2160 = vpop.permute.xlu0 %2159
        %2161 = vrot.lane.b32.xlu0 %v206, 127
        %v2162 = vpop.permute.xlu0 %2161
        %vm2163 = vcmask 1039360
        %v2164 = vsel %vm2163, %v2132, %v2134
        %v2165 = vsel %vm2163, %v2134, %v2136
        %v2166 = vsel %vm2163, %v2136, %v2138
        %v2167 = vsel %vm2163, %v2138, %v2140
        %v2168 = vsel %vm2163, %v2140, %v2142
        %v2169 = vsel %vm2163, %v2142, %v2144
        %v2170 = vsel %vm2163, %v2144, %v2146
        %v2171 = vsel %vm2163, %v2146, %v2148
        %v2172 = vsel %vm2163, %v2148, %v2150
        %v2173 = vsel %vm2163, %v2150, %v2152
        %v2174 = vsel %vm2163, %v2152, %v2154
        %v2175 = vsel %vm2163, %v2154, %v2156
        %v2176 = vsel %vm2163, %v2156, %v2158
        %v2177 = vsel %vm2163, %v2158, %v2160
        %v2178 = vsel %vm2163, %v2160, %v2162
        %v2195 = vsel %vm1106, %v2132, 0.0
        %v2196 = vsel %vm1107, %v2164, 0.0
        %v2197 = vsel %vm1108, %v2165, 0.0
        %v2198 = vsel %vm1109, %v2166, 0.0
        %v2199 = vsel %vm1110, %v2167, 0.0
        %v2200 = vsel %vm1111, %v2168, 0.0
        %v2201 = vsel %vm1112, %v2169, 0.0
        %v2202 = vsel %vm1113, %v2170, 0.0
        %v2203 = vsel %vm1114, %v2171, 0.0
        %v2204 = vsel %vm1115, %v2172, 0.0
        %v2205 = vsel %vm1116, %v2173, 0.0
        %v2206 = vsel %vm1117, %v2174, 0.0
        %v2207 = vsel %vm1118, %v2175, 0.0
        %v2208 = vsel %vm1119, %v2176, 0.0
        %v2209 = vsel %vm1120, %v2177, 0.0
        %v2210 = vsel %vm1121, %v2178, 0.0
        %2211 = vset.pattern.permute.xlu0 5
        %2212 = vperm.xlu0 %2211, %v224
        %v2213 = vpop.permute.xlu0 %2212
        %2215 = vset.pattern.permute.xlu0 5
        %2216 = vperm.xlu0 %2215, %v225
        %v2217 = vpop.permute.xlu0 %2216
        %v2219 = vperm.slane %v2195, 0
        %v2220 = vperm.slane %v2196, 0
        %v2221 = vperm.slane %v2197, 0
        %v2222 = vperm.slane %v2198, 0
        %v2223 = vperm.slane %v2199, 0
        %v2224 = vperm.slane %v2200, 0
        %v2225 = vperm.slane %v2201, 0
        %v2226 = vperm.slane %v2202, 0
        %v2227 = vperm.slane %v2203, 0
        %v2228 = vperm.slane %v2204, 0
        %v2229 = vperm.slane %v2205, 0
        %v2230 = vperm.slane %v2206, 0
        %v2231 = vperm.slane %v2207, 0
        %v2232 = vperm.slane %v2208, 0
        %v2233 = vperm.slane %v2209, 0
        %v2234 = vperm.slane %v2210, 0
        %v2235 = vmul.f32 %v2213, %v2219
        %v2236 = vmul.f32 %v2213, %v2220
        %v2237 = vmul.f32 %v2213, %v2221
        %v2238 = vmul.f32 %v2213, %v2222
        %v2239 = vmul.f32 %v2213, %v2223
        %v2240 = vmul.f32 %v2213, %v2224
        %v2241 = vmul.f32 %v2213, %v2225
        %v2242 = vmul.f32 %v2213, %v2226
        %v2243 = vmul.f32 %v2213, %v2227
        %v2244 = vmul.f32 %v2213, %v2228
        %v2245 = vmul.f32 %v2213, %v2229
        %v2246 = vmul.f32 %v2213, %v2230
        %v2247 = vmul.f32 %v2213, %v2231
        %v2248 = vmul.f32 %v2213, %v2232
        %v2249 = vmul.f32 %v2213, %v2233
        %v2250 = vmul.f32 %v2213, %v2234
        %v2251 = vmul.f32 %v2217, %v2219
        %v2252 = vmul.f32 %v2217, %v2220
        %v2253 = vmul.f32 %v2217, %v2221
        %v2254 = vmul.f32 %v2217, %v2222
        %v2255 = vmul.f32 %v2217, %v2223
        %v2256 = vmul.f32 %v2217, %v2224
        %v2257 = vmul.f32 %v2217, %v2225
        %v2258 = vmul.f32 %v2217, %v2226
        %v2259 = vmul.f32 %v2217, %v2227
        %v2260 = vmul.f32 %v2217, %v2228
        %v2261 = vmul.f32 %v2217, %v2229
        %v2262 = vmul.f32 %v2217, %v2230
        %v2263 = vmul.f32 %v2217, %v2231
        %v2264 = vmul.f32 %v2217, %v2232
        %v2265 = vmul.f32 %v2217, %v2233
        %v2266 = vmul.f32 %v2217, %v2234
        %v2267 = vadd.f32 %v2099, %v2235
        %v2268 = vadd.f32 %v2100, %v2236
        %v2269 = vadd.f32 %v2101, %v2237
        %v2270 = vadd.f32 %v2102, %v2238
        %v2271 = vadd.f32 %v2103, %v2239
        %v2272 = vadd.f32 %v2104, %v2240
        %v2273 = vadd.f32 %v2105, %v2241
        %v2274 = vadd.f32 %v2106, %v2242
        %v2275 = vadd.f32 %v2107, %v2243
        %v2276 = vadd.f32 %v2108, %v2244
        %v2277 = vadd.f32 %v2109, %v2245
        %v2278 = vadd.f32 %v2110, %v2246
        %v2279 = vadd.f32 %v2111, %v2247
        %v2280 = vadd.f32 %v2112, %v2248
        %v2281 = vadd.f32 %v2113, %v2249
        %v2282 = vadd.f32 %v2114, %v2250
        %v2283 = vadd.f32 %v2115, %v2251
        %v2284 = vadd.f32 %v2116, %v2252
        %v2285 = vadd.f32 %v2117, %v2253
        %v2286 = vadd.f32 %v2118, %v2254
        %v2287 = vadd.f32 %v2119, %v2255
        %v2288 = vadd.f32 %v2120, %v2256
        %v2289 = vadd.f32 %v2121, %v2257
        %v2290 = vadd.f32 %v2122, %v2258
        %v2291 = vadd.f32 %v2123, %v2259
        %v2292 = vadd.f32 %v2124, %v2260
        %v2293 = vadd.f32 %v2125, %v2261
        %v2294 = vadd.f32 %v2126, %v2262
        %v2295 = vadd.f32 %v2127, %v2263
        %v2296 = vadd.f32 %v2128, %v2264
        %v2297 = vadd.f32 %v2129, %v2265
        %v2298 = vadd.f32 %v2130, %v2266
        %2299 = vrot.lane.b32.xlu0 %v207, 127
        %v2300 = vpop.permute.xlu0 %2299
        %v2301 = vsel %vm2163, %v2162, %v2300
        %v2302 = vsel %vm2163, %v2300, %v2132
        %v2305 = vsel %vm1106, %v2165, 0.0
        %v2306 = vsel %vm1107, %v2166, 0.0
        %v2307 = vsel %vm1108, %v2167, 0.0
        %v2308 = vsel %vm1109, %v2168, 0.0
        %v2309 = vsel %vm1110, %v2169, 0.0
        %v2310 = vsel %vm1111, %v2170, 0.0
        %v2311 = vsel %vm1112, %v2171, 0.0
        %v2312 = vsel %vm1113, %v2172, 0.0
        %v2313 = vsel %vm1114, %v2173, 0.0
        %v2314 = vsel %vm1115, %v2174, 0.0
        %v2315 = vsel %vm1116, %v2175, 0.0
        %v2316 = vsel %vm1117, %v2176, 0.0
        %v2317 = vsel %vm1118, %v2177, 0.0
        %v2318 = vsel %vm1119, %v2178, 0.0
        %v2319 = vsel %vm1120, %v2301, 0.0
        %v2320 = vsel %vm1121, %v2302, 0.0
        %2321 = vset.pattern.permute.xlu0 14
        %2322 = vperm.xlu0 %2321, %v224
        %v2323 = vpop.permute.xlu0 %2322
        %2325 = vset.pattern.permute.xlu0 14
        %2326 = vperm.xlu0 %2325, %v225
        %v2327 = vpop.permute.xlu0 %2326
        %v2329 = vperm.slane %v2305, 0
        %v2330 = vperm.slane %v2306, 0
        %v2331 = vperm.slane %v2307, 0
        %v2332 = vperm.slane %v2308, 0
        %v2333 = vperm.slane %v2309, 0
        %v2334 = vperm.slane %v2310, 0
        %v2335 = vperm.slane %v2311, 0
        %v2336 = vperm.slane %v2312, 0
        %v2337 = vperm.slane %v2313, 0
        %v2338 = vperm.slane %v2314, 0
        %v2339 = vperm.slane %v2315, 0
        %v2340 = vperm.slane %v2316, 0
        %v2341 = vperm.slane %v2317, 0
        %v2342 = vperm.slane %v2318, 0
        %v2343 = vperm.slane %v2319, 0
        %v2344 = vperm.slane %v2320, 0
        %v2345 = vmul.f32 %v2323, %v2329
        %v2346 = vmul.f32 %v2323, %v2330
        %v2347 = vmul.f32 %v2323, %v2331
        %v2348 = vmul.f32 %v2323, %v2332
        %v2349 = vmul.f32 %v2323, %v2333
        %v2350 = vmul.f32 %v2323, %v2334
        %v2351 = vmul.f32 %v2323, %v2335
        %v2352 = vmul.f32 %v2323, %v2336
        %v2353 = vmul.f32 %v2323, %v2337
        %v2354 = vmul.f32 %v2323, %v2338
        %v2355 = vmul.f32 %v2323, %v2339
        %v2356 = vmul.f32 %v2323, %v2340
        %v2357 = vmul.f32 %v2323, %v2341
        %v2358 = vmul.f32 %v2323, %v2342
        %v2359 = vmul.f32 %v2323, %v2343
        %v2360 = vmul.f32 %v2323, %v2344
        %v2361 = vmul.f32 %v2327, %v2329
        %v2362 = vmul.f32 %v2327, %v2330
        %v2363 = vmul.f32 %v2327, %v2331
        %v2364 = vmul.f32 %v2327, %v2332
        %v2365 = vmul.f32 %v2327, %v2333
        %v2366 = vmul.f32 %v2327, %v2334
        %v2367 = vmul.f32 %v2327, %v2335
        %v2368 = vmul.f32 %v2327, %v2336
        %v2369 = vmul.f32 %v2327, %v2337
        %v2370 = vmul.f32 %v2327, %v2338
        %v2371 = vmul.f32 %v2327, %v2339
        %v2372 = vmul.f32 %v2327, %v2340
        %v2373 = vmul.f32 %v2327, %v2341
        %v2374 = vmul.f32 %v2327, %v2342
        %v2375 = vmul.f32 %v2327, %v2343
        %v2376 = vmul.f32 %v2327, %v2344
        %v2377 = vadd.f32 %v2267, %v2345
        %v2378 = vadd.f32 %v2268, %v2346
        %v2379 = vadd.f32 %v2269, %v2347
        %v2380 = vadd.f32 %v2270, %v2348
        %v2381 = vadd.f32 %v2271, %v2349
        %v2382 = vadd.f32 %v2272, %v2350
        %v2383 = vadd.f32 %v2273, %v2351
        %v2384 = vadd.f32 %v2274, %v2352
        %v2385 = vadd.f32 %v2275, %v2353
        %v2386 = vadd.f32 %v2276, %v2354
        %v2387 = vadd.f32 %v2277, %v2355
        %v2388 = vadd.f32 %v2278, %v2356
        %v2389 = vadd.f32 %v2279, %v2357
        %v2390 = vadd.f32 %v2280, %v2358
        %v2391 = vadd.f32 %v2281, %v2359
        %v2392 = vadd.f32 %v2282, %v2360
        %v2393 = vadd.f32 %v2283, %v2361
        %v2394 = vadd.f32 %v2284, %v2362
        %v2395 = vadd.f32 %v2285, %v2363
        %v2396 = vadd.f32 %v2286, %v2364
        %v2397 = vadd.f32 %v2287, %v2365
        %v2398 = vadd.f32 %v2288, %v2366
        %v2399 = vadd.f32 %v2289, %v2367
        %v2400 = vadd.f32 %v2290, %v2368
        %v2401 = vadd.f32 %v2291, %v2369
        %v2402 = vadd.f32 %v2292, %v2370
        %v2403 = vadd.f32 %v2293, %v2371
        %v2404 = vadd.f32 %v2294, %v2372
        %v2405 = vadd.f32 %v2295, %v2373
        %v2406 = vadd.f32 %v2296, %v2374
        %v2407 = vadd.f32 %v2297, %v2375
        %v2408 = vadd.f32 %v2298, %v2376
        %v2409 = vsel %vm1106, %v2167, 0.0
        %v2410 = vsel %vm1107, %v2168, 0.0
        %v2411 = vsel %vm1108, %v2169, 0.0
        %v2412 = vsel %vm1109, %v2170, 0.0
        %v2413 = vsel %vm1110, %v2171, 0.0
        %v2414 = vsel %vm1111, %v2172, 0.0
        %v2415 = vsel %vm1112, %v2173, 0.0
        %v2416 = vsel %vm1113, %v2174, 0.0
        %v2417 = vsel %vm1114, %v2175, 0.0
        %v2418 = vsel %vm1115, %v2176, 0.0
        %v2419 = vsel %vm1116, %v2177, 0.0
        %v2420 = vsel %vm1117, %v2178, 0.0
        %v2421 = vsel %vm1118, %v2301, 0.0
        %v2422 = vsel %vm1119, %v2302, 0.0
        %v2423 = vsel %vm1120, %v2132, 0.0
        %v2424 = vsel %vm1121, %v2132, 0.0
        %2425 = vset.pattern.permute.xlu0 23
        %2426 = vperm.xlu0 %2425, %v224
        %v2427 = vpop.permute.xlu0 %2426
        %2429 = vset.pattern.permute.xlu0 23
        %2430 = vperm.xlu0 %2429, %v225
        %v2431 = vpop.permute.xlu0 %2430
        %v2433 = vperm.slane %v2409, 0
        %v2434 = vperm.slane %v2410, 0
        %v2435 = vperm.slane %v2411, 0
        %v2436 = vperm.slane %v2412, 0
        %v2437 = vperm.slane %v2413, 0
        %v2438 = vperm.slane %v2414, 0
        %v2439 = vperm.slane %v2415, 0
        %v2440 = vperm.slane %v2416, 0
        %v2441 = vperm.slane %v2417, 0
        %v2442 = vperm.slane %v2418, 0
        %v2443 = vperm.slane %v2419, 0
        %v2444 = vperm.slane %v2420, 0
        %v2445 = vperm.slane %v2421, 0
        %v2446 = vperm.slane %v2422, 0
        %v2447 = vperm.slane %v2423, 0
        %v2448 = vperm.slane %v2424, 0
        %v2449 = vmul.f32 %v2427, %v2433
        %v2450 = vmul.f32 %v2427, %v2434
        %v2451 = vmul.f32 %v2427, %v2435
        %v2452 = vmul.f32 %v2427, %v2436
        %v2453 = vmul.f32 %v2427, %v2437
        %v2454 = vmul.f32 %v2427, %v2438
        %v2455 = vmul.f32 %v2427, %v2439
        %v2456 = vmul.f32 %v2427, %v2440
        %v2457 = vmul.f32 %v2427, %v2441
        %v2458 = vmul.f32 %v2427, %v2442
        %v2459 = vmul.f32 %v2427, %v2443
        %v2460 = vmul.f32 %v2427, %v2444
        %v2461 = vmul.f32 %v2427, %v2445
        %v2462 = vmul.f32 %v2427, %v2446
        %v2463 = vmul.f32 %v2427, %v2447
        %v2464 = vmul.f32 %v2427, %v2448
        %v2465 = vmul.f32 %v2431, %v2433
        %v2466 = vmul.f32 %v2431, %v2434
        %v2467 = vmul.f32 %v2431, %v2435
        %v2468 = vmul.f32 %v2431, %v2436
        %v2469 = vmul.f32 %v2431, %v2437
        %v2470 = vmul.f32 %v2431, %v2438
        %v2471 = vmul.f32 %v2431, %v2439
        %v2472 = vmul.f32 %v2431, %v2440
        %v2473 = vmul.f32 %v2431, %v2441
        %v2474 = vmul.f32 %v2431, %v2442
        %v2475 = vmul.f32 %v2431, %v2443
        %v2476 = vmul.f32 %v2431, %v2444
        %v2477 = vmul.f32 %v2431, %v2445
        %v2478 = vmul.f32 %v2431, %v2446
        %v2479 = vmul.f32 %v2431, %v2447
        %v2480 = vmul.f32 %v2431, %v2448
        %v2481 = vadd.f32 %v2377, %v2449
        %v2482 = vadd.f32 %v2378, %v2450
        %v2483 = vadd.f32 %v2379, %v2451
        %v2484 = vadd.f32 %v2380, %v2452
        %v2485 = vadd.f32 %v2381, %v2453
        %v2486 = vadd.f32 %v2382, %v2454
        %v2487 = vadd.f32 %v2383, %v2455
        %v2488 = vadd.f32 %v2384, %v2456
        %v2489 = vadd.f32 %v2385, %v2457
        %v2490 = vadd.f32 %v2386, %v2458
        %v2491 = vadd.f32 %v2387, %v2459
        %v2492 = vadd.f32 %v2388, %v2460
        %v2493 = vadd.f32 %v2389, %v2461
        %v2494 = vadd.f32 %v2390, %v2462
        %v2495 = vadd.f32 %v2391, %v2463
        %v2496 = vadd.f32 %v2392, %v2464
        %v2497 = vadd.f32 %v2393, %v2465
        %v2498 = vadd.f32 %v2394, %v2466
        %v2499 = vadd.f32 %v2395, %v2467
        %v2500 = vadd.f32 %v2396, %v2468
        %v2501 = vadd.f32 %v2397, %v2469
        %v2502 = vadd.f32 %v2398, %v2470
        %v2503 = vadd.f32 %v2399, %v2471
        %v2504 = vadd.f32 %v2400, %v2472
        %v2505 = vadd.f32 %v2401, %v2473
        %v2506 = vadd.f32 %v2402, %v2474
        %v2507 = vadd.f32 %v2403, %v2475
        %v2508 = vadd.f32 %v2404, %v2476
        %v2509 = vadd.f32 %v2405, %v2477
        %v2510 = vadd.f32 %v2406, %v2478
        %v2511 = vadd.f32 %v2407, %v2479
        %v2512 = vadd.f32 %v2408, %v2480
        %vm2513 = vcmp.lt.s32.totalorder %v275, 15
        %vm2514 = vcmp.lt.s32.totalorder %v276, 15
        %vm2515 = vcmp.lt.s32.totalorder %v277, 15
        %vm2516 = vcmp.lt.s32.totalorder %v278, 15
        %vm2517 = vcmp.lt.s32.totalorder %v279, 15
        %vm2518 = vcmp.lt.s32.totalorder %v280, 15
        %vm2519 = vcmp.lt.s32.totalorder %v281, 15
        %vm2520 = vcmp.lt.s32.totalorder %v282, 15
        %vm2521 = vcmp.lt.s32.totalorder %v283, 15
        %vm2522 = vcmp.lt.s32.totalorder %v284, 15
        %vm2523 = vcmp.lt.s32.totalorder %v285, 15
        %vm2524 = vcmp.lt.s32.totalorder %v286, 15
        %vm2525 = vcmp.lt.s32.totalorder %v287, 15
        %vm2526 = vcmp.lt.s32.totalorder %v288, 15
        %vm2527 = vcmp.lt.s32.totalorder %v289, 15
        %vm2528 = vcmp.lt.s32.totalorder %v290, 15
        %vm2529 = vmand %vm2513, %vm307
        %vm2530 = vmand %vm2514, %vm308
        %vm2531 = vmand %vm2515, %vm309
        %vm2532 = vmand %vm2516, %vm310
        %vm2533 = vmand %vm2517, %vm311
        %vm2534 = vmand %vm2518, %vm312
        %vm2535 = vmand %vm2519, %vm313
        %vm2536 = vmand %vm2520, %vm314
        %vm2537 = vmand %vm2521, %vm315
        %vm2538 = vmand %vm2522, %vm316
        %vm2539 = vmand %vm2523, %vm317
        %vm2540 = vmand %vm2524, %vm318
        %vm2541 = vmand %vm2525, %vm319
        %vm2542 = vmand %vm2526, %vm320
        %vm2543 = vmand %vm2527, %vm321
        %vm2544 = vmand %vm2528, %vm322
        %2545 = vrot.lane.b32.xlu0 0.0, 113
        %v2546 = vpop.permute.xlu0 %2545
        %2547 = vrot.lane.b32.xlu0 %v192, 113
        %v2548 = vpop.permute.xlu0 %2547
        %2549 = vrot.lane.b32.xlu0 %v193, 113
        %v2550 = vpop.permute.xlu0 %2549
        %2551 = vrot.lane.b32.xlu0 %v194, 113
        %v2552 = vpop.permute.xlu0 %2551
        %2553 = vrot.lane.b32.xlu0 %v195, 113
        %v2554 = vpop.permute.xlu0 %2553
        %2555 = vrot.lane.b32.xlu0 %v196, 113
        %v2556 = vpop.permute.xlu0 %2555
        %2557 = vrot.lane.b32.xlu0 %v197, 113
        %v2558 = vpop.permute.xlu0 %2557
        %2559 = vrot.lane.b32.xlu0 %v198, 113
        %v2560 = vpop.permute.xlu0 %2559
        %2561 = vrot.lane.b32.xlu0 %v199, 113
        %v2562 = vpop.permute.xlu0 %2561
        %2563 = vrot.lane.b32.xlu0 %v200, 113
        %v2564 = vpop.permute.xlu0 %2563
        %2565 = vrot.lane.b32.xlu0 %v201, 113
        %v2566 = vpop.permute.xlu0 %2565
        %2567 = vrot.lane.b32.xlu0 %v202, 113
        %v2568 = vpop.permute.xlu0 %2567
        %2569 = vrot.lane.b32.xlu0 %v203, 113
        %v2570 = vpop.permute.xlu0 %2569
        %2571 = vrot.lane.b32.xlu0 %v204, 113
        %v2572 = vpop.permute.xlu0 %2571
        %2573 = vrot.lane.b32.xlu0 %v205, 113
        %v2574 = vpop.permute.xlu0 %2573
        %2575 = vrot.lane.b32.xlu0 %v206, 113
        %v2576 = vpop.permute.xlu0 %2575
        %vm2577 = vcmask 924672
        %v2578 = vsel %vm2577, %v2546, %v2548
        %v2579 = vsel %vm2577, %v2548, %v2550
        %v2580 = vsel %vm2577, %v2550, %v2552
        %v2581 = vsel %vm2577, %v2552, %v2554
        %v2582 = vsel %vm2577, %v2554, %v2556
        %v2583 = vsel %vm2577, %v2556, %v2558
        %v2584 = vsel %vm2577, %v2558, %v2560
        %v2585 = vsel %vm2577, %v2560, %v2562
        %v2586 = vsel %vm2577, %v2562, %v2564
        %v2587 = vsel %vm2577, %v2564, %v2566
        %v2588 = vsel %vm2577, %v2566, %v2568
        %v2589 = vsel %vm2577, %v2568, %v2570
        %v2590 = vsel %vm2577, %v2570, %v2572
        %v2591 = vsel %vm2577, %v2572, %v2574
        %v2592 = vsel %vm2577, %v2574, %v2576
        %v2609 = vsel %vm2529, %v2546, 0.0
        %v2610 = vsel %vm2530, %v2578, 0.0
        %v2611 = vsel %vm2531, %v2579, 0.0
        %v2612 = vsel %vm2532, %v2580, 0.0
        %v2613 = vsel %vm2533, %v2581, 0.0
        %v2614 = vsel %vm2534, %v2582, 0.0
        %v2615 = vsel %vm2535, %v2583, 0.0
        %v2616 = vsel %vm2536, %v2584, 0.0
        %v2617 = vsel %vm2537, %v2585, 0.0
        %v2618 = vsel %vm2538, %v2586, 0.0
        %v2619 = vsel %vm2539, %v2587, 0.0
        %v2620 = vsel %vm2540, %v2588, 0.0
        %v2621 = vsel %vm2541, %v2589, 0.0
        %v2622 = vsel %vm2542, %v2590, 0.0
        %v2623 = vsel %vm2543, %v2591, 0.0
        %v2624 = vsel %vm2544, %v2592, 0.0
        %2625 = vset.pattern.permute.xlu0 6
        %2626 = vperm.xlu0 %2625, %v224
        %v2627 = vpop.permute.xlu0 %2626
        %2629 = vset.pattern.permute.xlu0 6
        %2630 = vperm.xlu0 %2629, %v225
        %v2631 = vpop.permute.xlu0 %2630
        %v2633 = vperm.slane %v2609, 0
        %v2634 = vperm.slane %v2610, 0
        %v2635 = vperm.slane %v2611, 0
        %v2636 = vperm.slane %v2612, 0
        %v2637 = vperm.slane %v2613, 0
        %v2638 = vperm.slane %v2614, 0
        %v2639 = vperm.slane %v2615, 0
        %v2640 = vperm.slane %v2616, 0
        %v2641 = vperm.slane %v2617, 0
        %v2642 = vperm.slane %v2618, 0
        %v2643 = vperm.slane %v2619, 0
        %v2644 = vperm.slane %v2620, 0
        %v2645 = vperm.slane %v2621, 0
        %v2646 = vperm.slane %v2622, 0
        %v2647 = vperm.slane %v2623, 0
        %v2648 = vperm.slane %v2624, 0
        %v2649 = vmul.f32 %v2627, %v2633
        %v2650 = vmul.f32 %v2627, %v2634
        %v2651 = vmul.f32 %v2627, %v2635
        %v2652 = vmul.f32 %v2627, %v2636
        %v2653 = vmul.f32 %v2627, %v2637
        %v2654 = vmul.f32 %v2627, %v2638
        %v2655 = vmul.f32 %v2627, %v2639
        %v2656 = vmul.f32 %v2627, %v2640
        %v2657 = vmul.f32 %v2627, %v2641
        %v2658 = vmul.f32 %v2627, %v2642
        %v2659 = vmul.f32 %v2627, %v2643
        %v2660 = vmul.f32 %v2627, %v2644
        %v2661 = vmul.f32 %v2627, %v2645
        %v2662 = vmul.f32 %v2627, %v2646
        %v2663 = vmul.f32 %v2627, %v2647
        %v2664 = vmul.f32 %v2627, %v2648
        %v2665 = vmul.f32 %v2631, %v2633
        %v2666 = vmul.f32 %v2631, %v2634
        %v2667 = vmul.f32 %v2631, %v2635
        %v2668 = vmul.f32 %v2631, %v2636
        %v2669 = vmul.f32 %v2631, %v2637
        %v2670 = vmul.f32 %v2631, %v2638
        %v2671 = vmul.f32 %v2631, %v2639
        %v2672 = vmul.f32 %v2631, %v2640
        %v2673 = vmul.f32 %v2631, %v2641
        %v2674 = vmul.f32 %v2631, %v2642
        %v2675 = vmul.f32 %v2631, %v2643
        %v2676 = vmul.f32 %v2631, %v2644
        %v2677 = vmul.f32 %v2631, %v2645
        %v2678 = vmul.f32 %v2631, %v2646
        %v2679 = vmul.f32 %v2631, %v2647
        %v2680 = vmul.f32 %v2631, %v2648
        %v2681 = vadd.f32 %v2481, %v2649
        %v2682 = vadd.f32 %v2482, %v2650
        %v2683 = vadd.f32 %v2483, %v2651
        %v2684 = vadd.f32 %v2484, %v2652
        %v2685 = vadd.f32 %v2485, %v2653
        %v2686 = vadd.f32 %v2486, %v2654
        %v2687 = vadd.f32 %v2487, %v2655
        %v2688 = vadd.f32 %v2488, %v2656
        %v2689 = vadd.f32 %v2489, %v2657
        %v2690 = vadd.f32 %v2490, %v2658
        %v2691 = vadd.f32 %v2491, %v2659
        %v2692 = vadd.f32 %v2492, %v2660
        %v2693 = vadd.f32 %v2493, %v2661
        %v2694 = vadd.f32 %v2494, %v2662
        %v2695 = vadd.f32 %v2495, %v2663
        %v2696 = vadd.f32 %v2496, %v2664
        %v2697 = vadd.f32 %v2497, %v2665
        %v2698 = vadd.f32 %v2498, %v2666
        %v2699 = vadd.f32 %v2499, %v2667
        %v2700 = vadd.f32 %v2500, %v2668
        %v2701 = vadd.f32 %v2501, %v2669
        %v2702 = vadd.f32 %v2502, %v2670
        %v2703 = vadd.f32 %v2503, %v2671
        %v2704 = vadd.f32 %v2504, %v2672
        %v2705 = vadd.f32 %v2505, %v2673
        %v2706 = vadd.f32 %v2506, %v2674
        %v2707 = vadd.f32 %v2507, %v2675
        %v2708 = vadd.f32 %v2508, %v2676
        %v2709 = vadd.f32 %v2509, %v2677
        %v2710 = vadd.f32 %v2510, %v2678
        %v2711 = vadd.f32 %v2511, %v2679
        %v2712 = vadd.f32 %v2512, %v2680
        %2713 = vrot.lane.b32.xlu0 %v207, 113
        %v2714 = vpop.permute.xlu0 %2713
        %v2715 = vsel %vm2577, %v2576, %v2714
        %v2716 = vsel %vm2577, %v2714, %v2546
        %v2719 = vsel %vm2529, %v2579, 0.0
        %v2720 = vsel %vm2530, %v2580, 0.0
        %v2721 = vsel %vm2531, %v2581, 0.0
        %v2722 = vsel %vm2532, %v2582, 0.0
        %v2723 = vsel %vm2533, %v2583, 0.0
        %v2724 = vsel %vm2534, %v2584, 0.0
        %v2725 = vsel %vm2535, %v2585, 0.0
        %v2726 = vsel %vm2536, %v2586, 0.0
        %v2727 = vsel %vm2537, %v2587, 0.0
        %v2728 = vsel %vm2538, %v2588, 0.0
        %v2729 = vsel %vm2539, %v2589, 0.0
        %v2730 = vsel %vm2540, %v2590, 0.0
        %v2731 = vsel %vm2541, %v2591, 0.0
        %v2732 = vsel %vm2542, %v2592, 0.0
        %v2733 = vsel %vm2543, %v2715, 0.0
        %v2734 = vsel %vm2544, %v2716, 0.0
        %2735 = vset.pattern.permute.xlu0 15
        %2736 = vperm.xlu0 %2735, %v224
        %v2737 = vpop.permute.xlu0 %2736
        %2739 = vset.pattern.permute.xlu0 15
        %2740 = vperm.xlu0 %2739, %v225
        %v2741 = vpop.permute.xlu0 %2740
        %v2743 = vperm.slane %v2719, 0
        %v2744 = vperm.slane %v2720, 0
        %v2745 = vperm.slane %v2721, 0
        %v2746 = vperm.slane %v2722, 0
        %v2747 = vperm.slane %v2723, 0
        %v2748 = vperm.slane %v2724, 0
        %v2749 = vperm.slane %v2725, 0
        %v2750 = vperm.slane %v2726, 0
        %v2751 = vperm.slane %v2727, 0
        %v2752 = vperm.slane %v2728, 0
        %v2753 = vperm.slane %v2729, 0
        %v2754 = vperm.slane %v2730, 0
        %v2755 = vperm.slane %v2731, 0
        %v2756 = vperm.slane %v2732, 0
        %v2757 = vperm.slane %v2733, 0
        %v2758 = vperm.slane %v2734, 0
        %v2759 = vmul.f32 %v2737, %v2743
        %v2760 = vmul.f32 %v2737, %v2744
        %v2761 = vmul.f32 %v2737, %v2745
        %v2762 = vmul.f32 %v2737, %v2746
        %v2763 = vmul.f32 %v2737, %v2747
        %v2764 = vmul.f32 %v2737, %v2748
        %v2765 = vmul.f32 %v2737, %v2749
        %v2766 = vmul.f32 %v2737, %v2750
        %v2767 = vmul.f32 %v2737, %v2751
        %v2768 = vmul.f32 %v2737, %v2752
        %v2769 = vmul.f32 %v2737, %v2753
        %v2770 = vmul.f32 %v2737, %v2754
        %v2771 = vmul.f32 %v2737, %v2755
        %v2772 = vmul.f32 %v2737, %v2756
        %v2773 = vmul.f32 %v2737, %v2757
        %v2774 = vmul.f32 %v2737, %v2758
        %v2775 = vmul.f32 %v2741, %v2743
        %v2776 = vmul.f32 %v2741, %v2744
        %v2777 = vmul.f32 %v2741, %v2745
        %v2778 = vmul.f32 %v2741, %v2746
        %v2779 = vmul.f32 %v2741, %v2747
        %v2780 = vmul.f32 %v2741, %v2748
        %v2781 = vmul.f32 %v2741, %v2749
        %v2782 = vmul.f32 %v2741, %v2750
        %v2783 = vmul.f32 %v2741, %v2751
        %v2784 = vmul.f32 %v2741, %v2752
        %v2785 = vmul.f32 %v2741, %v2753
        %v2786 = vmul.f32 %v2741, %v2754
        %v2787 = vmul.f32 %v2741, %v2755
        %v2788 = vmul.f32 %v2741, %v2756
        %v2789 = vmul.f32 %v2741, %v2757
        %v2790 = vmul.f32 %v2741, %v2758
        %v2791 = vadd.f32 %v2681, %v2759
        %v2792 = vadd.f32 %v2682, %v2760
        %v2793 = vadd.f32 %v2683, %v2761
        %v2794 = vadd.f32 %v2684, %v2762
        %v2795 = vadd.f32 %v2685, %v2763
        %v2796 = vadd.f32 %v2686, %v2764
        %v2797 = vadd.f32 %v2687, %v2765
        %v2798 = vadd.f32 %v2688, %v2766
        %v2799 = vadd.f32 %v2689, %v2767
        %v2800 = vadd.f32 %v2690, %v2768
        %v2801 = vadd.f32 %v2691, %v2769
        %v2802 = vadd.f32 %v2692, %v2770
        %v2803 = vadd.f32 %v2693, %v2771
        %v2804 = vadd.f32 %v2694, %v2772
        %v2805 = vadd.f32 %v2695, %v2773
        %v2806 = vadd.f32 %v2696, %v2774
        %v2807 = vadd.f32 %v2697, %v2775
        %v2808 = vadd.f32 %v2698, %v2776
        %v2809 = vadd.f32 %v2699, %v2777
        %v2810 = vadd.f32 %v2700, %v2778
        %v2811 = vadd.f32 %v2701, %v2779
        %v2812 = vadd.f32 %v2702, %v2780
        %v2813 = vadd.f32 %v2703, %v2781
        %v2814 = vadd.f32 %v2704, %v2782
        %v2815 = vadd.f32 %v2705, %v2783
        %v2816 = vadd.f32 %v2706, %v2784
        %v2817 = vadd.f32 %v2707, %v2785
        %v2818 = vadd.f32 %v2708, %v2786
        %v2819 = vadd.f32 %v2709, %v2787
        %v2820 = vadd.f32 %v2710, %v2788
        %v2821 = vadd.f32 %v2711, %v2789
        %v2822 = vadd.f32 %v2712, %v2790
        %v2823 = vsel %vm2529, %v2581, 0.0
        %v2824 = vsel %vm2530, %v2582, 0.0
        %v2825 = vsel %vm2531, %v2583, 0.0
        %v2826 = vsel %vm2532, %v2584, 0.0
        %v2827 = vsel %vm2533, %v2585, 0.0
        %v2828 = vsel %vm2534, %v2586, 0.0
        %v2829 = vsel %vm2535, %v2587, 0.0
        %v2830 = vsel %vm2536, %v2588, 0.0
        %v2831 = vsel %vm2537, %v2589, 0.0
        %v2832 = vsel %vm2538, %v2590, 0.0
        %v2833 = vsel %vm2539, %v2591, 0.0
        %v2834 = vsel %vm2540, %v2592, 0.0
        %v2835 = vsel %vm2541, %v2715, 0.0
        %v2836 = vsel %vm2542, %v2716, 0.0
        %v2837 = vsel %vm2543, %v2546, 0.0
        %v2838 = vsel %vm2544, %v2546, 0.0
        %2839 = vset.pattern.permute.xlu0 24
        %2840 = vperm.xlu0 %2839, %v224
        %v2841 = vpop.permute.xlu0 %2840
        %2843 = vset.pattern.permute.xlu0 24
        %2844 = vperm.xlu0 %2843, %v225
        %v2845 = vpop.permute.xlu0 %2844
        %v2847 = vperm.slane %v2823, 0
        %v2848 = vperm.slane %v2824, 0
        %v2849 = vperm.slane %v2825, 0
        %v2850 = vperm.slane %v2826, 0
        %v2851 = vperm.slane %v2827, 0
        %v2852 = vperm.slane %v2828, 0
        %v2853 = vperm.slane %v2829, 0
        %v2854 = vperm.slane %v2830, 0
        %v2855 = vperm.slane %v2831, 0
        %v2856 = vperm.slane %v2832, 0
        %v2857 = vperm.slane %v2833, 0
        %v2858 = vperm.slane %v2834, 0
        %v2859 = vperm.slane %v2835, 0
        %v2860 = vperm.slane %v2836, 0
        %v2861 = vperm.slane %v2837, 0
        %v2862 = vperm.slane %v2838, 0
        %v2863 = vmul.f32 %v2841, %v2847
        %v2864 = vmul.f32 %v2841, %v2848
        %v2865 = vmul.f32 %v2841, %v2849
        %v2866 = vmul.f32 %v2841, %v2850
        %v2867 = vmul.f32 %v2841, %v2851
        %v2868 = vmul.f32 %v2841, %v2852
        %v2869 = vmul.f32 %v2841, %v2853
        %v2870 = vmul.f32 %v2841, %v2854
        %v2871 = vmul.f32 %v2841, %v2855
        %v2872 = vmul.f32 %v2841, %v2856
        %v2873 = vmul.f32 %v2841, %v2857
        %v2874 = vmul.f32 %v2841, %v2858
        %v2875 = vmul.f32 %v2841, %v2859
        %v2876 = vmul.f32 %v2841, %v2860
        %v2877 = vmul.f32 %v2841, %v2861
        %v2878 = vmul.f32 %v2841, %v2862
        %v2879 = vmul.f32 %v2845, %v2847
        %v2880 = vmul.f32 %v2845, %v2848
        %v2881 = vmul.f32 %v2845, %v2849
        %v2882 = vmul.f32 %v2845, %v2850
        %v2883 = vmul.f32 %v2845, %v2851
        %v2884 = vmul.f32 %v2845, %v2852
        %v2885 = vmul.f32 %v2845, %v2853
        %v2886 = vmul.f32 %v2845, %v2854
        %v2887 = vmul.f32 %v2845, %v2855
        %v2888 = vmul.f32 %v2845, %v2856
        %v2889 = vmul.f32 %v2845, %v2857
        %v2890 = vmul.f32 %v2845, %v2858
        %v2891 = vmul.f32 %v2845, %v2859
        %v2892 = vmul.f32 %v2845, %v2860
        %v2893 = vmul.f32 %v2845, %v2861
        %v2894 = vmul.f32 %v2845, %v2862
        %v2895 = vadd.f32 %v2791, %v2863
        %v2896 = vadd.f32 %v2792, %v2864
        %v2897 = vadd.f32 %v2793, %v2865
        %v2898 = vadd.f32 %v2794, %v2866
        %v2899 = vadd.f32 %v2795, %v2867
        %v2900 = vadd.f32 %v2796, %v2868
        %v2901 = vadd.f32 %v2797, %v2869
        %v2902 = vadd.f32 %v2798, %v2870
        %v2903 = vadd.f32 %v2799, %v2871
        %v2904 = vadd.f32 %v2800, %v2872
        %v2905 = vadd.f32 %v2801, %v2873
        %v2906 = vadd.f32 %v2802, %v2874
        %v2907 = vadd.f32 %v2803, %v2875
        %v2908 = vadd.f32 %v2804, %v2876
        %v2909 = vadd.f32 %v2805, %v2877
        %v2910 = vadd.f32 %v2806, %v2878
        %v2911 = vadd.f32 %v2807, %v2879
        %v2912 = vadd.f32 %v2808, %v2880
        %v2913 = vadd.f32 %v2809, %v2881
        %v2914 = vadd.f32 %v2810, %v2882
        %v2915 = vadd.f32 %v2811, %v2883
        %v2916 = vadd.f32 %v2812, %v2884
        %v2917 = vadd.f32 %v2813, %v2885
        %v2918 = vadd.f32 %v2814, %v2886
        %v2919 = vadd.f32 %v2815, %v2887
        %v2920 = vadd.f32 %v2816, %v2888
        %v2921 = vadd.f32 %v2817, %v2889
        %v2922 = vadd.f32 %v2818, %v2890
        %v2923 = vadd.f32 %v2819, %v2891
        %v2924 = vadd.f32 %v2820, %v2892
        %v2925 = vadd.f32 %v2821, %v2893
        %v2926 = vadd.f32 %v2822, %v2894
        %2927 = vrot.lane.b32.xlu0 0.0, 112
        %v2928 = vpop.permute.xlu0 %2927
        %2929 = vrot.lane.b32.xlu0 %v192, 112
        %v2930 = vpop.permute.xlu0 %2929
        %2931 = vrot.lane.b32.xlu0 %v193, 112
        %v2932 = vpop.permute.xlu0 %2931
        %2933 = vrot.lane.b32.xlu0 %v194, 112
        %v2934 = vpop.permute.xlu0 %2933
        %2935 = vrot.lane.b32.xlu0 %v195, 112
        %v2936 = vpop.permute.xlu0 %2935
        %2937 = vrot.lane.b32.xlu0 %v196, 112
        %v2938 = vpop.permute.xlu0 %2937
        %2939 = vrot.lane.b32.xlu0 %v197, 112
        %v2940 = vpop.permute.xlu0 %2939
        %2941 = vrot.lane.b32.xlu0 %v198, 112
        %v2942 = vpop.permute.xlu0 %2941
        %2943 = vrot.lane.b32.xlu0 %v199, 112
        %v2944 = vpop.permute.xlu0 %2943
        %2945 = vrot.lane.b32.xlu0 %v200, 112
        %v2946 = vpop.permute.xlu0 %2945
        %2947 = vrot.lane.b32.xlu0 %v201, 112
        %v2948 = vpop.permute.xlu0 %2947
        %2949 = vrot.lane.b32.xlu0 %v202, 112
        %v2950 = vpop.permute.xlu0 %2949
        %2951 = vrot.lane.b32.xlu0 %v203, 112
        %v2952 = vpop.permute.xlu0 %2951
        %2953 = vrot.lane.b32.xlu0 %v204, 112
        %v2954 = vpop.permute.xlu0 %2953
        %2955 = vrot.lane.b32.xlu0 %v205, 112
        %v2956 = vpop.permute.xlu0 %2955
        %2957 = vrot.lane.b32.xlu0 %v206, 112
        %v2958 = vpop.permute.xlu0 %2957
        %vm2959 = vcmask 916480
        %v2960 = vsel %vm2959, %v2928, %v2930
        %v2961 = vsel %vm2959, %v2930, %v2932
        %v2962 = vsel %vm2959, %v2932, %v2934
        %v2963 = vsel %vm2959, %v2934, %v2936
        %v2964 = vsel %vm2959, %v2936, %v2938
        %v2965 = vsel %vm2959, %v2938, %v2940
        %v2966 = vsel %vm2959, %v2940, %v2942
        %v2967 = vsel %vm2959, %v2942, %v2944
        %v2968 = vsel %vm2959, %v2944, %v2946
        %v2969 = vsel %vm2959, %v2946, %v2948
        %v2970 = vsel %vm2959, %v2948, %v2950
        %v2971 = vsel %vm2959, %v2950, %v2952
        %v2972 = vsel %vm2959, %v2952, %v2954
        %v2973 = vsel %vm2959, %v2954, %v2956
        %v2974 = vsel %vm2959, %v2956, %v2958
        %v2991 = vsel %vm2513, %v2928, 0.0
        %v2992 = vsel %vm2514, %v2960, 0.0
        %v2993 = vsel %vm2515, %v2961, 0.0
        %v2994 = vsel %vm2516, %v2962, 0.0
        %v2995 = vsel %vm2517, %v2963, 0.0
        %v2996 = vsel %vm2518, %v2964, 0.0
        %v2997 = vsel %vm2519, %v2965, 0.0
        %v2998 = vsel %vm2520, %v2966, 0.0
        %v2999 = vsel %vm2521, %v2967, 0.0
        %v3000 = vsel %vm2522, %v2968, 0.0
        %v3001 = vsel %vm2523, %v2969, 0.0
        %v3002 = vsel %vm2524, %v2970, 0.0
        %v3003 = vsel %vm2525, %v2971, 0.0
        %v3004 = vsel %vm2526, %v2972, 0.0
        %v3005 = vsel %vm2527, %v2973, 0.0
        %v3006 = vsel %vm2528, %v2974, 0.0
        %3007 = vset.pattern.permute.xlu0 7
        %3008 = vperm.xlu0 %3007, %v224
        %v3009 = vpop.permute.xlu0 %3008
        %3011 = vset.pattern.permute.xlu0 7
        %3012 = vperm.xlu0 %3011, %v225
        %v3013 = vpop.permute.xlu0 %3012
        %v3015 = vperm.slane %v2991, 0
        %v3016 = vperm.slane %v2992, 0
        %v3017 = vperm.slane %v2993, 0
        %v3018 = vperm.slane %v2994, 0
        %v3019 = vperm.slane %v2995, 0
        %v3020 = vperm.slane %v2996, 0
        %v3021 = vperm.slane %v2997, 0
        %v3022 = vperm.slane %v2998, 0
        %v3023 = vperm.slane %v2999, 0
        %v3024 = vperm.slane %v3000, 0
        %v3025 = vperm.slane %v3001, 0
        %v3026 = vperm.slane %v3002, 0
        %v3027 = vperm.slane %v3003, 0
        %v3028 = vperm.slane %v3004, 0
        %v3029 = vperm.slane %v3005, 0
        %v3030 = vperm.slane %v3006, 0
        %v3031 = vmul.f32 %v3009, %v3015
        %v3032 = vmul.f32 %v3009, %v3016
        %v3033 = vmul.f32 %v3009, %v3017
        %v3034 = vmul.f32 %v3009, %v3018
        %v3035 = vmul.f32 %v3009, %v3019
        %v3036 = vmul.f32 %v3009, %v3020
        %v3037 = vmul.f32 %v3009, %v3021
        %v3038 = vmul.f32 %v3009, %v3022
        %v3039 = vmul.f32 %v3009, %v3023
        %v3040 = vmul.f32 %v3009, %v3024
        %v3041 = vmul.f32 %v3009, %v3025
        %v3042 = vmul.f32 %v3009, %v3026
        %v3043 = vmul.f32 %v3009, %v3027
        %v3044 = vmul.f32 %v3009, %v3028
        %v3045 = vmul.f32 %v3009, %v3029
        %v3046 = vmul.f32 %v3009, %v3030
        %v3047 = vmul.f32 %v3013, %v3015
        %v3048 = vmul.f32 %v3013, %v3016
        %v3049 = vmul.f32 %v3013, %v3017
        %v3050 = vmul.f32 %v3013, %v3018
        %v3051 = vmul.f32 %v3013, %v3019
        %v3052 = vmul.f32 %v3013, %v3020
        %v3053 = vmul.f32 %v3013, %v3021
        %v3054 = vmul.f32 %v3013, %v3022
        %v3055 = vmul.f32 %v3013, %v3023
        %v3056 = vmul.f32 %v3013, %v3024
        %v3057 = vmul.f32 %v3013, %v3025
        %v3058 = vmul.f32 %v3013, %v3026
        %v3059 = vmul.f32 %v3013, %v3027
        %v3060 = vmul.f32 %v3013, %v3028
        %v3061 = vmul.f32 %v3013, %v3029
        %v3062 = vmul.f32 %v3013, %v3030
        %v3063 = vadd.f32 %v2895, %v3031
        %v3064 = vadd.f32 %v2896, %v3032
        %v3065 = vadd.f32 %v2897, %v3033
        %v3066 = vadd.f32 %v2898, %v3034
        %v3067 = vadd.f32 %v2899, %v3035
        %v3068 = vadd.f32 %v2900, %v3036
        %v3069 = vadd.f32 %v2901, %v3037
        %v3070 = vadd.f32 %v2902, %v3038
        %v3071 = vadd.f32 %v2903, %v3039
        %v3072 = vadd.f32 %v2904, %v3040
        %v3073 = vadd.f32 %v2905, %v3041
        %v3074 = vadd.f32 %v2906, %v3042
        %v3075 = vadd.f32 %v2907, %v3043
        %v3076 = vadd.f32 %v2908, %v3044
        %v3077 = vadd.f32 %v2909, %v3045
        %v3078 = vadd.f32 %v2910, %v3046
        %v3079 = vadd.f32 %v2911, %v3047
        %v3080 = vadd.f32 %v2912, %v3048
        %v3081 = vadd.f32 %v2913, %v3049
        %v3082 = vadd.f32 %v2914, %v3050
        %v3083 = vadd.f32 %v2915, %v3051
        %v3084 = vadd.f32 %v2916, %v3052
        %v3085 = vadd.f32 %v2917, %v3053
        %v3086 = vadd.f32 %v2918, %v3054
        %v3087 = vadd.f32 %v2919, %v3055
        %v3088 = vadd.f32 %v2920, %v3056
        %v3089 = vadd.f32 %v2921, %v3057
        %v3090 = vadd.f32 %v2922, %v3058
        %v3091 = vadd.f32 %v2923, %v3059
        %v3092 = vadd.f32 %v2924, %v3060
        %v3093 = vadd.f32 %v2925, %v3061
        %v3094 = vadd.f32 %v2926, %v3062
        %3095 = vrot.lane.b32.xlu0 %v207, 112
        %v3096 = vpop.permute.xlu0 %3095
        %v3097 = vsel %vm2959, %v2958, %v3096
        %v3098 = vsel %vm2959, %v3096, %v2928
        %v3101 = vsel %vm2513, %v2961, 0.0
        %v3102 = vsel %vm2514, %v2962, 0.0
        %v3103 = vsel %vm2515, %v2963, 0.0
        %v3104 = vsel %vm2516, %v2964, 0.0
        %v3105 = vsel %vm2517, %v2965, 0.0
        %v3106 = vsel %vm2518, %v2966, 0.0
        %v3107 = vsel %vm2519, %v2967, 0.0
        %v3108 = vsel %vm2520, %v2968, 0.0
        %v3109 = vsel %vm2521, %v2969, 0.0
        %v3110 = vsel %vm2522, %v2970, 0.0
        %v3111 = vsel %vm2523, %v2971, 0.0
        %v3112 = vsel %vm2524, %v2972, 0.0
        %v3113 = vsel %vm2525, %v2973, 0.0
        %v3114 = vsel %vm2526, %v2974, 0.0
        %v3115 = vsel %vm2527, %v3097, 0.0
        %v3116 = vsel %vm2528, %v3098, 0.0
        %3117 = vset.pattern.permute.xlu0 16
        %3118 = vperm.xlu0 %3117, %v224
        %v3119 = vpop.permute.xlu0 %3118
        %3121 = vset.pattern.permute.xlu0 16
        %3122 = vperm.xlu0 %3121, %v225
        %v3123 = vpop.permute.xlu0 %3122
        %v3125 = vperm.slane %v3101, 0
        %v3126 = vperm.slane %v3102, 0
        %v3127 = vperm.slane %v3103, 0
        %v3128 = vperm.slane %v3104, 0
        %v3129 = vperm.slane %v3105, 0
        %v3130 = vperm.slane %v3106, 0
        %v3131 = vperm.slane %v3107, 0
        %v3132 = vperm.slane %v3108, 0
        %v3133 = vperm.slane %v3109, 0
        %v3134 = vperm.slane %v3110, 0
        %v3135 = vperm.slane %v3111, 0
        %v3136 = vperm.slane %v3112, 0
        %v3137 = vperm.slane %v3113, 0
        %v3138 = vperm.slane %v3114, 0
        %v3139 = vperm.slane %v3115, 0
        %v3140 = vperm.slane %v3116, 0
        %v3141 = vmul.f32 %v3119, %v3125
        %v3142 = vmul.f32 %v3119, %v3126
        %v3143 = vmul.f32 %v3119, %v3127
        %v3144 = vmul.f32 %v3119, %v3128
        %v3145 = vmul.f32 %v3119, %v3129
        %v3146 = vmul.f32 %v3119, %v3130
        %v3147 = vmul.f32 %v3119, %v3131
        %v3148 = vmul.f32 %v3119, %v3132
        %v3149 = vmul.f32 %v3119, %v3133
        %v3150 = vmul.f32 %v3119, %v3134
        %v3151 = vmul.f32 %v3119, %v3135
        %v3152 = vmul.f32 %v3119, %v3136
        %v3153 = vmul.f32 %v3119, %v3137
        %v3154 = vmul.f32 %v3119, %v3138
        %v3155 = vmul.f32 %v3119, %v3139
        %v3156 = vmul.f32 %v3119, %v3140
        %v3157 = vmul.f32 %v3123, %v3125
        %v3158 = vmul.f32 %v3123, %v3126
        %v3159 = vmul.f32 %v3123, %v3127
        %v3160 = vmul.f32 %v3123, %v3128
        %v3161 = vmul.f32 %v3123, %v3129
        %v3162 = vmul.f32 %v3123, %v3130
        %v3163 = vmul.f32 %v3123, %v3131
        %v3164 = vmul.f32 %v3123, %v3132
        %v3165 = vmul.f32 %v3123, %v3133
        %v3166 = vmul.f32 %v3123, %v3134
        %v3167 = vmul.f32 %v3123, %v3135
        %v3168 = vmul.f32 %v3123, %v3136
        %v3169 = vmul.f32 %v3123, %v3137
        %v3170 = vmul.f32 %v3123, %v3138
        %v3171 = vmul.f32 %v3123, %v3139
        %v3172 = vmul.f32 %v3123, %v3140
        %v3173 = vadd.f32 %v3063, %v3141
        %v3174 = vadd.f32 %v3064, %v3142
        %v3175 = vadd.f32 %v3065, %v3143
        %v3176 = vadd.f32 %v3066, %v3144
        %v3177 = vadd.f32 %v3067, %v3145
        %v3178 = vadd.f32 %v3068, %v3146
        %v3179 = vadd.f32 %v3069, %v3147
        %v3180 = vadd.f32 %v3070, %v3148
        %v3181 = vadd.f32 %v3071, %v3149
        %v3182 = vadd.f32 %v3072, %v3150
        %v3183 = vadd.f32 %v3073, %v3151
        %v3184 = vadd.f32 %v3074, %v3152
        %v3185 = vadd.f32 %v3075, %v3153
        %v3186 = vadd.f32 %v3076, %v3154
        %v3187 = vadd.f32 %v3077, %v3155
        %v3188 = vadd.f32 %v3078, %v3156
        %v3189 = vadd.f32 %v3079, %v3157
        %v3190 = vadd.f32 %v3080, %v3158
        %v3191 = vadd.f32 %v3081, %v3159
        %v3192 = vadd.f32 %v3082, %v3160
        %v3193 = vadd.f32 %v3083, %v3161
        %v3194 = vadd.f32 %v3084, %v3162
        %v3195 = vadd.f32 %v3085, %v3163
        %v3196 = vadd.f32 %v3086, %v3164
        %v3197 = vadd.f32 %v3087, %v3165
        %v3198 = vadd.f32 %v3088, %v3166
        %v3199 = vadd.f32 %v3089, %v3167
        %v3200 = vadd.f32 %v3090, %v3168
        %v3201 = vadd.f32 %v3091, %v3169
        %v3202 = vadd.f32 %v3092, %v3170
        %v3203 = vadd.f32 %v3093, %v3171
        %v3204 = vadd.f32 %v3094, %v3172
        %v3205 = vsel %vm2513, %v2963, 0.0
        %v3206 = vsel %vm2514, %v2964, 0.0
        %v3207 = vsel %vm2515, %v2965, 0.0
        %v3208 = vsel %vm2516, %v2966, 0.0
        %v3209 = vsel %vm2517, %v2967, 0.0
        %v3210 = vsel %vm2518, %v2968, 0.0
        %v3211 = vsel %vm2519, %v2969, 0.0
        %v3212 = vsel %vm2520, %v2970, 0.0
        %v3213 = vsel %vm2521, %v2971, 0.0
        %v3214 = vsel %vm2522, %v2972, 0.0
        %v3215 = vsel %vm2523, %v2973, 0.0
        %v3216 = vsel %vm2524, %v2974, 0.0
        %v3217 = vsel %vm2525, %v3097, 0.0
        %v3218 = vsel %vm2526, %v3098, 0.0
        %v3219 = vsel %vm2527, %v2928, 0.0
        %v3220 = vsel %vm2528, %v2928, 0.0
        %3221 = vset.pattern.permute.xlu0 25
        %3222 = vperm.xlu0 %3221, %v224
        %v3223 = vpop.permute.xlu0 %3222
        %3225 = vset.pattern.permute.xlu0 25
        %3226 = vperm.xlu0 %3225, %v225
        %v3227 = vpop.permute.xlu0 %3226
        %v3229 = vperm.slane %v3205, 0
        %v3230 = vperm.slane %v3206, 0
        %v3231 = vperm.slane %v3207, 0
        %v3232 = vperm.slane %v3208, 0
        %v3233 = vperm.slane %v3209, 0
        %v3234 = vperm.slane %v3210, 0
        %v3235 = vperm.slane %v3211, 0
        %v3236 = vperm.slane %v3212, 0
        %v3237 = vperm.slane %v3213, 0
        %v3238 = vperm.slane %v3214, 0
        %v3239 = vperm.slane %v3215, 0
        %v3240 = vperm.slane %v3216, 0
        %v3241 = vperm.slane %v3217, 0
        %v3242 = vperm.slane %v3218, 0
        %v3243 = vperm.slane %v3219, 0
        %v3244 = vperm.slane %v3220, 0
        %v3245 = vmul.f32 %v3223, %v3229
        %v3246 = vmul.f32 %v3223, %v3230
        %v3247 = vmul.f32 %v3223, %v3231
        %v3248 = vmul.f32 %v3223, %v3232
        %v3249 = vmul.f32 %v3223, %v3233
        %v3250 = vmul.f32 %v3223, %v3234
        %v3251 = vmul.f32 %v3223, %v3235
        %v3252 = vmul.f32 %v3223, %v3236
        %v3253 = vmul.f32 %v3223, %v3237
        %v3254 = vmul.f32 %v3223, %v3238
        %v3255 = vmul.f32 %v3223, %v3239
        %v3256 = vmul.f32 %v3223, %v3240
        %v3257 = vmul.f32 %v3223, %v3241
        %v3258 = vmul.f32 %v3223, %v3242
        %v3259 = vmul.f32 %v3223, %v3243
        %v3260 = vmul.f32 %v3223, %v3244
        %v3261 = vmul.f32 %v3227, %v3229
        %v3262 = vmul.f32 %v3227, %v3230
        %v3263 = vmul.f32 %v3227, %v3231
        %v3264 = vmul.f32 %v3227, %v3232
        %v3265 = vmul.f32 %v3227, %v3233
        %v3266 = vmul.f32 %v3227, %v3234
        %v3267 = vmul.f32 %v3227, %v3235
        %v3268 = vmul.f32 %v3227, %v3236
        %v3269 = vmul.f32 %v3227, %v3237
        %v3270 = vmul.f32 %v3227, %v3238
        %v3271 = vmul.f32 %v3227, %v3239
        %v3272 = vmul.f32 %v3227, %v3240
        %v3273 = vmul.f32 %v3227, %v3241
        %v3274 = vmul.f32 %v3227, %v3242
        %v3275 = vmul.f32 %v3227, %v3243
        %v3276 = vmul.f32 %v3227, %v3244
        %v3277 = vadd.f32 %v3173, %v3245
        %v3278 = vadd.f32 %v3174, %v3246
        %v3279 = vadd.f32 %v3175, %v3247
        %v3280 = vadd.f32 %v3176, %v3248
        %v3281 = vadd.f32 %v3177, %v3249
        %v3282 = vadd.f32 %v3178, %v3250
        %v3283 = vadd.f32 %v3179, %v3251
        %v3284 = vadd.f32 %v3180, %v3252
        %v3285 = vadd.f32 %v3181, %v3253
        %v3286 = vadd.f32 %v3182, %v3254
        %v3287 = vadd.f32 %v3183, %v3255
        %v3288 = vadd.f32 %v3184, %v3256
        %v3289 = vadd.f32 %v3185, %v3257
        %v3290 = vadd.f32 %v3186, %v3258
        %v3291 = vadd.f32 %v3187, %v3259
        %v3292 = vadd.f32 %v3188, %v3260
        %v3293 = vadd.f32 %v3189, %v3261
        %v3294 = vadd.f32 %v3190, %v3262
        %v3295 = vadd.f32 %v3191, %v3263
        %v3296 = vadd.f32 %v3192, %v3264
        %v3297 = vadd.f32 %v3193, %v3265
        %v3298 = vadd.f32 %v3194, %v3266
        %v3299 = vadd.f32 %v3195, %v3267
        %v3300 = vadd.f32 %v3196, %v3268
        %v3301 = vadd.f32 %v3197, %v3269
        %v3302 = vadd.f32 %v3198, %v3270
        %v3303 = vadd.f32 %v3199, %v3271
        %v3304 = vadd.f32 %v3200, %v3272
        %v3305 = vadd.f32 %v3201, %v3273
        %v3306 = vadd.f32 %v3202, %v3274
        %v3307 = vadd.f32 %v3203, %v3275
        %v3308 = vadd.f32 %v3204, %v3276
        %vm3309 = vmand %vm2513, %vm1106
        %vm3310 = vmand %vm2514, %vm1107
        %vm3311 = vmand %vm2515, %vm1108
        %vm3312 = vmand %vm2516, %vm1109
        %vm3313 = vmand %vm2517, %vm1110
        %vm3314 = vmand %vm2518, %vm1111
        %vm3315 = vmand %vm2519, %vm1112
        %vm3316 = vmand %vm2520, %vm1113
        %vm3317 = vmand %vm2521, %vm1114
        %vm3318 = vmand %vm2522, %vm1115
        %vm3319 = vmand %vm2523, %vm1116
        %vm3320 = vmand %vm2524, %vm1117
        %vm3321 = vmand %vm2525, %vm1118
        %vm3322 = vmand %vm2526, %vm1119
        %vm3323 = vmand %vm2527, %vm1120
        %vm3324 = vmand %vm2528, %vm1121
        %3325 = vrot.lane.b32.xlu0 0.0, 111
        %v3326 = vpop.permute.xlu0 %3325
        %3327 = vrot.lane.b32.xlu0 %v192, 111
        %v3328 = vpop.permute.xlu0 %3327
        %3329 = vrot.lane.b32.xlu0 %v193, 111
        %v3330 = vpop.permute.xlu0 %3329
        %3331 = vrot.lane.b32.xlu0 %v194, 111
        %v3332 = vpop.permute.xlu0 %3331
        %3333 = vrot.lane.b32.xlu0 %v195, 111
        %v3334 = vpop.permute.xlu0 %3333
        %3335 = vrot.lane.b32.xlu0 %v196, 111
        %v3336 = vpop.permute.xlu0 %3335
        %3337 = vrot.lane.b32.xlu0 %v197, 111
        %v3338 = vpop.permute.xlu0 %3337
        %3339 = vrot.lane.b32.xlu0 %v198, 111
        %v3340 = vpop.permute.xlu0 %3339
        %3341 = vrot.lane.b32.xlu0 %v199, 111
        %v3342 = vpop.permute.xlu0 %3341
        %3343 = vrot.lane.b32.xlu0 %v200, 111
        %v3344 = vpop.permute.xlu0 %3343
        %3345 = vrot.lane.b32.xlu0 %v201, 111
        %v3346 = vpop.permute.xlu0 %3345
        %3347 = vrot.lane.b32.xlu0 %v202, 111
        %v3348 = vpop.permute.xlu0 %3347
        %3349 = vrot.lane.b32.xlu0 %v203, 111
        %v3350 = vpop.permute.xlu0 %3349
        %3351 = vrot.lane.b32.xlu0 %v204, 111
        %v3352 = vpop.permute.xlu0 %3351
        %3353 = vrot.lane.b32.xlu0 %v205, 111
        %v3354 = vpop.permute.xlu0 %3353
        %3355 = vrot.lane.b32.xlu0 %v206, 111
        %v3356 = vpop.permute.xlu0 %3355
        %vm3357 = vcmask 908288
        %v3358 = vsel %vm3357, %v3326, %v3328
        %v3359 = vsel %vm3357, %v3328, %v3330
        %v3360 = vsel %vm3357, %v3330, %v3332
        %v3361 = vsel %vm3357, %v3332, %v3334
        %v3362 = vsel %vm3357, %v3334, %v3336
        %v3363 = vsel %vm3357, %v3336, %v3338
        %v3364 = vsel %vm3357, %v3338, %v3340
        %v3365 = vsel %vm3357, %v3340, %v3342
        %v3366 = vsel %vm3357, %v3342, %v3344
        %v3367 = vsel %vm3357, %v3344, %v3346
        %v3368 = vsel %vm3357, %v3346, %v3348
        %v3369 = vsel %vm3357, %v3348, %v3350
        %v3370 = vsel %vm3357, %v3350, %v3352
        %v3371 = vsel %vm3357, %v3352, %v3354
        %v3372 = vsel %vm3357, %v3354, %v3356
        %v3389 = vsel %vm3309, %v3326, 0.0
        %v3390 = vsel %vm3310, %v3358, 0.0
        %v3391 = vsel %vm3311, %v3359, 0.0
        %v3392 = vsel %vm3312, %v3360, 0.0
        %v3393 = vsel %vm3313, %v3361, 0.0
        %v3394 = vsel %vm3314, %v3362, 0.0
        %v3395 = vsel %vm3315, %v3363, 0.0
        %v3396 = vsel %vm3316, %v3364, 0.0
        %v3397 = vsel %vm3317, %v3365, 0.0
        %v3398 = vsel %vm3318, %v3366, 0.0
        %v3399 = vsel %vm3319, %v3367, 0.0
        %v3400 = vsel %vm3320, %v3368, 0.0
        %v3401 = vsel %vm3321, %v3369, 0.0
        %v3402 = vsel %vm3322, %v3370, 0.0
        %v3403 = vsel %vm3323, %v3371, 0.0
        %v3404 = vsel %vm3324, %v3372, 0.0
        %3405 = vset.pattern.permute.xlu0 8
        %3406 = vperm.xlu0 %3405, %v224
        %v3407 = vpop.permute.xlu0 %3406
        %3409 = vset.pattern.permute.xlu0 8
        %3410 = vperm.xlu0 %3409, %v225
        %v3411 = vpop.permute.xlu0 %3410
        %v3413 = vperm.slane %v3389, 0
        %v3414 = vperm.slane %v3390, 0
        %v3415 = vperm.slane %v3391, 0
        %v3416 = vperm.slane %v3392, 0
        %v3417 = vperm.slane %v3393, 0
        %v3418 = vperm.slane %v3394, 0
        %v3419 = vperm.slane %v3395, 0
        %v3420 = vperm.slane %v3396, 0
        %v3421 = vperm.slane %v3397, 0
        %v3422 = vperm.slane %v3398, 0
        %v3423 = vperm.slane %v3399, 0
        %v3424 = vperm.slane %v3400, 0
        %v3425 = vperm.slane %v3401, 0
        %v3426 = vperm.slane %v3402, 0
        %v3427 = vperm.slane %v3403, 0
        %v3428 = vperm.slane %v3404, 0
        %v3429 = vmul.f32 %v3407, %v3413
        %v3430 = vmul.f32 %v3407, %v3414
        %v3431 = vmul.f32 %v3407, %v3415
        %v3432 = vmul.f32 %v3407, %v3416
        %v3433 = vmul.f32 %v3407, %v3417
        %v3434 = vmul.f32 %v3407, %v3418
        %v3435 = vmul.f32 %v3407, %v3419
        %v3436 = vmul.f32 %v3407, %v3420
        %v3437 = vmul.f32 %v3407, %v3421
        %v3438 = vmul.f32 %v3407, %v3422
        %v3439 = vmul.f32 %v3407, %v3423
        %v3440 = vmul.f32 %v3407, %v3424
        %v3441 = vmul.f32 %v3407, %v3425
        %v3442 = vmul.f32 %v3407, %v3426
        %v3443 = vmul.f32 %v3407, %v3427
        %v3444 = vmul.f32 %v3407, %v3428
        %v3445 = vmul.f32 %v3411, %v3413
        %v3446 = vmul.f32 %v3411, %v3414
        %v3447 = vmul.f32 %v3411, %v3415
        %v3448 = vmul.f32 %v3411, %v3416
        %v3449 = vmul.f32 %v3411, %v3417
        %v3450 = vmul.f32 %v3411, %v3418
        %v3451 = vmul.f32 %v3411, %v3419
        %v3452 = vmul.f32 %v3411, %v3420
        %v3453 = vmul.f32 %v3411, %v3421
        %v3454 = vmul.f32 %v3411, %v3422
        %v3455 = vmul.f32 %v3411, %v3423
        %v3456 = vmul.f32 %v3411, %v3424
        %v3457 = vmul.f32 %v3411, %v3425
        %v3458 = vmul.f32 %v3411, %v3426
        %v3459 = vmul.f32 %v3411, %v3427
        %v3460 = vmul.f32 %v3411, %v3428
        %v3461 = vadd.f32 %v3277, %v3429
        %v3462 = vadd.f32 %v3278, %v3430
        %v3463 = vadd.f32 %v3279, %v3431
        %v3464 = vadd.f32 %v3280, %v3432
        %v3465 = vadd.f32 %v3281, %v3433
        %v3466 = vadd.f32 %v3282, %v3434
        %v3467 = vadd.f32 %v3283, %v3435
        %v3468 = vadd.f32 %v3284, %v3436
        %v3469 = vadd.f32 %v3285, %v3437
        %v3470 = vadd.f32 %v3286, %v3438
        %v3471 = vadd.f32 %v3287, %v3439
        %v3472 = vadd.f32 %v3288, %v3440
        %v3473 = vadd.f32 %v3289, %v3441
        %v3474 = vadd.f32 %v3290, %v3442
        %v3475 = vadd.f32 %v3291, %v3443
        %v3476 = vadd.f32 %v3292, %v3444
        %v3477 = vadd.f32 %v3293, %v3445
        %v3478 = vadd.f32 %v3294, %v3446
        %v3479 = vadd.f32 %v3295, %v3447
        %v3480 = vadd.f32 %v3296, %v3448
        %v3481 = vadd.f32 %v3297, %v3449
        %v3482 = vadd.f32 %v3298, %v3450
        %v3483 = vadd.f32 %v3299, %v3451
        %v3484 = vadd.f32 %v3300, %v3452
        %v3485 = vadd.f32 %v3301, %v3453
        %v3486 = vadd.f32 %v3302, %v3454
        %v3487 = vadd.f32 %v3303, %v3455
        %v3488 = vadd.f32 %v3304, %v3456
        %v3489 = vadd.f32 %v3305, %v3457
        %v3490 = vadd.f32 %v3306, %v3458
        %v3491 = vadd.f32 %v3307, %v3459
        %v3492 = vadd.f32 %v3308, %v3460
        %3493 = vrot.lane.b32.xlu0 %v207, 111
        %v3494 = vpop.permute.xlu0 %3493
        %v3495 = vsel %vm3357, %v3356, %v3494
        %v3496 = vsel %vm3357, %v3494, %v3326
        %v3499 = vsel %vm3309, %v3359, 0.0
        %v3500 = vsel %vm3310, %v3360, 0.0
        %v3501 = vsel %vm3311, %v3361, 0.0
        %v3502 = vsel %vm3312, %v3362, 0.0
        %v3503 = vsel %vm3313, %v3363, 0.0
        %v3504 = vsel %vm3314, %v3364, 0.0
        %v3505 = vsel %vm3315, %v3365, 0.0
        %v3506 = vsel %vm3316, %v3366, 0.0
        %v3507 = vsel %vm3317, %v3367, 0.0
        %v3508 = vsel %vm3318, %v3368, 0.0
        %v3509 = vsel %vm3319, %v3369, 0.0
        %v3510 = vsel %vm3320, %v3370, 0.0
        %v3511 = vsel %vm3321, %v3371, 0.0
        %v3512 = vsel %vm3322, %v3372, 0.0
        %v3513 = vsel %vm3323, %v3495, 0.0
        %v3514 = vsel %vm3324, %v3496, 0.0
        %3515 = vset.pattern.permute.xlu0 17
        %3516 = vperm.xlu0 %3515, %v224
        %v3517 = vpop.permute.xlu0 %3516
        %3519 = vset.pattern.permute.xlu0 17
        %3520 = vperm.xlu0 %3519, %v225
        %v3521 = vpop.permute.xlu0 %3520
        %v3523 = vperm.slane %v3499, 0
        %v3524 = vperm.slane %v3500, 0
        %v3525 = vperm.slane %v3501, 0
        %v3526 = vperm.slane %v3502, 0
        %v3527 = vperm.slane %v3503, 0
        %v3528 = vperm.slane %v3504, 0
        %v3529 = vperm.slane %v3505, 0
        %v3530 = vperm.slane %v3506, 0
        %v3531 = vperm.slane %v3507, 0
        %v3532 = vperm.slane %v3508, 0
        %v3533 = vperm.slane %v3509, 0
        %v3534 = vperm.slane %v3510, 0
        %v3535 = vperm.slane %v3511, 0
        %v3536 = vperm.slane %v3512, 0
        %v3537 = vperm.slane %v3513, 0
        %v3538 = vperm.slane %v3514, 0
        %v3539 = vmul.f32 %v3517, %v3523
        %v3540 = vmul.f32 %v3517, %v3524
        %v3541 = vmul.f32 %v3517, %v3525
        %v3542 = vmul.f32 %v3517, %v3526
        %v3543 = vmul.f32 %v3517, %v3527
        %v3544 = vmul.f32 %v3517, %v3528
        %v3545 = vmul.f32 %v3517, %v3529
        %v3546 = vmul.f32 %v3517, %v3530
        %v3547 = vmul.f32 %v3517, %v3531
        %v3548 = vmul.f32 %v3517, %v3532
        %v3549 = vmul.f32 %v3517, %v3533
        %v3550 = vmul.f32 %v3517, %v3534
        %v3551 = vmul.f32 %v3517, %v3535
        %v3552 = vmul.f32 %v3517, %v3536
        %v3553 = vmul.f32 %v3517, %v3537
        %v3554 = vmul.f32 %v3517, %v3538
        %v3555 = vmul.f32 %v3521, %v3523
        %v3556 = vmul.f32 %v3521, %v3524
        %v3557 = vmul.f32 %v3521, %v3525
        %v3558 = vmul.f32 %v3521, %v3526
        %v3559 = vmul.f32 %v3521, %v3527
        %v3560 = vmul.f32 %v3521, %v3528
        %v3561 = vmul.f32 %v3521, %v3529
        %v3562 = vmul.f32 %v3521, %v3530
        %v3563 = vmul.f32 %v3521, %v3531
        %v3564 = vmul.f32 %v3521, %v3532
        %v3565 = vmul.f32 %v3521, %v3533
        %v3566 = vmul.f32 %v3521, %v3534
        %v3567 = vmul.f32 %v3521, %v3535
        %v3568 = vmul.f32 %v3521, %v3536
        %v3569 = vmul.f32 %v3521, %v3537
        %v3570 = vmul.f32 %v3521, %v3538
        %v3571 = vadd.f32 %v3461, %v3539
        %v3572 = vadd.f32 %v3462, %v3540
        %v3573 = vadd.f32 %v3463, %v3541
        %v3574 = vadd.f32 %v3464, %v3542
        %v3575 = vadd.f32 %v3465, %v3543
        %v3576 = vadd.f32 %v3466, %v3544
        %v3577 = vadd.f32 %v3467, %v3545
        %v3578 = vadd.f32 %v3468, %v3546
        %v3579 = vadd.f32 %v3469, %v3547
        %v3580 = vadd.f32 %v3470, %v3548
        %v3581 = vadd.f32 %v3471, %v3549
        %v3582 = vadd.f32 %v3472, %v3550
        %v3583 = vadd.f32 %v3473, %v3551
        %v3584 = vadd.f32 %v3474, %v3552
        %v3585 = vadd.f32 %v3475, %v3553
        %v3586 = vadd.f32 %v3476, %v3554
        %v3587 = vadd.f32 %v3477, %v3555
        %v3588 = vadd.f32 %v3478, %v3556
        %v3589 = vadd.f32 %v3479, %v3557
        %v3590 = vadd.f32 %v3480, %v3558
        %v3591 = vadd.f32 %v3481, %v3559
        %v3592 = vadd.f32 %v3482, %v3560
        %v3593 = vadd.f32 %v3483, %v3561
        %v3594 = vadd.f32 %v3484, %v3562
        %v3595 = vadd.f32 %v3485, %v3563
        %v3596 = vadd.f32 %v3486, %v3564
        %v3597 = vadd.f32 %v3487, %v3565
        %v3598 = vadd.f32 %v3488, %v3566
        %v3599 = vadd.f32 %v3489, %v3567
        %v3600 = vadd.f32 %v3490, %v3568
        %v3601 = vadd.f32 %v3491, %v3569
        %v3602 = vadd.f32 %v3492, %v3570
        %v3603 = vsel %vm3309, %v3361, 0.0
        %v3604 = vsel %vm3310, %v3362, 0.0
        %v3605 = vsel %vm3311, %v3363, 0.0
        %v3606 = vsel %vm3312, %v3364, 0.0
        %v3607 = vsel %vm3313, %v3365, 0.0
        %v3608 = vsel %vm3314, %v3366, 0.0
        %v3609 = vsel %vm3315, %v3367, 0.0
        %v3610 = vsel %vm3316, %v3368, 0.0
        %v3611 = vsel %vm3317, %v3369, 0.0
        %v3612 = vsel %vm3318, %v3370, 0.0
        %v3613 = vsel %vm3319, %v3371, 0.0
        %v3614 = vsel %vm3320, %v3372, 0.0
        %v3615 = vsel %vm3321, %v3495, 0.0
        %v3616 = vsel %vm3322, %v3496, 0.0
        %v3617 = vsel %vm3323, %v3326, 0.0
        %v3618 = vsel %vm3324, %v3326, 0.0
        %3619 = vset.pattern.permute.xlu0 26
        %3620 = vperm.xlu0 %3619, %v224
        %v3621 = vpop.permute.xlu0 %3620
        %3623 = vset.pattern.permute.xlu0 26
        %3624 = vperm.xlu0 %3623, %v225
        %v3625 = vpop.permute.xlu0 %3624
        %v3627 = vperm.slane %v3603, 0
        %v3628 = vperm.slane %v3604, 0
        %v3629 = vperm.slane %v3605, 0
        %v3630 = vperm.slane %v3606, 0
        %v3631 = vperm.slane %v3607, 0
        %v3632 = vperm.slane %v3608, 0
        %v3633 = vperm.slane %v3609, 0
        %v3634 = vperm.slane %v3610, 0
        %v3635 = vperm.slane %v3611, 0
        %v3636 = vperm.slane %v3612, 0
        %v3637 = vperm.slane %v3613, 0
        %v3638 = vperm.slane %v3614, 0
        %v3639 = vperm.slane %v3615, 0
        %v3640 = vperm.slane %v3616, 0
        %v3641 = vperm.slane %v3617, 0
        %v3642 = vperm.slane %v3618, 0
        %v3643 = vmul.f32 %v3621, %v3627
        %v3644 = vmul.f32 %v3621, %v3628
        %v3645 = vmul.f32 %v3621, %v3629
        %v3646 = vmul.f32 %v3621, %v3630
        %v3647 = vmul.f32 %v3621, %v3631
        %v3648 = vmul.f32 %v3621, %v3632
        %v3649 = vmul.f32 %v3621, %v3633
        %v3650 = vmul.f32 %v3621, %v3634
        %v3651 = vmul.f32 %v3621, %v3635
        %v3652 = vmul.f32 %v3621, %v3636
        %v3653 = vmul.f32 %v3621, %v3637
        %v3654 = vmul.f32 %v3621, %v3638
        %v3655 = vmul.f32 %v3621, %v3639
        %v3656 = vmul.f32 %v3621, %v3640
        %v3657 = vmul.f32 %v3621, %v3641
        %v3658 = vmul.f32 %v3621, %v3642
        %v3659 = vmul.f32 %v3625, %v3627
        %v3660 = vmul.f32 %v3625, %v3628
        %v3661 = vmul.f32 %v3625, %v3629
        %v3662 = vmul.f32 %v3625, %v3630
        %v3663 = vmul.f32 %v3625, %v3631
        %v3664 = vmul.f32 %v3625, %v3632
        %v3665 = vmul.f32 %v3625, %v3633
        %v3666 = vmul.f32 %v3625, %v3634
        %v3667 = vmul.f32 %v3625, %v3635
        %v3668 = vmul.f32 %v3625, %v3636
        %v3669 = vmul.f32 %v3625, %v3637
        %v3670 = vmul.f32 %v3625, %v3638
        %v3671 = vmul.f32 %v3625, %v3639
        %v3672 = vmul.f32 %v3625, %v3640
        %v3673 = vmul.f32 %v3625, %v3641
        %v3674 = vmul.f32 %v3625, %v3642
        %v3675 = vadd.f32 %v3571, %v3643
        %v3676 = vadd.f32 %v3572, %v3644
        %v3677 = vadd.f32 %v3573, %v3645
        %v3678 = vadd.f32 %v3574, %v3646
        %v3679 = vadd.f32 %v3575, %v3647
        %v3680 = vadd.f32 %v3576, %v3648
        %v3681 = vadd.f32 %v3577, %v3649
        %v3682 = vadd.f32 %v3578, %v3650
        %v3683 = vadd.f32 %v3579, %v3651
        %v3684 = vadd.f32 %v3580, %v3652
        %v3685 = vadd.f32 %v3581, %v3653
        %v3686 = vadd.f32 %v3582, %v3654
        %v3687 = vadd.f32 %v3583, %v3655
        %v3688 = vadd.f32 %v3584, %v3656
        %v3689 = vadd.f32 %v3585, %v3657
        %v3690 = vadd.f32 %v3586, %v3658
        %v3691 = vadd.f32 %v3587, %v3659
        %v3692 = vadd.f32 %v3588, %v3660
        %v3693 = vadd.f32 %v3589, %v3661
        %v3694 = vadd.f32 %v3590, %v3662
        %v3695 = vadd.f32 %v3591, %v3663
        %v3696 = vadd.f32 %v3592, %v3664
        %v3697 = vadd.f32 %v3593, %v3665
        %v3698 = vadd.f32 %v3594, %v3666
        %v3699 = vadd.f32 %v3595, %v3667
        %v3700 = vadd.f32 %v3596, %v3668
        %v3701 = vadd.f32 %v3597, %v3669
        %v3702 = vadd.f32 %v3598, %v3670
        %v3703 = vadd.f32 %v3599, %v3671
        %v3704 = vadd.f32 %v3600, %v3672
        %v3705 = vadd.f32 %v3601, %v3673
        %v3706 = vadd.f32 %v3602, %v3674
        %v3707 = vld [vmem:[%s2] sm:$0xff]
        %v3708 = vld [vmem:[%s2 + $0x8] sm:$0xff]
        %3710 = vset.pattern.permute.xlu0 0
        %3711 = vperm.xlu0 %3710, %v3707
        %v3712 = vpop.permute.xlu0 %3711
        %3715 = vset.pattern.permute.xlu0 0
        %3716 = vperm.xlu0 %3715, %v3708
        %v3717 = vpop.permute.xlu0 %3716
        %v3719 = vadd.f32 %v3675, %v3712
        %v3720 = vadd.f32 %v3676, %v3712
        %v3721 = vadd.f32 %v3677, %v3712
        %v3722 = vadd.f32 %v3678, %v3712
        %v3723 = vadd.f32 %v3679, %v3712
        %v3724 = vadd.f32 %v3680, %v3712
        %v3725 = vadd.f32 %v3681, %v3712
        %v3726 = vadd.f32 %v3682, %v3712
        %v3727 = vadd.f32 %v3683, %v3712
        %v3728 = vadd.f32 %v3684, %v3712
        %v3729 = vadd.f32 %v3685, %v3712
        %v3730 = vadd.f32 %v3686, %v3712
        %v3731 = vadd.f32 %v3687, %v3712
        %v3732 = vadd.f32 %v3688, %v3712
        %v3733 = vadd.f32 %v3689, %v3712
        %v3734 = vadd.f32 %v3690, %v3712
        %v3735 = vadd.f32 %v3691, %v3717
        %v3736 = vadd.f32 %v3692, %v3717
        %v3737 = vadd.f32 %v3693, %v3717
        %v3738 = vadd.f32 %v3694, %v3717
        %v3739 = vadd.f32 %v3695, %v3717
        %v3740 = vadd.f32 %v3696, %v3717
        %v3741 = vadd.f32 %v3697, %v3717
        %v3742 = vadd.f32 %v3698, %v3717
        %v3743 = vadd.f32 %v3699, %v3717
        %v3744 = vadd.f32 %v3700, %v3717
        %v3745 = vadd.f32 %v3701, %v3717
        %v3746 = vadd.f32 %v3702, %v3717
        %v3747 = vadd.f32 %v3703, %v3717
        %v3748 = vadd.f32 %v3704, %v3717
        %v3749 = vadd.f32 %v3705, %v3717
        %v3750 = vadd.f32 %v3706, %v3717
        %3751 = vst [vmem:[%s187] sm:$0xff] %v3719
        %3752 = vst [vmem:[%s187 + $0x8] sm:$0xff] %v3720
        %3753 = vst [vmem:[%s187 + $0x10] sm:$0xff] %v3721
        %3754 = vst [vmem:[%s187 + $0x18] sm:$0xff] %v3722
        %3755 = vst [vmem:[%s187 + $0x20] sm:$0xff] %v3723
        %3756 = vst [vmem:[%s187 + $0x28] sm:$0xff] %v3724
        %3757 = vst [vmem:[%s187 + $0x30] sm:$0xff] %v3725
        %3758 = vst [vmem:[%s187 + $0x38] sm:$0xff] %v3726
        %3759 = vst [vmem:[%s187 + $0x40] sm:$0xff] %v3727
        %3760 = vst [vmem:[%s187 + $0x48] sm:$0xff] %v3728
        %3761 = vst [vmem:[%s187 + $0x50] sm:$0xff] %v3729
        %3762 = vst [vmem:[%s187 + $0x58] sm:$0xff] %v3730
        %3763 = vst [vmem:[%s187 + $0x60] sm:$0xff] %v3731
        %3764 = vst [vmem:[%s187 + $0x68] sm:$0xff] %v3732
        %3765 = vst [vmem:[%s187 + $0x70] sm:$0xff] %v3733
        %3766 = vst [vmem:[%s187 + $0x78] sm:$0xff] %v3734
        %3767 = vst [vmem:[%s187 + $0x80] sm:$0xff] %v3735
        %3768 = vst [vmem:[%s187 + $0x88] sm:$0xff] %v3736
        %3769 = vst [vmem:[%s187 + $0x90] sm:$0xff] %v3737
        %3770 = vst [vmem:[%s187 + $0x98] sm:$0xff] %v3738
        %3771 = vst [vmem:[%s187 + $0xa0] sm:$0xff] %v3739
        %3772 = vst [vmem:[%s187 + $0xa8] sm:$0xff] %v3740
        %3773 = vst [vmem:[%s187 + $0xb0] sm:$0xff] %v3741
        %3774 = vst [vmem:[%s187 + $0xb8] sm:$0xff] %v3742
        %3775 = vst [vmem:[%s187 + $0xc0] sm:$0xff] %v3743
        %3776 = vst [vmem:[%s187 + $0xc8] sm:$0xff] %v3744
        %3777 = vst [vmem:[%s187 + $0xd0] sm:$0xff] %v3745
        %3778 = vst [vmem:[%s187 + $0xd8] sm:$0xff] %v3746
        %3779 = vst [vmem:[%s187 + $0xe0] sm:$0xff] %v3747
        %3780 = vst [vmem:[%s187 + $0xe8] sm:$0xff] %v3748
        %3781 = vst [vmem:[%s187 + $0xf0] sm:$0xff] %v3749
        %3782 = vst [vmem:[%s187 + $0xf8] sm:$0xff] %v3750
        %s3783 = sand.u32 %s96, 1
        %s3784 = scalar_lea.sflag [#allocation4], %s3783
        %s3785 = sand.u32 %s96, 1
        %s3786 = smul.addr %s3785, 256
        %s3787 = scalar_lea.vmem [#allocation5], %s3786
        // Predicated region
        $region37: #{tpu_custom_call.1} parent=31 // pred_check
          %p3788 = pneg %p106
        $region38: #{tpu_custom_call.1} parent=31 // pred_check_branch
          %3790 = sbr.rel (%p3788) target = $region40
        $region39: #{tpu_custom_call.1} parent=31 // pred_region
          %3792 = vsyncadd %s3784, 0
          %s3793 = smul.addr %s20, 32
          %s3794 = smul.addr %s3793, 8
          %s3795 = scalar_lea.hbm %s3, %s3794
          %s3796 = sshll.u32 %s3787, 4
          %s3797 = int_to_ptr.vmem [resolvable:$true] %s3796
          %s3798 = sshll.u32 %s3795, 4
          %s3799 = int_to_ptr.hbm [resolvable:$true] %s3798
          %3804 = dma.vmem_to_hbm [thread:$0]  %s3797, 4096, %s3799, %s3784, 2048, 2048, 128
        $region40: #{tpu_custom_call.1} parent=31 // pred_fallthru
          _
      $region32: #{tpu_custom_call.1} parent=5 // pred_fallthru
        _
      %p3805 = scmp.le.s32.totalorder 2, %s15
      // Predicated region
      $region41: #{tpu_custom_call.1} parent=5 // pred_check
        %p3806 = pneg %p3805
      $region42: #{tpu_custom_call.1} parent=5 // pred_check_branch
        %3808 = sbr.rel (%p3806) target = $region44
      $region43: #{tpu_custom_call.1} parent=5 // pred_region
        %s3809 = ssub.s32 %s15, 2
        // Predicated region
        $region45: #{tpu_custom_call.1} parent=43 // pred_check
          %p3810 = pneg %p112
        $region46: #{tpu_custom_call.1} parent=43 // pred_check_branch
          %3812 = sbr.rel (%p3810) target = $region48
        $region47: #{tpu_custom_call.1} parent=43 // pred_region
          %s3813 = sand.u32 %s97, 1
          %s3814 = scalar_lea.sflag [#allocation4], %s3813
          %s3815 = sand.u32 %s97, 1
          %s3816 = smul.addr %s3815, 256
          %s3817 = scalar_lea.vmem [#allocation5], %s3816
          %3819 = dma.done %s3814, 4096
        $region48: #{tpu_custom_call.1} parent=43 // pred_fallthru
          _
      $region44: #{tpu_custom_call.1} parent=5 // pred_fallthru
        _
    $region6: #{tpu_custom_call.1} parent=1 // loop_footer
      %s19 = sadd.s32 1, %s15
    $region7: #{tpu_custom_call.1} parent=1 // loop_footer_branch
      %14 = sbr.rel target = $region3
    $region8: #{tpu_custom_call.1} parent=1 // loop_exit
      _
    %3820 = vsyncpa [#allocation3], 1
    %s3821 = scalar_lea.sflag [#allocation3], 1
    %3822 = vsyncpa %s3821, 1
    %3823 = vsyncpa [#allocation4], 1
    %s3824 = scalar_lea.sflag [#allocation4], 1
    %3825 = vsyncpa %s3824, 1

</llo_original>
